<compile_context>
chip_gen: v7x
topology: tpu7x:2x2x1
jax: 0.10.0
libtpu: 0.0.40
codegen_flags: <defaults>
</compile_context>

<pallas_src>
import jax
import jax.numpy as jnp
from jax.experimental import pallas as pl
from jax.experimental.pallas import tpu as pltpu


def _round_up(n, m):
    return (n + m - 1) // m * m


def _mlp_kernel(
    x_ref,                       # (TB, F_pad)   bf16
    w1_ref, b1_ref,              # (F_pad,1024) bf16 / (1,1024) f32
    w2_ref, b2_ref,              # (1024,512)   bf16 / (1,512)  f32
    w3_ref, b3_ref,              # (512,256)    bf16 / (1,256)  f32
    w4_ref, b4_ref,              # (256,128)    bf16 / (1,128)  f32
    w5t_ref, b5_ref,             # (1,128) f32  / (1,1) f32
    o_ref,                       # (1, TB)      f32
):
    # Block 1: Linear(+folded BN) -> ReLU          (bf16 dot, f32 accumulate)
    h = jnp.dot(x_ref[...], w1_ref[...], preferred_element_type=jnp.float32)
    h = jnp.maximum(h + b1_ref[...], 0.0).astype(jnp.bfloat16)

    # Block 2
    h = jnp.dot(h, w2_ref[...], preferred_element_type=jnp.float32)
    h = jnp.maximum(h + b2_ref[...], 0.0).astype(jnp.bfloat16)

    # Block 3
    h = jnp.dot(h, w3_ref[...], preferred_element_type=jnp.float32)
    h = jnp.maximum(h + b3_ref[...], 0.0).astype(jnp.bfloat16)

    # Block 4
    h = jnp.dot(h, w4_ref[...], preferred_element_type=jnp.float32)
    h = jnp.maximum(h + b4_ref[...], 0.0)          # (TB, 128) f32

    # Head: Linear(128, 1) + Sigmoid, produced lane-dense as a (1, TB) row.
    # Contract w5t's dim 1 with h's dim 1 (no explicit transpose of h):
    #   logits[0, m] = sum_k w5[k] * h[m, k]
    logits = jax.lax.dot_general(
        w5t_ref[...], h,
        dimension_numbers=(((1,), (1,)), ((), ())),
        preferred_element_type=jnp.float32,
    ) + b5_ref[...]                                # (1, TB)
    o_ref[...] = pl.reciprocal(1.0 + jnp.exp(-logits), approx=True)


def _vmem_bytes(f_pad, tb):
    """Resident weights + double-buffered streams + activation temporaries."""
    w_bytes = 2 * (f_pad * 1024 + 1024 * 512 + 512 * 256 + 256 * 128) + 4 * 128
    b_bytes = 4 * (1024 + 512 + 256 + 128 + 1)
    x_stream = 2 * (tb * f_pad * 2)     # double-buffered bf16 input tiles
    o_stream = 2 * (tb * 4)             # double-buffered f32 output tiles
    act = 4 * tb * 1024 * 3             # f32 activation temporaries (generous)
    return w_bytes + b_bytes + x_stream + o_stream + act


def _pick_tile_b(B, f_pad, cap_bytes=44 << 20):
    """Largest batch tile in {1024,512,256,128} that doesn't over-pad the batch
    and keeps the working set under the VMEM cap (amortizes ~0.35us/step)."""
    b_up = _round_up(max(B, 1), 128)
    for tb in (1024, 512, 256, 128):
        if tb <= b_up and _vmem_bytes(f_pad, tb) <= cap_bytes:
            return tb
    return 128


def ember_mlp_forward(x, params):
    """x: (B, F) float32.  params: dict of BN-folded weights (see init_params)."""
    B, F = x.shape
    F_pad = params["w1f"].shape[0]
    assert F <= F_pad

    TB = _pick_tile_b(B, F_pad)
    B_pad = _round_up(B, TB)
    num_tiles = B_pad // TB

    # Pad batch and features with zeros; stream x in bf16.
    x_p = jnp.zeros((B_pad, F_pad), jnp.bfloat16)
    x_p = x_p.at[:B, :F].set(x.astype(jnp.bfloat16))

    weight_args = (
        params["w1f"], params["b1f"],
        params["w2f"], params["b2f"],
        params["w3f"], params["b3f"],
        params["w4f"], params["b4f"],
        params["w5t"], params["b5"],
    )

    # x / out stream per batch tile; weights resident (constant index_map).
    in_specs = [pl.BlockSpec((TB, F_pad), lambda i: (i, 0))]
    in_specs += [pl.BlockSpec(a.shape, lambda i: (0, 0)) for a in weight_args]
    out_spec = pl.BlockSpec((1, TB), lambda i: (0, i))

    vmem_limit = int(min(max(_vmem_bytes(F_pad, TB) + (8 << 20), 32 << 20), 48 << 20))

    flops = 2 * B_pad * (F_pad * 1024 + 1024 * 512 + 512 * 256 + 256 * 128 + 128)
    bytes_accessed = (
        B_pad * F_pad * 2 + B_pad * 4
        + 2 * (F_pad * 1024 + 1024 * 512 + 512 * 256 + 256 * 128)
        + 4 * (1024 + 512 + 256 + 128 + 128 + 1)
    )

    out_row = pl.pallas_call(
        _mlp_kernel,
        out_shape=jax.ShapeDtypeStruct((1, B_pad), jnp.float32),
        grid_spec=pltpu.PrefetchScalarGridSpec(
            num_scalar_prefetch=0,
            grid=(num_tiles,),
            in_specs=in_specs,
            out_specs=out_spec,
        ),
        compiler_params=pltpu.CompilerParams(
            dimension_semantics=("parallel",),           # megacore batch sharding
            vmem_limit_bytes=vmem_limit,
        ),
        cost_estimate=pl.CostEstimate(
            flops=flops, transcendentals=B_pad, bytes_accessed=bytes_accessed),
    )(x_p, *weight_args)

    return out_row[0, :B].reshape(B, 1)


def init_params(key, input_features):
    """Deterministic synthetic parameters with BatchNorm folded into each Linear."""
    dims = [input_features, 1024, 512, 256, 128]
    eps = 1e-5
    f_pad = _round_up(input_features, 128)

    params = {}
    keys = jax.random.split(key, 26)
    ki = 0
    for layer in range(4):
        fan_in, fan_out = dims[layer], dims[layer + 1]
        w = jax.random.normal(keys[ki], (fan_in, fan_out), jnp.float32) / jnp.sqrt(fan_in); ki += 1
        b = 0.1 * jax.random.normal(keys[ki], (1, fan_out), jnp.float32); ki += 1
        gamma = 1.0 + 0.1 * jax.random.normal(keys[ki], (1, fan_out), jnp.float32); ki += 1
        beta = 0.1 * jax.random.normal(keys[ki], (1, fan_out), jnp.float32); ki += 1
        running_mean = 0.05 * jax.random.normal(keys[ki], (1, fan_out), jnp.float32); ki += 1
        running_var = 1.0 + 0.05 * jax.random.uniform(keys[ki], (1, fan_out), jnp.float32); ki += 1

        s = gamma / jnp.sqrt(running_var + eps)          # BN scale
        t = beta - running_mean * s                      # BN shift
        wf = w * s                                       # fold scale into weight cols
        bf = b * s + t                                   # fold into bias

        if layer == 0 and f_pad != fan_in:               # pad F -> multiple of 128
            wf = jnp.zeros((f_pad, fan_out), jnp.float32).at[:fan_in].set(wf)

        n = layer + 1
        params[f"w{n}f"] = wf.astype(jnp.bfloat16)
        params[f"b{n}f"] = bf.astype(jnp.float32)

    w5 = jax.random.normal(keys[ki], (128, 1), jnp.float32) / jnp.sqrt(128.0); ki += 1
    b5 = 0.1 * jax.random.normal(keys[ki], (1, 1), jnp.float32); ki += 1
    params["w5t"] = w5.T.astype(jnp.float32)             # (1, 128), kept f32 (tiny)
    params["b5"] = b5.astype(jnp.float32)                # (1, 1)
    return params


def reference_forward(x, params):
    """Pure-JAX reference with the same bf16-dot / f32-elementwise numerics."""
    B, F = x.shape
    F_pad = params["w1f"].shape[0]
    h = jnp.pad(x, ((0, 0), (0, F_pad - F))).astype(jnp.bfloat16)
    for n in range(1, 5):
        z = jnp.dot(h.astype(jnp.bfloat16), params[f"w{n}f"],
                    preferred_element_type=jnp.float32) + params[f"b{n}f"]
        h = jnp.maximum(z, 0.0)                          # f32
    logits = jnp.dot(h, params["w5t"].T, preferred_element_type=jnp.float32) + params["b5"]
    return jax.nn.sigmoid(logits)                        # (B, 1)


if __name__ == "__main__":
    # Small deterministic example; non-lane-aligned F exercises the padding path.
    BATCH = 8
    INPUT_FEATURES = 200

    key = jax.random.PRNGKey(0)
    k_params, k_x = jax.random.split(key)
    params = init_params(k_params, INPUT_FEATURES)
    x = jax.random.normal(k_x, (BATCH, INPUT_FEATURES), jnp.float32)

    out = jax.block_until_ready(ember_mlp_forward(x, params))
    ref = reference_forward(x, params)

    assert out.shape == (BATCH, 1), out.shape
    err = float(jnp.max(jnp.abs(out - ref)))
    assert err < 2e-3, f"max abs err = {err}"
    print("KERNEL_OK")
</pallas_src>

<mosaic_0001>
module attributes {stable_mosaic.version = 11 : i64} {
  func.func @_mlp_kernel(%arg0: i32, %arg1: memref<128x256xbf16, #tpu.memory_space<vmem>>, %arg2: memref<256x1024xbf16, #tpu.memory_space<vmem>>, %arg3: memref<1x1024xf32, #tpu.memory_space<vmem>>, %arg4: memref<1024x512xbf16, #tpu.memory_space<vmem>>, %arg5: memref<1x512xf32, #tpu.memory_space<vmem>>, %arg6: memref<512x256xbf16, #tpu.memory_space<vmem>>, %arg7: memref<1x256xf32, #tpu.memory_space<vmem>>, %arg8: memref<256x128xbf16, #tpu.memory_space<vmem>>, %arg9: memref<1x128xf32, #tpu.memory_space<vmem>>, %arg10: memref<1x128xf32, #tpu.memory_space<vmem>>, %arg11: memref<1x1xf32, #tpu.memory_space<vmem>>, %arg12: memref<1x128xf32, #tpu.memory_space<vmem>>) attributes {dimension_semantics = [#tpu.dimension_semantics<parallel>], iteration_bounds = array<i64: 1>, scalar_prefetch = 0 : i64, scratch_operands = 0 : i64, tpu.core_type = #tpu.core_type<tc>, window_params = [{transform_indices = @transform_0, window_bounds = array<i64: 128, 256>}, {pipeline_mode = #tpu.pipeline_mode<synchronous>, transform_indices = @transform_1, window_bounds = array<i64: 256, 1024>}, {pipeline_mode = #tpu.pipeline_mode<synchronous>, transform_indices = @transform_2, window_bounds = array<i64: 1, 1024>}, {pipeline_mode = #tpu.pipeline_mode<synchronous>, transform_indices = @transform_3, window_bounds = array<i64: 1024, 512>}, {pipeline_mode = #tpu.pipeline_mode<synchronous>, transform_indices = @transform_4, window_bounds = array<i64: 1, 512>}, {pipeline_mode = #tpu.pipeline_mode<synchronous>, transform_indices = @transform_5, window_bounds = array<i64: 512, 256>}, {pipeline_mode = #tpu.pipeline_mode<synchronous>, transform_indices = @transform_6, window_bounds = array<i64: 1, 256>}, {pipeline_mode = #tpu.pipeline_mode<synchronous>, transform_indices = @transform_7, window_bounds = array<i64: 256, 128>}, {pipeline_mode = #tpu.pipeline_mode<synchronous>, transform_indices = @transform_8, window_bounds = array<i64: 1, 128>}, {pipeline_mode = #tpu.pipeline_mode<synchronous>, transform_indices = @transform_9, window_bounds = array<i64: 1, 128>}, {pipeline_mode = #tpu.pipeline_mode<synchronous>, transform_indices = @transform_10, window_bounds = array<i64: 1, 1>}, {transform_indices = @transform_11, window_bounds = array<i64: 1, 128>}]} {
    %c0 = arith.constant 0 : index
    %c0_0 = arith.constant 0 : index
    %0 = vector.load %arg1[%c0, %c0_0] : memref<128x256xbf16, #tpu.memory_space<vmem>>, vector<128x256xbf16>
    %c0_1 = arith.constant 0 : index
    %c0_2 = arith.constant 0 : index
    %1 = vector.load %arg2[%c0_1, %c0_2] : memref<256x1024xbf16, #tpu.memory_space<vmem>>, vector<256x1024xbf16>
    %cst = arith.constant dense<0.000000e+00> : vector<128x1024xf32>
    %2 = tpu.matmul %0, %1, %cst {dimension_numbers = #tpu.dot_dimension_numbers<[1], [0], [0], [1], [0, 0, 1, 1], [], []>} : vector<128x256xbf16>, vector<256x1024xbf16>, vector<128x1024xf32> -> vector<128x1024xf32>
    %c0_3 = arith.constant 0 : index
    %c0_4 = arith.constant 0 : index
    %3 = vector.load %arg3[%c0_3, %c0_4] : memref<1x1024xf32, #tpu.memory_space<vmem>>, vector<1x1024xf32>
    %4 = vector.broadcast %3 : vector<1x1024xf32> to vector<128x1024xf32>
    %5 = arith.addf %2, %4 : vector<128x1024xf32>
    %cst_5 = arith.constant 0.000000e+00 : f32
    %6 = vector.broadcast %cst_5 : f32 to vector<128x1024xf32>
    %7 = arith.maximumf %5, %6 : vector<128x1024xf32>
    %8 = arith.truncf %7 : vector<128x1024xf32> to vector<128x1024xbf16>
    %c0_6 = arith.constant 0 : index
    %c0_7 = arith.constant 0 : index
    %9 = vector.load %arg4[%c0_6, %c0_7] : memref<1024x512xbf16, #tpu.memory_space<vmem>>, vector<1024x512xbf16>
    %cst_8 = arith.constant dense<0.000000e+00> : vector<128x512xf32>
    %10 = tpu.matmul %8, %9, %cst_8 {dimension_numbers = #tpu.dot_dimension_numbers<[1], [0], [0], [1], [0, 0, 1, 1], [], []>} : vector<128x1024xbf16>, vector<1024x512xbf16>, vector<128x512xf32> -> vector<128x512xf32>
    %c0_9 = arith.constant 0 : index
    %c0_10 = arith.constant 0 : index
    %11 = vector.load %arg5[%c0_9, %c0_10] : memref<1x512xf32, #tpu.memory_space<vmem>>, vector<1x512xf32>
    %12 = vector.broadcast %11 : vector<1x512xf32> to vector<128x512xf32>
    %13 = arith.addf %10, %12 : vector<128x512xf32>
    %cst_11 = arith.constant 0.000000e+00 : f32
    %14 = vector.broadcast %cst_11 : f32 to vector<128x512xf32>
    %15 = arith.maximumf %13, %14 : vector<128x512xf32>
    %16 = arith.truncf %15 : vector<128x512xf32> to vector<128x512xbf16>
    %c0_12 = arith.constant 0 : index
    %c0_13 = arith.constant 0 : index
    %17 = vector.load %arg6[%c0_12, %c0_13] : memref<512x256xbf16, #tpu.memory_space<vmem>>, vector<512x256xbf16>
    %cst_14 = arith.constant dense<0.000000e+00> : vector<128x256xf32>
    %18 = tpu.matmul %16, %17, %cst_14 {dimension_numbers = #tpu.dot_dimension_numbers<[1], [0], [0], [1], [0, 0, 1, 1], [], []>} : vector<128x512xbf16>, vector<512x256xbf16>, vector<128x256xf32> -> vector<128x256xf32>
    %c0_15 = arith.constant 0 : index
    %c0_16 = arith.constant 0 : index
    %19 = vector.load %arg7[%c0_15, %c0_16] : memref<1x256xf32, #tpu.memory_space<vmem>>, vector<1x256xf32>
    %20 = vector.broadcast %19 : vector<1x256xf32> to vector<128x256xf32>
    %21 = arith.addf %18, %20 : vector<128x256xf32>
    %cst_17 = arith.constant 0.000000e+00 : f32
    %22 = vector.broadcast %cst_17 : f32 to vector<128x256xf32>
    %23 = arith.maximumf %21, %22 : vector<128x256xf32>
    %24 = arith.truncf %23 : vector<128x256xf32> to vector<128x256xbf16>
    %c0_18 = arith.constant 0 : index
    %c0_19 = arith.constant 0 : index
    %25 = vector.load %arg8[%c0_18, %c0_19] : memref<256x128xbf16, #tpu.memory_space<vmem>>, vector<256x128xbf16>
    %cst_20 = arith.constant dense<0.000000e+00> : vector<128x128xf32>
    %26 = tpu.matmul %24, %25, %cst_20 {dimension_numbers = #tpu.dot_dimension_numbers<[1], [0], [0], [1], [0, 0, 1, 1], [], []>} : vector<128x256xbf16>, vector<256x128xbf16>, vector<128x128xf32> -> vector<128x128xf32>
    %c0_21 = arith.constant 0 : index
    %c0_22 = arith.constant 0 : index
    %27 = vector.load %arg9[%c0_21, %c0_22] : memref<1x128xf32, #tpu.memory_space<vmem>>, vector<1x128xf32>
    %28 = vector.broadcast %27 : vector<1x128xf32> to vector<128x128xf32>
    %29 = arith.addf %26, %28 : vector<128x128xf32>
    %cst_23 = arith.constant 0.000000e+00 : f32
    %30 = vector.broadcast %cst_23 : f32 to vector<128x128xf32>
    %31 = arith.maximumf %29, %30 : vector<128x128xf32>
    %c0_24 = arith.constant 0 : index
    %c0_25 = arith.constant 0 : index
    %32 = vector.load %arg10[%c0_24, %c0_25] : memref<1x128xf32, #tpu.memory_space<vmem>>, vector<1x128xf32>
    %cst_26 = arith.constant dense<0.000000e+00> : vector<1x128xf32>
    %33 = tpu.matmul %32, %31, %cst_26 {dimension_numbers = #tpu.dot_dimension_numbers<[1], [1], [0], [0], [0, 0, 1, 0], [], []>} : vector<1x128xf32>, vector<128x128xf32>, vector<1x128xf32> -> vector<1x128xf32>
    %c0_27 = arith.constant 0 : index
    %c0_28 = arith.constant 0 : index
    %34 = vector.load %arg11[%c0_27, %c0_28] : memref<1x1xf32, #tpu.memory_space<vmem>>, vector<1x1xf32>
    %35 = vector.broadcast %34 : vector<1x1xf32> to vector<1x128xf32>
    %36 = arith.addf %33, %35 : vector<1x128xf32>
    %cst_29 = arith.constant 0.000000e+00 : f32
    %37 = vector.broadcast %cst_29 : f32 to vector<1x128xf32>
    %38 = arith.subf %37, %36 : vector<1x128xf32>
    %39 = math.exp %38 : vector<1x128xf32>
    %cst_30 = arith.constant 1.000000e+00 : f32
    %40 = vector.broadcast %cst_30 : f32 to vector<1x128xf32>
    %41 = arith.addf %40, %39 : vector<1x128xf32>
    %42 = tpu.reciprocal %41 {approx = true} : vector<1x128xf32> -> vector<1x128xf32>
    %c0_31 = arith.constant 0 : index
    %c0_32 = arith.constant 0 : index
    %43 = vector.load %arg12[%c0_31, %c0_32] : memref<1x128xf32, #tpu.memory_space<vmem>>, vector<1x128xf32>
    tpu.vector_store %arg12[%c0_31, %c0_32], %42 {strides = array<i32>} : memref<1x128xf32, #tpu.memory_space<vmem>>, vector<1x128xf32>,
    return
  }
  func.func @transform_0(%arg0: i32) -> (i32, i32) {
    %c0_i32 = arith.constant 0 : i32
    %c0_i32_0 = arith.constant 0 : i32
    return %arg0, %c0_i32 : i32, i32
  }
  func.func @transform_1(%arg0: i32) -> (i32, i32) {
    %c0_i32 = arith.constant 0 : i32
    %c0_i32_0 = arith.constant 0 : i32
    %c0_i32_1 = arith.constant 0 : i32
    return %c0_i32, %c0_i32_0 : i32, i32
  }
  func.func @transform_2(%arg0: i32) -> (i32, i32) {
    %c0_i32 = arith.constant 0 : i32
    %c0_i32_0 = arith.constant 0 : i32
    %c0_i32_1 = arith.constant 0 : i32
    return %c0_i32, %c0_i32_0 : i32, i32
  }
  func.func @transform_3(%arg0: i32) -> (i32, i32) {
    %c0_i32 = arith.constant 0 : i32
    %c0_i32_0 = arith.constant 0 : i32
    %c0_i32_1 = arith.constant 0 : i32
    return %c0_i32, %c0_i32_0 : i32, i32
  }
  func.func @transform_4(%arg0: i32) -> (i32, i32) {
    %c0_i32 = arith.constant 0 : i32
    %c0_i32_0 = arith.constant 0 : i32
    %c0_i32_1 = arith.constant 0 : i32
    return %c0_i32, %c0_i32_0 : i32, i32
  }
  func.func @transform_5(%arg0: i32) -> (i32, i32) {
    %c0_i32 = arith.constant 0 : i32
    %c0_i32_0 = arith.constant 0 : i32
    %c0_i32_1 = arith.constant 0 : i32
    return %c0_i32, %c0_i32_0 : i32, i32
  }
  func.func @transform_6(%arg0: i32) -> (i32, i32) {
    %c0_i32 = arith.constant 0 : i32
    %c0_i32_0 = arith.constant 0 : i32
    %c0_i32_1 = arith.constant 0 : i32
    return %c0_i32, %c0_i32_0 : i32, i32
  }
  func.func @transform_7(%arg0: i32) -> (i32, i32) {
    %c0_i32 = arith.constant 0 : i32
    %c0_i32_0 = arith.constant 0 : i32
    %c0_i32_1 = arith.constant 0 : i32
    return %c0_i32, %c0_i32_0 : i32, i32
  }
  func.func @transform_8(%arg0: i32) -> (i32, i32) {
    %c0_i32 = arith.constant 0 : i32
    %c0_i32_0 = arith.constant 0 : i32
    %c0_i32_1 = arith.constant 0 : i32
    return %c0_i32, %c0_i32_0 : i32, i32
  }
  func.func @transform_9(%arg0: i32) -> (i32, i32) {
    %c0_i32 = arith.constant 0 : i32
    %c0_i32_0 = arith.constant 0 : i32
    %c0_i32_1 = arith.constant 0 : i32
    return %c0_i32, %c0_i32_0 : i32, i32
  }
  func.func @transform_10(%arg0: i32) -> (i32, i32) {
    %c0_i32 = arith.constant 0 : i32
    %c0_i32_0 = arith.constant 0 : i32
    %c0_i32_1 = arith.constant 0 : i32
    return %c0_i32, %c0_i32_0 : i32, i32
  }
  func.func @transform_11(%arg0: i32) -> (i32, i32) {
    %c0_i32 = arith.constant 0 : i32
    %c0_i32_0 = arith.constant 0 : i32
    return %c0_i32, %arg0 : i32, i32
  }
}

</mosaic_0001>

<llo_original>
// kernel: tpu_custom_call.1
$region0: #{tpu_custom_call.1}
  #allocation0 [shape = 'u32[]', space=smem, size = 0x4, offset = 0x4, fixed_abs, tag = 'smem constant byte address 0x4 - core index']
  #allocation1 [shape = 'u32[144,128]{1,0:T(1,128)}', space=vmem, size = 0x12000, scoped, tag = 'internal scratch']
  #allocation2 [shape = 'f32[1,1]{1,0:T(1,128)S(1)}', space=vmem, size = 0x200, scoped, tag = 'scoped memory for tpu_custom_call.1']
  %s0 = inlined_call_operand.hbm [shape: bf16[128,256], index: 0, kind: input, shape index: {}]
  %s1 = inlined_call_operand.hbm [shape: bf16[256,1024], index: 1, kind: input, shape index: {}]
  %s2 = inlined_call_operand.vmem [shape: f32[1,1024], index: 2, kind: input, shape index: {}]
  %s3 = inlined_call_operand.hbm [shape: bf16[1024,512], index: 3, kind: input, shape index: {}]
  %s4 = inlined_call_operand.vmem [shape: f32[1,512], index: 4, kind: input, shape index: {}]
  %s5 = inlined_call_operand.hbm [shape: bf16[512,256], index: 5, kind: input, shape index: {}]
  %s6 = inlined_call_operand.vmem [shape: f32[1,256], index: 6, kind: input, shape index: {}]
  %s7 = inlined_call_operand.hbm [shape: bf16[256,128], index: 7, kind: input, shape index: {}]
  %s8 = inlined_call_operand.vmem [shape: f32[1,128], index: 8, kind: input, shape index: {}]
  %s9 = inlined_call_operand.vmem [shape: f32[1,128], index: 9, kind: input, shape index: {}]
  %s10 = inlined_call_operand.<no memory space> [shape: f32[1,1], index: 10, kind: input, shape index: {}]
  %s11 = inlined_call_operand.hbm [shape: f32[1,128], index: 11, kind: output, shape index: {}]
  %s12 = sld [smem:[#allocation0]]
  $region74: #{tpu_custom_call.1} parent=0
    _
  %s14 = ssub.s32 1, %s12
  %s15 = scalar_select 0, %s14, %s12
  %v16 = vstv %s10
  %17 = vst [vmem:[#allocation2] sm:$0x1] %v16
  $region1: #{tpu_custom_call.1} parent=0
    #allocation3 [shape = 'u8[65536]{0}', space=vmem, size = 0x10000, scoped, tag = 'input window, operand 0, single buffered']
    #allocation4 [shape = 's32[1]{0}', space=sflag, size = 0x4, scoped, tag = 'scoped memory for tpu_custom_call.1']
    #allocation5 [shape = 's32[1]{0}', space=sflag, size = 0x4, scoped, tag = 'scoped memory for tpu_custom_call.1']
    #allocation6 [shape = 'u8[524288]{0}', space=vmem, size = 0x80000, scoped, tag = 'input window, operand 1, single buffered']
    #allocation7 [shape = 's32[1]{0}', space=sflag, size = 0x4, scoped, tag = 'scoped memory for tpu_custom_call.1']
    #allocation8 [shape = 'u8[1048576]{0}', space=vmem, size = 0x100000, scoped, tag = 'input window, operand 3, single buffered']
    #allocation9 [shape = 'u8[262144]{0}', space=vmem, size = 0x40000, scoped, tag = 'input window, operand 5, single buffered']
    #allocation10 [shape = 's32[1]{0}', space=sflag, size = 0x4, scoped, tag = 'scoped memory for tpu_custom_call.1']
    #allocation11 [shape = 'u8[65536]{0}', space=vmem, size = 0x10000, scoped, tag = 'input window, operand 7, single buffered']
    #allocation12 [shape = 'u8[512]{0}', space=vmem, size = 0x400, scoped, tag = 'output window, operand 0, single buffered']
    %18 = vsyncpa [#allocation4], 0
    %19 = vsyncpa [#allocation7], 0
    %20 = vsyncpa [#allocation10], 0
    %21 = vsyncpa [#allocation5], 0
    // Predicated region
    $region2: #{tpu_custom_call.1} parent=1 // pred_check
      _
    $region3: #{tpu_custom_call.1} parent=1 // pred_check_branch
      %23 = sbr.rel (0) target = $region5
    $region4: #{tpu_custom_call.1} parent=1 // pred_region
      %s25 = ssub.s32 2048, 2048
      %26 = vsyncadd [#allocation4], %s25
      %s27 = sshll.u32 [#allocation3], 4
      %s28 = int_to_ptr.vmem [resolvable:$true] %s27
      %33 = dma.hbm_to_vmem [thread:$0]  %s0, 2048, %s28, [#allocation4], 128, 128, 8
    $region5: #{tpu_custom_call.1} parent=1 // pred_fallthru
      _
    // Predicated region
    $region6: #{tpu_custom_call.1} parent=1 // pred_check
      _
    $region7: #{tpu_custom_call.1} parent=1 // pred_check_branch
      %35 = sbr.rel (0) target = $region9
    $region8: #{tpu_custom_call.1} parent=1 // pred_region
      %s37 = ssub.s32 16384, 16384
      %38 = vsyncadd [#allocation7], %s37
      %s39 = sshll.u32 [#allocation6], 4
      %s40 = int_to_ptr.vmem [resolvable:$true] %s39
      %45 = dma.hbm_to_vmem [thread:$0]  %s1, 16384, %s40, [#allocation7], 512, 512, 32
    $region9: #{tpu_custom_call.1} parent=1 // pred_fallthru
      _
    // Predicated region
    $region10: #{tpu_custom_call.1} parent=1 // pred_check
      _
    $region11: #{tpu_custom_call.1} parent=1 // pred_check_branch
      %47 = sbr.rel (0) target = $region13
    $region12: #{tpu_custom_call.1} parent=1 // pred_region
      _
    $region13: #{tpu_custom_call.1} parent=1 // pred_fallthru
      _
    // Predicated region
    $region14: #{tpu_custom_call.1} parent=1 // pred_check
      _
    $region15: #{tpu_custom_call.1} parent=1 // pred_check_branch
      %49 = sbr.rel (0) target = $region17
    $region16: #{tpu_custom_call.1} parent=1 // pred_region
      %s51 = ssub.s32 32768, 32768
      %52 = vsyncadd [#allocation7], %s51
      %s53 = sshll.u32 [#allocation8], 4
      %s54 = int_to_ptr.vmem [resolvable:$true] %s53
      %59 = dma.hbm_to_vmem [thread:$0]  %s3, 32768, %s54, [#allocation7], 256, 256, 16
    $region17: #{tpu_custom_call.1} parent=1 // pred_fallthru
      _
    // Predicated region
    $region18: #{tpu_custom_call.1} parent=1 // pred_check
      _
    $region19: #{tpu_custom_call.1} parent=1 // pred_check_branch
      %61 = sbr.rel (0) target = $region21
    $region20: #{tpu_custom_call.1} parent=1 // pred_region
      _
    $region21: #{tpu_custom_call.1} parent=1 // pred_fallthru
      _
    // Predicated region
    $region22: #{tpu_custom_call.1} parent=1 // pred_check
      _
    $region23: #{tpu_custom_call.1} parent=1 // pred_check_branch
      %63 = sbr.rel (0) target = $region25
    $region24: #{tpu_custom_call.1} parent=1 // pred_region
      %s65 = ssub.s32 8192, 8192
      %66 = vsyncadd [#allocation10], %s65
      %s67 = sshll.u32 [#allocation9], 4
      %s68 = int_to_ptr.vmem [resolvable:$true] %s67
      %73 = dma.hbm_to_vmem [thread:$0]  %s5, 8192, %s68, [#allocation10], 128, 128, 8
    $region25: #{tpu_custom_call.1} parent=1 // pred_fallthru
      _
    // Predicated region
    $region26: #{tpu_custom_call.1} parent=1 // pred_check
      _
    $region27: #{tpu_custom_call.1} parent=1 // pred_check_branch
      %75 = sbr.rel (0) target = $region29
    $region28: #{tpu_custom_call.1} parent=1 // pred_region
      _
    $region29: #{tpu_custom_call.1} parent=1 // pred_fallthru
      _
    // Predicated region
    $region30: #{tpu_custom_call.1} parent=1 // pred_check
      _
    $region31: #{tpu_custom_call.1} parent=1 // pred_check_branch
      %77 = sbr.rel (0) target = $region33
    $region32: #{tpu_custom_call.1} parent=1 // pred_region
      %s79 = ssub.s32 2048, 2048
      %80 = vsyncadd [#allocation10], %s79
      %s81 = sshll.u32 [#allocation11], 4
      %s82 = int_to_ptr.vmem [resolvable:$true] %s81
      %87 = dma.hbm_to_vmem [thread:$0]  %s7, 2048, %s82, [#allocation10], 64, 64, 4
    $region33: #{tpu_custom_call.1} parent=1 // pred_fallthru
      _
    // Predicated region
    $region34: #{tpu_custom_call.1} parent=1 // pred_check
      _
    $region35: #{tpu_custom_call.1} parent=1 // pred_check_branch
      %89 = sbr.rel (0) target = $region37
    $region36: #{tpu_custom_call.1} parent=1 // pred_region
      _
    $region37: #{tpu_custom_call.1} parent=1 // pred_fallthru
      _
    // Predicated region
    $region38: #{tpu_custom_call.1} parent=1 // pred_check
      _
    $region39: #{tpu_custom_call.1} parent=1 // pred_check_branch
      %91 = sbr.rel (0) target = $region41
    $region40: #{tpu_custom_call.1} parent=1 // pred_region
      _
    $region41: #{tpu_custom_call.1} parent=1 // pred_fallthru
      _
    // Predicated region
    $region42: #{tpu_custom_call.1} parent=1 // pred_check
      _
    $region43: #{tpu_custom_call.1} parent=1 // pred_check_branch
      %93 = sbr.rel (0) target = $region45
    $region44: #{tpu_custom_call.1} parent=1 // pred_region
      _
    $region45: #{tpu_custom_call.1} parent=1 // pred_fallthru
      _
    // Predicated region
    $region46: #{tpu_custom_call.1} parent=1 // pred_check
      _
    $region47: #{tpu_custom_call.1} parent=1 // pred_check_branch
      %95 = sbr.rel (0) target = $region49
    $region48: #{tpu_custom_call.1} parent=1 // pred_region
      %96 = dma.done [#allocation4], 2048
    $region49: #{tpu_custom_call.1} parent=1 // pred_fallthru
      _
    // Predicated region
    $region50: #{tpu_custom_call.1} parent=1 // pred_check
      _
    $region51: #{tpu_custom_call.1} parent=1 // pred_check_branch
      %98 = sbr.rel (0) target = $region53
    $region52: #{tpu_custom_call.1} parent=1 // pred_region
      %99 = dma.done [#allocation7], 16384
    $region53: #{tpu_custom_call.1} parent=1 // pred_fallthru
      _
    // Predicated region
    $region54: #{tpu_custom_call.1} parent=1 // pred_check
      _
    $region55: #{tpu_custom_call.1} parent=1 // pred_check_branch
      %101 = sbr.rel (0) target = $region57
    $region56: #{tpu_custom_call.1} parent=1 // pred_region
      %102 = dma.done [#allocation7], 32768
    $region57: #{tpu_custom_call.1} parent=1 // pred_fallthru
      _
    // Predicated region
    $region58: #{tpu_custom_call.1} parent=1 // pred_check
      _
    $region59: #{tpu_custom_call.1} parent=1 // pred_check_branch
      %104 = sbr.rel (0) target = $region61
    $region60: #{tpu_custom_call.1} parent=1 // pred_region
      %105 = dma.done [#allocation10], 8192
    $region61: #{tpu_custom_call.1} parent=1 // pred_fallthru
      _
    // Predicated region
    $region62: #{tpu_custom_call.1} parent=1 // pred_check
      _
    $region63: #{tpu_custom_call.1} parent=1 // pred_check_branch
      %107 = sbr.rel (0) target = $region65
    $region64: #{tpu_custom_call.1} parent=1 // pred_region
      %108 = dma.done [#allocation10], 2048
    $region65: #{tpu_custom_call.1} parent=1 // pred_fallthru
      _
    %v110 = vld [vmem:[#allocation3] sm:$0xff]
    %v111 = vld [vmem:[#allocation3 + $0x8] sm:$0xff]
    %v112 = vld [vmem:[#allocation3 + $0x10] sm:$0xff]
    %v113 = vld [vmem:[#allocation3 + $0x18] sm:$0xff]
    %v114 = vld [vmem:[#allocation3 + $0x20] sm:$0xff]
    %v115 = vld [vmem:[#allocation3 + $0x28] sm:$0xff]
    %v116 = vld [vmem:[#allocation3 + $0x30] sm:$0xff]
    %v117 = vld [vmem:[#allocation3 + $0x38] sm:$0xff]
    %v118 = vld [vmem:[#allocation3 + $0x40] sm:$0xff]
    %v119 = vld [vmem:[#allocation3 + $0x48] sm:$0xff]
    %v120 = vld [vmem:[#allocation3 + $0x50] sm:$0xff]
    %v121 = vld [vmem:[#allocation3 + $0x58] sm:$0xff]
    %v122 = vld [vmem:[#allocation3 + $0x60] sm:$0xff]
    %v123 = vld [vmem:[#allocation3 + $0x68] sm:$0xff]
    %v124 = vld [vmem:[#allocation3 + $0x70] sm:$0xff]
    %v125 = vld [vmem:[#allocation3 + $0x78] sm:$0xff]
    %v126 = vld [vmem:[#allocation6] sm:$0xff]
    %v127 = vld [vmem:[#allocation6 + $0x8] sm:$0xff]
    %v128 = vld [vmem:[#allocation6 + $0x10] sm:$0xff]
    %v129 = vld [vmem:[#allocation6 + $0x18] sm:$0xff]
    %v130 = vld [vmem:[#allocation6 + $0x20] sm:$0xff]
    %v131 = vld [vmem:[#allocation6 + $0x28] sm:$0xff]
    %v132 = vld [vmem:[#allocation6 + $0x30] sm:$0xff]
    %v133 = vld [vmem:[#allocation6 + $0x38] sm:$0xff]
    %v134 = vld [vmem:[#allocation6 + $0x40] sm:$0xff]
    %v135 = vld [vmem:[#allocation6 + $0x48] sm:$0xff]
    %v136 = vld [vmem:[#allocation6 + $0x50] sm:$0xff]
    %v137 = vld [vmem:[#allocation6 + $0x58] sm:$0xff]
    %v138 = vld [vmem:[#allocation6 + $0x60] sm:$0xff]
    %v139 = vld [vmem:[#allocation6 + $0x68] sm:$0xff]
    %v140 = vld [vmem:[#allocation6 + $0x70] sm:$0xff]
    %v141 = vld [vmem:[#allocation6 + $0x78] sm:$0xff]
    %v142 = vld [vmem:[#allocation6 + $0x80] sm:$0xff]
    %v143 = vld [vmem:[#allocation6 + $0x88] sm:$0xff]
    %v144 = vld [vmem:[#allocation6 + $0x90] sm:$0xff]
    %v145 = vld [vmem:[#allocation6 + $0x98] sm:$0xff]
    %v146 = vld [vmem:[#allocation6 + $0xa0] sm:$0xff]
    %v147 = vld [vmem:[#allocation6 + $0xa8] sm:$0xff]
    %v148 = vld [vmem:[#allocation6 + $0xb0] sm:$0xff]
    %v149 = vld [vmem:[#allocation6 + $0xb8] sm:$0xff]
    %v150 = vld [vmem:[#allocation6 + $0xc0] sm:$0xff]
    %v151 = vld [vmem:[#allocation6 + $0xc8] sm:$0xff]
    %v152 = vld [vmem:[#allocation6 + $0xd0] sm:$0xff]
    %v153 = vld [vmem:[#allocation6 + $0xd8] sm:$0xff]
    %v154 = vld [vmem:[#allocation6 + $0xe0] sm:$0xff]
    %v155 = vld [vmem:[#allocation6 + $0xe8] sm:$0xff]
    %v156 = vld [vmem:[#allocation6 + $0xf0] sm:$0xff]
    %v157 = vld [vmem:[#allocation6 + $0xf8] sm:$0xff]
    %v158 = vld [vmem:[#allocation6 + $0x100] sm:$0xff]
    %v159 = vld [vmem:[#allocation6 + $0x108] sm:$0xff]
    %v160 = vld [vmem:[#allocation6 + $0x110] sm:$0xff]
    %v161 = vld [vmem:[#allocation6 + $0x118] sm:$0xff]
    %v162 = vld [vmem:[#allocation6 + $0x120] sm:$0xff]
    %v163 = vld [vmem:[#allocation6 + $0x128] sm:$0xff]
    %v164 = vld [vmem:[#allocation6 + $0x130] sm:$0xff]
    %v165 = vld [vmem:[#allocation6 + $0x138] sm:$0xff]
    %v166 = vld [vmem:[#allocation6 + $0x140] sm:$0xff]
    %v167 = vld [vmem:[#allocation6 + $0x148] sm:$0xff]
    %v168 = vld [vmem:[#allocation6 + $0x150] sm:$0xff]
    %v169 = vld [vmem:[#allocation6 + $0x158] sm:$0xff]
    %v170 = vld [vmem:[#allocation6 + $0x160] sm:$0xff]
    %v171 = vld [vmem:[#allocation6 + $0x168] sm:$0xff]
    %v172 = vld [vmem:[#allocation6 + $0x170] sm:$0xff]
    %v173 = vld [vmem:[#allocation6 + $0x178] sm:$0xff]
    %v174 = vld [vmem:[#allocation6 + $0x180] sm:$0xff]
    %v175 = vld [vmem:[#allocation6 + $0x188] sm:$0xff]
    %v176 = vld [vmem:[#allocation6 + $0x190] sm:$0xff]
    %v177 = vld [vmem:[#allocation6 + $0x198] sm:$0xff]
    %v178 = vld [vmem:[#allocation6 + $0x1a0] sm:$0xff]
    %v179 = vld [vmem:[#allocation6 + $0x1a8] sm:$0xff]
    %v180 = vld [vmem:[#allocation6 + $0x1b0] sm:$0xff]
    %v181 = vld [vmem:[#allocation6 + $0x1b8] sm:$0xff]
    %v182 = vld [vmem:[#allocation6 + $0x1c0] sm:$0xff]
    %v183 = vld [vmem:[#allocation6 + $0x1c8] sm:$0xff]
    %v184 = vld [vmem:[#allocation6 + $0x1d0] sm:$0xff]
    %v185 = vld [vmem:[#allocation6 + $0x1d8] sm:$0xff]
    %v186 = vld [vmem:[#allocation6 + $0x1e0] sm:$0xff]
    %v187 = vld [vmem:[#allocation6 + $0x1e8] sm:$0xff]
    %v188 = vld [vmem:[#allocation6 + $0x1f0] sm:$0xff]
    %v189 = vld [vmem:[#allocation6 + $0x1f8] sm:$0xff]
    %v190 = vld [vmem:[#allocation6 + $0x200] sm:$0xff]
    %v191 = vld [vmem:[#allocation6 + $0x208] sm:$0xff]
    %v192 = vld [vmem:[#allocation6 + $0x210] sm:$0xff]
    %v193 = vld [vmem:[#allocation6 + $0x218] sm:$0xff]
    %v194 = vld [vmem:[#allocation6 + $0x220] sm:$0xff]
    %v195 = vld [vmem:[#allocation6 + $0x228] sm:$0xff]
    %v196 = vld [vmem:[#allocation6 + $0x230] sm:$0xff]
    %v197 = vld [vmem:[#allocation6 + $0x238] sm:$0xff]
    %v198 = vld [vmem:[#allocation6 + $0x240] sm:$0xff]
    %v199 = vld [vmem:[#allocation6 + $0x248] sm:$0xff]
    %v200 = vld [vmem:[#allocation6 + $0x250] sm:$0xff]
    %v201 = vld [vmem:[#allocation6 + $0x258] sm:$0xff]
    %v202 = vld [vmem:[#allocation6 + $0x260] sm:$0xff]
    %v203 = vld [vmem:[#allocation6 + $0x268] sm:$0xff]
    %v204 = vld [vmem:[#allocation6 + $0x270] sm:$0xff]
    %v205 = vld [vmem:[#allocation6 + $0x278] sm:$0xff]
    %v206 = vld [vmem:[#allocation6 + $0x280] sm:$0xff]
    %v207 = vld [vmem:[#allocation6 + $0x288] sm:$0xff]
    %v208 = vld [vmem:[#allocation6 + $0x290] sm:$0xff]
    %v209 = vld [vmem:[#allocation6 + $0x298] sm:$0xff]
    %v210 = vld [vmem:[#allocation6 + $0x2a0] sm:$0xff]
    %v211 = vld [vmem:[#allocation6 + $0x2a8] sm:$0xff]
    %v212 = vld [vmem:[#allocation6 + $0x2b0] sm:$0xff]
    %v213 = vld [vmem:[#allocation6 + $0x2b8] sm:$0xff]
    %v214 = vld [vmem:[#allocation6 + $0x2c0] sm:$0xff]
    %v215 = vld [vmem:[#allocation6 + $0x2c8] sm:$0xff]
    %v216 = vld [vmem:[#allocation6 + $0x2d0] sm:$0xff]
    %v217 = vld [vmem:[#allocation6 + $0x2d8] sm:$0xff]
    %v218 = vld [vmem:[#allocation6 + $0x2e0] sm:$0xff]
    %v219 = vld [vmem:[#allocation6 + $0x2e8] sm:$0xff]
    %v220 = vld [vmem:[#allocation6 + $0x2f0] sm:$0xff]
    %v221 = vld [vmem:[#allocation6 + $0x2f8] sm:$0xff]
    %v222 = vld [vmem:[#allocation6 + $0x300] sm:$0xff]
    %v223 = vld [vmem:[#allocation6 + $0x308] sm:$0xff]
    %v224 = vld [vmem:[#allocation6 + $0x310] sm:$0xff]
    %v225 = vld [vmem:[#allocation6 + $0x318] sm:$0xff]
    %v226 = vld [vmem:[#allocation6 + $0x320] sm:$0xff]
    %v227 = vld [vmem:[#allocation6 + $0x328] sm:$0xff]
    %v228 = vld [vmem:[#allocation6 + $0x330] sm:$0xff]
    %v229 = vld [vmem:[#allocation6 + $0x338] sm:$0xff]
    %v230 = vld [vmem:[#allocation6 + $0x340] sm:$0xff]
    %v231 = vld [vmem:[#allocation6 + $0x348] sm:$0xff]
    %v232 = vld [vmem:[#allocation6 + $0x350] sm:$0xff]
    %v233 = vld [vmem:[#allocation6 + $0x358] sm:$0xff]
    %v234 = vld [vmem:[#allocation6 + $0x360] sm:$0xff]
    %v235 = vld [vmem:[#allocation6 + $0x368] sm:$0xff]
    %v236 = vld [vmem:[#allocation6 + $0x370] sm:$0xff]
    %v237 = vld [vmem:[#allocation6 + $0x378] sm:$0xff]
    %v238 = vld [vmem:[#allocation6 + $0x380] sm:$0xff]
    %v239 = vld [vmem:[#allocation6 + $0x388] sm:$0xff]
    %v240 = vld [vmem:[#allocation6 + $0x390] sm:$0xff]
    %v241 = vld [vmem:[#allocation6 + $0x398] sm:$0xff]
    %v242 = vld [vmem:[#allocation6 + $0x3a0] sm:$0xff]
    %v243 = vld [vmem:[#allocation6 + $0x3a8] sm:$0xff]
    %v244 = vld [vmem:[#allocation6 + $0x3b0] sm:$0xff]
    %v245 = vld [vmem:[#allocation6 + $0x3b8] sm:$0xff]
    %v246 = vld [vmem:[#allocation6 + $0x3c0] sm:$0xff]
    %v247 = vld [vmem:[#allocation6 + $0x3c8] sm:$0xff]
    %v248 = vld [vmem:[#allocation6 + $0x3d0] sm:$0xff]
    %v249 = vld [vmem:[#allocation6 + $0x3d8] sm:$0xff]
    %v250 = vld [vmem:[#allocation6 + $0x3e0] sm:$0xff]
    %v251 = vld [vmem:[#allocation6 + $0x3e8] sm:$0xff]
    %v252 = vld [vmem:[#allocation6 + $0x3f0] sm:$0xff]
    %v253 = vld [vmem:[#allocation6 + $0x3f8] sm:$0xff]
    %v254 = vld [vmem:[%s2] sm:$0xff]
    %v256 = vlaneseq
    %v257 = vshrl.u32 %v256, 7
    %v258 = vsub.s32 0, %v257
    %v259 = vrot.slane %v254, %v258
    %v260 = vlaneseq
    %v261 = vshrl.u32 %v260, 7
    %v262 = vsub.s32 1, %v261
    %v263 = vrot.slane %v254, %v262
    %v264 = vlaneseq
    %v265 = vshrl.u32 %v264, 7
    %v266 = vsub.s32 2, %v265
    %v267 = vrot.slane %v254, %v266
    %v268 = vlaneseq
    %v269 = vshrl.u32 %v268, 7
    %v270 = vsub.s32 3, %v269
    %v271 = vrot.slane %v254, %v270
    %v272 = vlaneseq
    %v273 = vshrl.u32 %v272, 7
    %v274 = vsub.s32 4, %v273
    %v275 = vrot.slane %v254, %v274
    %v276 = vlaneseq
    %v277 = vshrl.u32 %v276, 7
    %v278 = vsub.s32 5, %v277
    %v279 = vrot.slane %v254, %v278
    %v280 = vlaneseq
    %v281 = vshrl.u32 %v280, 7
    %v282 = vsub.s32 6, %v281
    %v283 = vrot.slane %v254, %v282
    %v284 = vlaneseq
    %v285 = vshrl.u32 %v284, 7
    %v286 = vsub.s32 7, %v285
    %v287 = vrot.slane %v254, %v286
    %v312 = vunpack.c.l.b16 %v110
    %v313 = vunpack.c.h.b16 %v110
    %v314 = vunpack.c.l.b16 %v111
    %v315 = vunpack.c.h.b16 %v111
    %v316 = vunpack.c.l.b16 %v112
    %v317 = vunpack.c.h.b16 %v112
    %v318 = vunpack.c.l.b16 %v113
    %v319 = vunpack.c.h.b16 %v113
    %v320 = vunpack.c.l.b16 %v114
    %v321 = vunpack.c.h.b16 %v114
    %v322 = vunpack.c.l.b16 %v115
    %v323 = vunpack.c.h.b16 %v115
    %v324 = vunpack.c.l.b16 %v116
    %v325 = vunpack.c.h.b16 %v116
    %v326 = vunpack.c.l.b16 %v117
    %v327 = vunpack.c.h.b16 %v117
    %v328 = vunpack.c.l.b16 %v118
    %v329 = vunpack.c.h.b16 %v118
    %v330 = vunpack.c.l.b16 %v119
    %v331 = vunpack.c.h.b16 %v119
    %v332 = vunpack.c.l.b16 %v120
    %v333 = vunpack.c.h.b16 %v120
    %v334 = vunpack.c.l.b16 %v121
    %v335 = vunpack.c.h.b16 %v121
    %v336 = vunpack.c.l.b16 %v122
    %v337 = vunpack.c.h.b16 %v122
    %v338 = vunpack.c.l.b16 %v123
    %v339 = vunpack.c.h.b16 %v123
    %v340 = vunpack.c.l.b16 %v124
    %v341 = vunpack.c.h.b16 %v124
    %v342 = vunpack.c.l.b16 %v125
    %v343 = vunpack.c.h.b16 %v125
    %v344 = vpack.c.b16 %v314, %v312
    %v345 = vpack.c.b16 %v315, %v313
    %v346 = vpack.c.b16 %v318, %v316
    %v347 = vpack.c.b16 %v319, %v317
    %v348 = vpack.c.b16 %v322, %v320
    %v349 = vpack.c.b16 %v323, %v321
    %v350 = vpack.c.b16 %v326, %v324
    %v351 = vpack.c.b16 %v327, %v325
    %v352 = vpack.c.b16 %v330, %v328
    %v353 = vpack.c.b16 %v331, %v329
    %v354 = vpack.c.b16 %v334, %v332
    %v355 = vpack.c.b16 %v335, %v333
    %v356 = vpack.c.b16 %v338, %v336
    %v357 = vpack.c.b16 %v339, %v337
    %v358 = vpack.c.b16 %v342, %v340
    %v359 = vpack.c.b16 %v343, %v341
    %v504 = vunpack.c.l.b16 %v126
    %v505 = vunpack.c.h.b16 %v126
    %v506 = vunpack.c.l.b16 %v127
    %v507 = vunpack.c.h.b16 %v127
    %v508 = vunpack.c.l.b16 %v128
    %v509 = vunpack.c.h.b16 %v128
    %v510 = vunpack.c.l.b16 %v129
    %v511 = vunpack.c.h.b16 %v129
    %v512 = vunpack.c.l.b16 %v130
    %v513 = vunpack.c.h.b16 %v130
    %v514 = vunpack.c.l.b16 %v131
    %v515 = vunpack.c.h.b16 %v131
    %v516 = vunpack.c.l.b16 %v132
    %v517 = vunpack.c.h.b16 %v132
    %v518 = vunpack.c.l.b16 %v133
    %v519 = vunpack.c.h.b16 %v133
    %v520 = vunpack.c.l.b16 %v134
    %v521 = vunpack.c.h.b16 %v134
    %v522 = vunpack.c.l.b16 %v135
    %v523 = vunpack.c.h.b16 %v135
    %v524 = vunpack.c.l.b16 %v136
    %v525 = vunpack.c.h.b16 %v136
    %v526 = vunpack.c.l.b16 %v137
    %v527 = vunpack.c.h.b16 %v137
    %v528 = vunpack.c.l.b16 %v138
    %v529 = vunpack.c.h.b16 %v138
    %v530 = vunpack.c.l.b16 %v139
    %v531 = vunpack.c.h.b16 %v139
    %v532 = vunpack.c.l.b16 %v140
    %v533 = vunpack.c.h.b16 %v140
    %v534 = vunpack.c.l.b16 %v141
    %v535 = vunpack.c.h.b16 %v141
    %v536 = vunpack.c.l.b16 %v142
    %v537 = vunpack.c.h.b16 %v142
    %v538 = vunpack.c.l.b16 %v143
    %v539 = vunpack.c.h.b16 %v143
    %v540 = vunpack.c.l.b16 %v144
    %v541 = vunpack.c.h.b16 %v144
    %v542 = vunpack.c.l.b16 %v145
    %v543 = vunpack.c.h.b16 %v145
    %v544 = vunpack.c.l.b16 %v146
    %v545 = vunpack.c.h.b16 %v146
    %v546 = vunpack.c.l.b16 %v147
    %v547 = vunpack.c.h.b16 %v147
    %v548 = vunpack.c.l.b16 %v148
    %v549 = vunpack.c.h.b16 %v148
    %v550 = vunpack.c.l.b16 %v149
    %v551 = vunpack.c.h.b16 %v149
    %v552 = vunpack.c.l.b16 %v150
    %v553 = vunpack.c.h.b16 %v150
    %v554 = vunpack.c.l.b16 %v151
    %v555 = vunpack.c.h.b16 %v151
    %v556 = vunpack.c.l.b16 %v152
    %v557 = vunpack.c.h.b16 %v152
    %v558 = vunpack.c.l.b16 %v153
    %v559 = vunpack.c.h.b16 %v153
    %v560 = vunpack.c.l.b16 %v154
    %v561 = vunpack.c.h.b16 %v154
    %v562 = vunpack.c.l.b16 %v155
    %v563 = vunpack.c.h.b16 %v155
    %v564 = vunpack.c.l.b16 %v156
    %v565 = vunpack.c.h.b16 %v156
    %v566 = vunpack.c.l.b16 %v157
    %v567 = vunpack.c.h.b16 %v157
    %v568 = vunpack.c.l.b16 %v158
    %v569 = vunpack.c.h.b16 %v158
    %v570 = vunpack.c.l.b16 %v159
    %v571 = vunpack.c.h.b16 %v159
    %v572 = vunpack.c.l.b16 %v160
    %v573 = vunpack.c.h.b16 %v160
    %v574 = vunpack.c.l.b16 %v161
    %v575 = vunpack.c.h.b16 %v161
    %v576 = vunpack.c.l.b16 %v162
    %v577 = vunpack.c.h.b16 %v162
    %v578 = vunpack.c.l.b16 %v163
    %v579 = vunpack.c.h.b16 %v163
    %v580 = vunpack.c.l.b16 %v164
    %v581 = vunpack.c.h.b16 %v164
    %v582 = vunpack.c.l.b16 %v165
    %v583 = vunpack.c.h.b16 %v165
    %v584 = vunpack.c.l.b16 %v166
    %v585 = vunpack.c.h.b16 %v166
    %v586 = vunpack.c.l.b16 %v167
    %v587 = vunpack.c.h.b16 %v167
    %v588 = vunpack.c.l.b16 %v168
    %v589 = vunpack.c.h.b16 %v168
    %v590 = vunpack.c.l.b16 %v169
    %v591 = vunpack.c.h.b16 %v169
    %v592 = vunpack.c.l.b16 %v170
    %v593 = vunpack.c.h.b16 %v170
    %v594 = vunpack.c.l.b16 %v171
    %v595 = vunpack.c.h.b16 %v171
    %v596 = vunpack.c.l.b16 %v172
    %v597 = vunpack.c.h.b16 %v172
    %v598 = vunpack.c.l.b16 %v173
    %v599 = vunpack.c.h.b16 %v173
    %v600 = vunpack.c.l.b16 %v174
    %v601 = vunpack.c.h.b16 %v174
    %v602 = vunpack.c.l.b16 %v175
    %v603 = vunpack.c.h.b16 %v175
    %v604 = vunpack.c.l.b16 %v176
    %v605 = vunpack.c.h.b16 %v176
    %v606 = vunpack.c.l.b16 %v177
    %v607 = vunpack.c.h.b16 %v177
    %v608 = vunpack.c.l.b16 %v178
    %v609 = vunpack.c.h.b16 %v178
    %v610 = vunpack.c.l.b16 %v179
    %v611 = vunpack.c.h.b16 %v179
    %v612 = vunpack.c.l.b16 %v180
    %v613 = vunpack.c.h.b16 %v180
    %v614 = vunpack.c.l.b16 %v181
    %v615 = vunpack.c.h.b16 %v181
    %v616 = vunpack.c.l.b16 %v182
    %v617 = vunpack.c.h.b16 %v182
    %v618 = vunpack.c.l.b16 %v183
    %v619 = vunpack.c.h.b16 %v183
    %v620 = vunpack.c.l.b16 %v184
    %v621 = vunpack.c.h.b16 %v184
    %v622 = vunpack.c.l.b16 %v185
    %v623 = vunpack.c.h.b16 %v185
    %v624 = vunpack.c.l.b16 %v186
    %v625 = vunpack.c.h.b16 %v186
    %v626 = vunpack.c.l.b16 %v187
    %v627 = vunpack.c.h.b16 %v187
    %v628 = vunpack.c.l.b16 %v188
    %v629 = vunpack.c.h.b16 %v188
    %v630 = vunpack.c.l.b16 %v189
    %v631 = vunpack.c.h.b16 %v189
    %v632 = vunpack.c.l.b16 %v190
    %v633 = vunpack.c.h.b16 %v190
    %v634 = vunpack.c.l.b16 %v191
    %v635 = vunpack.c.h.b16 %v191
    %v636 = vunpack.c.l.b16 %v192
    %v637 = vunpack.c.h.b16 %v192
    %v638 = vunpack.c.l.b16 %v193
    %v639 = vunpack.c.h.b16 %v193
    %v640 = vunpack.c.l.b16 %v194
    %v641 = vunpack.c.h.b16 %v194
    %v642 = vunpack.c.l.b16 %v195
    %v643 = vunpack.c.h.b16 %v195
    %v644 = vunpack.c.l.b16 %v196
    %v645 = vunpack.c.h.b16 %v196
    %v646 = vunpack.c.l.b16 %v197
    %v647 = vunpack.c.h.b16 %v197
    %v648 = vunpack.c.l.b16 %v198
    %v649 = vunpack.c.h.b16 %v198
    %v650 = vunpack.c.l.b16 %v199
    %v651 = vunpack.c.h.b16 %v199
    %v652 = vunpack.c.l.b16 %v200
    %v653 = vunpack.c.h.b16 %v200
    %v654 = vunpack.c.l.b16 %v201
    %v655 = vunpack.c.h.b16 %v201
    %v656 = vunpack.c.l.b16 %v202
    %v657 = vunpack.c.h.b16 %v202
    %v658 = vunpack.c.l.b16 %v203
    %v659 = vunpack.c.h.b16 %v203
    %v660 = vunpack.c.l.b16 %v204
    %v661 = vunpack.c.h.b16 %v204
    %v662 = vunpack.c.l.b16 %v205
    %v663 = vunpack.c.h.b16 %v205
    %v664 = vunpack.c.l.b16 %v206
    %v665 = vunpack.c.h.b16 %v206
    %v666 = vunpack.c.l.b16 %v207
    %v667 = vunpack.c.h.b16 %v207
    %v668 = vunpack.c.l.b16 %v208
    %v669 = vunpack.c.h.b16 %v208
    %v670 = vunpack.c.l.b16 %v209
    %v671 = vunpack.c.h.b16 %v209
    %v672 = vunpack.c.l.b16 %v210
    %v673 = vunpack.c.h.b16 %v210
    %v674 = vunpack.c.l.b16 %v211
    %v675 = vunpack.c.h.b16 %v211
    %v676 = vunpack.c.l.b16 %v212
    %v677 = vunpack.c.h.b16 %v212
    %v678 = vunpack.c.l.b16 %v213
    %v679 = vunpack.c.h.b16 %v213
    %v680 = vunpack.c.l.b16 %v214
    %v681 = vunpack.c.h.b16 %v214
    %v682 = vunpack.c.l.b16 %v215
    %v683 = vunpack.c.h.b16 %v215
    %v684 = vunpack.c.l.b16 %v216
    %v685 = vunpack.c.h.b16 %v216
    %v686 = vunpack.c.l.b16 %v217
    %v687 = vunpack.c.h.b16 %v217
    %v688 = vunpack.c.l.b16 %v218
    %v689 = vunpack.c.h.b16 %v218
    %v690 = vunpack.c.l.b16 %v219
    %v691 = vunpack.c.h.b16 %v219
    %v692 = vunpack.c.l.b16 %v220
    %v693 = vunpack.c.h.b16 %v220
    %v694 = vunpack.c.l.b16 %v221
    %v695 = vunpack.c.h.b16 %v221
    %v696 = vunpack.c.l.b16 %v222
    %v697 = vunpack.c.h.b16 %v222
    %v698 = vunpack.c.l.b16 %v223
    %v699 = vunpack.c.h.b16 %v223
    %v700 = vunpack.c.l.b16 %v224
    %v701 = vunpack.c.h.b16 %v224
    %v702 = vunpack.c.l.b16 %v225
    %v703 = vunpack.c.h.b16 %v225
    %v704 = vunpack.c.l.b16 %v226
    %v705 = vunpack.c.h.b16 %v226
    %v706 = vunpack.c.l.b16 %v227
    %v707 = vunpack.c.h.b16 %v227
    %v708 = vunpack.c.l.b16 %v228
    %v709 = vunpack.c.h.b16 %v228
    %v710 = vunpack.c.l.b16 %v229
    %v711 = vunpack.c.h.b16 %v229
    %v712 = vunpack.c.l.b16 %v230
    %v713 = vunpack.c.h.b16 %v230
    %v714 = vunpack.c.l.b16 %v231
    %v715 = vunpack.c.h.b16 %v231
    %v716 = vunpack.c.l.b16 %v232
    %v717 = vunpack.c.h.b16 %v232
    %v718 = vunpack.c.l.b16 %v233
    %v719 = vunpack.c.h.b16 %v233
    %v720 = vunpack.c.l.b16 %v234
    %v721 = vunpack.c.h.b16 %v234
    %v722 = vunpack.c.l.b16 %v235
    %v723 = vunpack.c.h.b16 %v235
    %v724 = vunpack.c.l.b16 %v236
    %v725 = vunpack.c.h.b16 %v236
    %v726 = vunpack.c.l.b16 %v237
    %v727 = vunpack.c.h.b16 %v237
    %v728 = vunpack.c.l.b16 %v238
    %v729 = vunpack.c.h.b16 %v238
    %v730 = vunpack.c.l.b16 %v239
    %v731 = vunpack.c.h.b16 %v239
    %v732 = vunpack.c.l.b16 %v240
    %v733 = vunpack.c.h.b16 %v240
    %v734 = vunpack.c.l.b16 %v241
    %v735 = vunpack.c.h.b16 %v241
    %v736 = vunpack.c.l.b16 %v242
    %v737 = vunpack.c.h.b16 %v242
    %v738 = vunpack.c.l.b16 %v243
    %v739 = vunpack.c.h.b16 %v243
    %v740 = vunpack.c.l.b16 %v244
    %v741 = vunpack.c.h.b16 %v244
    %v742 = vunpack.c.l.b16 %v245
    %v743 = vunpack.c.h.b16 %v245
    %v744 = vunpack.c.l.b16 %v246
    %v745 = vunpack.c.h.b16 %v246
    %v746 = vunpack.c.l.b16 %v247
    %v747 = vunpack.c.h.b16 %v247
    %v748 = vunpack.c.l.b16 %v248
    %v749 = vunpack.c.h.b16 %v248
    %v750 = vunpack.c.l.b16 %v249
    %v751 = vunpack.c.h.b16 %v249
    %v752 = vunpack.c.l.b16 %v250
    %v753 = vunpack.c.h.b16 %v250
    %v754 = vunpack.c.l.b16 %v251
    %v755 = vunpack.c.h.b16 %v251
    %v756 = vunpack.c.l.b16 %v252
    %v757 = vunpack.c.h.b16 %v252
    %v758 = vunpack.c.l.b16 %v253
    %v759 = vunpack.c.h.b16 %v253
    %v760 = vpack.c.b16 %v512, %v504
    %v761 = vpack.c.b16 %v513, %v505
    %v762 = vpack.c.b16 %v514, %v506
    %v763 = vpack.c.b16 %v515, %v507
    %v764 = vpack.c.b16 %v516, %v508
    %v765 = vpack.c.b16 %v517, %v509
    %v766 = vpack.c.b16 %v518, %v510
    %v767 = vpack.c.b16 %v519, %v511
    %v768 = vpack.c.b16 %v528, %v520
    %v769 = vpack.c.b16 %v529, %v521
    %v770 = vpack.c.b16 %v530, %v522
    %v771 = vpack.c.b16 %v531, %v523
    %v772 = vpack.c.b16 %v532, %v524
    %v773 = vpack.c.b16 %v533, %v525
    %v774 = vpack.c.b16 %v534, %v526
    %v775 = vpack.c.b16 %v535, %v527
    %v776 = vpack.c.b16 %v544, %v536
    %v777 = vpack.c.b16 %v545, %v537
    %v778 = vpack.c.b16 %v546, %v538
    %v779 = vpack.c.b16 %v547, %v539
    %v780 = vpack.c.b16 %v548, %v540
    %v781 = vpack.c.b16 %v549, %v541
    %v782 = vpack.c.b16 %v550, %v542
    %v783 = vpack.c.b16 %v551, %v543
    %v784 = vpack.c.b16 %v560, %v552
    %v785 = vpack.c.b16 %v561, %v553
    %v786 = vpack.c.b16 %v562, %v554
    %v787 = vpack.c.b16 %v563, %v555
    %v788 = vpack.c.b16 %v564, %v556
    %v789 = vpack.c.b16 %v565, %v557
    %v790 = vpack.c.b16 %v566, %v558
    %v791 = vpack.c.b16 %v567, %v559
    %v792 = vpack.c.b16 %v576, %v568
    %v793 = vpack.c.b16 %v577, %v569
    %v794 = vpack.c.b16 %v578, %v570
    %v795 = vpack.c.b16 %v579, %v571
    %v796 = vpack.c.b16 %v580, %v572
    %v797 = vpack.c.b16 %v581, %v573
    %v798 = vpack.c.b16 %v582, %v574
    %v799 = vpack.c.b16 %v583, %v575
    %v800 = vpack.c.b16 %v592, %v584
    %v801 = vpack.c.b16 %v593, %v585
    %v802 = vpack.c.b16 %v594, %v586
    %v803 = vpack.c.b16 %v595, %v587
    %v804 = vpack.c.b16 %v596, %v588
    %v805 = vpack.c.b16 %v597, %v589
    %v806 = vpack.c.b16 %v598, %v590
    %v807 = vpack.c.b16 %v599, %v591
    %v808 = vpack.c.b16 %v608, %v600
    %v809 = vpack.c.b16 %v609, %v601
    %v810 = vpack.c.b16 %v610, %v602
    %v811 = vpack.c.b16 %v611, %v603
    %v812 = vpack.c.b16 %v612, %v604
    %v813 = vpack.c.b16 %v613, %v605
    %v814 = vpack.c.b16 %v614, %v606
    %v815 = vpack.c.b16 %v615, %v607
    %v816 = vpack.c.b16 %v624, %v616
    %v817 = vpack.c.b16 %v625, %v617
    %v818 = vpack.c.b16 %v626, %v618
    %v819 = vpack.c.b16 %v627, %v619
    %v820 = vpack.c.b16 %v628, %v620
    %v821 = vpack.c.b16 %v629, %v621
    %v822 = vpack.c.b16 %v630, %v622
    %v823 = vpack.c.b16 %v631, %v623
    %v824 = vpack.c.b16 %v640, %v632
    %v825 = vpack.c.b16 %v641, %v633
    %v826 = vpack.c.b16 %v642, %v634
    %v827 = vpack.c.b16 %v643, %v635
    %v828 = vpack.c.b16 %v644, %v636
    %v829 = vpack.c.b16 %v645, %v637
    %v830 = vpack.c.b16 %v646, %v638
    %v831 = vpack.c.b16 %v647, %v639
    %v832 = vpack.c.b16 %v656, %v648
    %v833 = vpack.c.b16 %v657, %v649
    %v834 = vpack.c.b16 %v658, %v650
    %v835 = vpack.c.b16 %v659, %v651
    %v836 = vpack.c.b16 %v660, %v652
    %v837 = vpack.c.b16 %v661, %v653
    %v838 = vpack.c.b16 %v662, %v654
    %v839 = vpack.c.b16 %v663, %v655
    %v840 = vpack.c.b16 %v672, %v664
    %v841 = vpack.c.b16 %v673, %v665
    %v842 = vpack.c.b16 %v674, %v666
    %v843 = vpack.c.b16 %v675, %v667
    %v844 = vpack.c.b16 %v676, %v668
    %v845 = vpack.c.b16 %v677, %v669
    %v846 = vpack.c.b16 %v678, %v670
    %v847 = vpack.c.b16 %v679, %v671
    %v848 = vpack.c.b16 %v688, %v680
    %v849 = vpack.c.b16 %v689, %v681
    %v850 = vpack.c.b16 %v690, %v682
    %v851 = vpack.c.b16 %v691, %v683
    %v852 = vpack.c.b16 %v692, %v684
    %v853 = vpack.c.b16 %v693, %v685
    %v854 = vpack.c.b16 %v694, %v686
    %v855 = vpack.c.b16 %v695, %v687
    %v856 = vpack.c.b16 %v704, %v696
    %v857 = vpack.c.b16 %v705, %v697
    %v858 = vpack.c.b16 %v706, %v698
    %v859 = vpack.c.b16 %v707, %v699
    %v860 = vpack.c.b16 %v708, %v700
    %v861 = vpack.c.b16 %v709, %v701
    %v862 = vpack.c.b16 %v710, %v702
    %v863 = vpack.c.b16 %v711, %v703
    %v864 = vpack.c.b16 %v720, %v712
    %v865 = vpack.c.b16 %v721, %v713
    %v866 = vpack.c.b16 %v722, %v714
    %v867 = vpack.c.b16 %v723, %v715
    %v868 = vpack.c.b16 %v724, %v716
    %v869 = vpack.c.b16 %v725, %v717
    %v870 = vpack.c.b16 %v726, %v718
    %v871 = vpack.c.b16 %v727, %v719
    %v872 = vpack.c.b16 %v736, %v728
    %v873 = vpack.c.b16 %v737, %v729
    %v874 = vpack.c.b16 %v738, %v730
    %v875 = vpack.c.b16 %v739, %v731
    %v876 = vpack.c.b16 %v740, %v732
    %v877 = vpack.c.b16 %v741, %v733
    %v878 = vpack.c.b16 %v742, %v734
    %v879 = vpack.c.b16 %v743, %v735
    %v880 = vpack.c.b16 %v752, %v744
    %v881 = vpack.c.b16 %v753, %v745
    %v882 = vpack.c.b16 %v754, %v746
    %v883 = vpack.c.b16 %v755, %v747
    %v884 = vpack.c.b16 %v756, %v748
    %v885 = vpack.c.b16 %v757, %v749
    %v886 = vpack.c.b16 %v758, %v750
    %v887 = vpack.c.b16 %v759, %v751
    %1016 = vmatprep.subr.bf16.mxu0 %v761
    %1017 = vmatpush1.bf16.msra.mxu0 %v760
    %1018 = vmatprep.subr.bf16.mxu0 %v769
    %1019 = vmatpush1.bf16.msra.mxu0 %v768
    %1020 = vmatprep.subr.bf16.mxu0 %v777
    %1021 = vmatpush1.bf16.msra.mxu0 %v776
    %1022 = vmatprep.subr.bf16.mxu0 %v785
    %1023 = vmatpush1.bf16.msra.mxu0 %v784
    %1024 = vmatprep.subr.bf16.mxu0 %v793
    %1025 = vmatpush1.bf16.msra.mxu0 %v792
    %1026 = vmatprep.subr.bf16.mxu0 %v801
    %1027 = vmatpush1.bf16.msra.mxu0 %v800
    %1028 = vmatprep.subr.bf16.mxu0 %v809
    %1029 = vmatpush1.bf16.msra.mxu0 %v808
    %1030 = vmatprep.subr.bf16.mxu0 %v817
    %1031 = vmatpush1.bf16.msra.mxu0 %v816
    %1032 = vmatprep.subr.bf16.mxu0 %v825
    %1033 = vmatpush1.bf16.msra.mxu0 %v824
    %1034 = vmatprep.subr.bf16.mxu0 %v833
    %1035 = vmatpush1.bf16.msra.mxu0 %v832
    %1036 = vmatprep.subr.bf16.mxu0 %v841
    %1037 = vmatpush1.bf16.msra.mxu0 %v840
    %1038 = vmatprep.subr.bf16.mxu0 %v849
    %1039 = vmatpush1.bf16.msra.mxu0 %v848
    %1040 = vmatprep.subr.bf16.mxu0 %v857
    %1041 = vmatpush1.bf16.msra.mxu0 %v856
    %1042 = vmatprep.subr.bf16.mxu0 %v865
    %1043 = vmatpush1.bf16.msra.mxu0 %v864
    %1044 = vmatprep.subr.bf16.mxu0 %v873
    %1045 = vmatpush1.bf16.msra.mxu0 %v872
    %1046 = vmatprep.subr.bf16.mxu0 %v881
    %1047 = vmatpush1.bf16.msra.mxu0 %v880
    %1048 = vmatprep.mubr.bf16.mxu0 %v345
    %1049 = vmatmul.mubr.bf16.gmra.mrb[0].mxu0 %v344
    %v1050 = vpop.f32.mrb[0].mxu0
    %v1051 = vadd.f32 %v259, %v1050
    %v1052 = vpop.f32.mrb[0].mxu0
    %v1053 = vadd.f32 %v263, %v1052
    %v1054 = vpop.f32.mrb[0].mxu0
    %v1055 = vadd.f32 %v259, %v1054
    %v1056 = vpop.f32.mrb[0].mxu0
    %v1057 = vadd.f32 %v263, %v1056
    %1058 = vmatprep.mubr.bf16.mxu0 %v347
    %1059 = vmatmul.mubr.bf16.gmra.mrb[0].mxu0 %v346
    %v1060 = vpop.f32.mrb[0].mxu0
    %v1061 = vadd.f32 %v259, %v1060
    %v1062 = vpop.f32.mrb[0].mxu0
    %v1063 = vadd.f32 %v263, %v1062
    %v1064 = vpop.f32.mrb[0].mxu0
    %v1065 = vadd.f32 %v259, %v1064
    %v1066 = vpop.f32.mrb[0].mxu0
    %v1067 = vadd.f32 %v263, %v1066
    %1068 = vmatprep.mubr.bf16.mxu0 %v349
    %1069 = vmatmul.mubr.bf16.gmra.mrb[0].mxu0 %v348
    %v1070 = vpop.f32.mrb[0].mxu0
    %v1071 = vadd.f32 %v259, %v1070
    %v1072 = vpop.f32.mrb[0].mxu0
    %v1073 = vadd.f32 %v263, %v1072
    %v1074 = vpop.f32.mrb[0].mxu0
    %v1075 = vadd.f32 %v259, %v1074
    %v1076 = vpop.f32.mrb[0].mxu0
    %v1077 = vadd.f32 %v263, %v1076
    %1078 = vmatprep.mubr.bf16.mxu0 %v351
    %1079 = vmatmul.mubr.bf16.gmra.mrb[0].mxu0 %v350
    %v1080 = vpop.f32.mrb[0].mxu0
    %v1081 = vadd.f32 %v259, %v1080
    %v1082 = vpop.f32.mrb[0].mxu0
    %v1083 = vadd.f32 %v263, %v1082
    %v1084 = vpop.f32.mrb[0].mxu0
    %v1085 = vadd.f32 %v259, %v1084
    %v1086 = vpop.f32.mrb[0].mxu0
    %v1087 = vadd.f32 %v263, %v1086
    %1088 = vmatprep.mubr.bf16.mxu0 %v353
    %1089 = vmatmul.mubr.bf16.gmra.mrb[0].mxu0 %v352
    %v1090 = vpop.f32.mrb[0].mxu0
    %v1091 = vadd.f32 %v259, %v1090
    %v1092 = vpop.f32.mrb[0].mxu0
    %v1093 = vadd.f32 %v263, %v1092
    %v1094 = vpop.f32.mrb[0].mxu0
    %v1095 = vadd.f32 %v259, %v1094
    %v1096 = vpop.f32.mrb[0].mxu0
    %v1097 = vadd.f32 %v263, %v1096
    %1098 = vmatprep.mubr.bf16.mxu0 %v355
    %1099 = vmatmul.mubr.bf16.gmra.mrb[0].mxu0 %v354
    %v1100 = vpop.f32.mrb[0].mxu0
    %v1101 = vadd.f32 %v259, %v1100
    %v1102 = vpop.f32.mrb[0].mxu0
    %v1103 = vadd.f32 %v263, %v1102
    %v1104 = vpop.f32.mrb[0].mxu0
    %v1105 = vadd.f32 %v259, %v1104
    %v1106 = vpop.f32.mrb[0].mxu0
    %v1107 = vadd.f32 %v263, %v1106
    %1108 = vmatprep.mubr.bf16.mxu0 %v357
    %1109 = vmatmul.mubr.bf16.gmra.mrb[0].mxu0 %v356
    %v1110 = vpop.f32.mrb[0].mxu0
    %v1111 = vadd.f32 %v259, %v1110
    %v1112 = vpop.f32.mrb[0].mxu0
    %v1113 = vadd.f32 %v263, %v1112
    %v1114 = vpop.f32.mrb[0].mxu0
    %v1115 = vadd.f32 %v259, %v1114
    %v1116 = vpop.f32.mrb[0].mxu0
    %v1117 = vadd.f32 %v263, %v1116
    %1118 = vmatprep.mubr.bf16.mxu0 %v359
    %1119 = vmatmul.mubr.bf16.gmra.mrb[0].mxu0 %v358
    %v1120 = vpop.f32.mrb[0].mxu0
    %v1121 = vadd.f32 %v259, %v1120
    %v1122 = vpop.f32.mrb[0].mxu0
    %v1123 = vadd.f32 %v263, %v1122
    %v1124 = vpop.f32.mrb[0].mxu0
    %v1125 = vadd.f32 %v259, %v1124
    %v1126 = vpop.f32.mrb[0].mxu0
    %v1127 = vadd.f32 %v263, %v1126
    %1128 = vdwg.mxu0
    %1129 = vmatprep.subr.bf16.mxu0 %v763
    %1130 = vmatpush1.bf16.msra.mxu0 %v762
    %1131 = vmatprep.subr.bf16.mxu0 %v771
    %1132 = vmatpush1.bf16.msra.mxu0 %v770
    %1133 = vmatprep.subr.bf16.mxu0 %v779
    %1134 = vmatpush1.bf16.msra.mxu0 %v778
    %1135 = vmatprep.subr.bf16.mxu0 %v787
    %1136 = vmatpush1.bf16.msra.mxu0 %v786
    %1137 = vmatprep.subr.bf16.mxu0 %v795
    %1138 = vmatpush1.bf16.msra.mxu0 %v794
    %1139 = vmatprep.subr.bf16.mxu0 %v803
    %1140 = vmatpush1.bf16.msra.mxu0 %v802
    %1141 = vmatprep.subr.bf16.mxu0 %v811
    %1142 = vmatpush1.bf16.msra.mxu0 %v810
    %1143 = vmatprep.subr.bf16.mxu0 %v819
    %1144 = vmatpush1.bf16.msra.mxu0 %v818
    %1145 = vmatprep.subr.bf16.mxu0 %v827
    %1146 = vmatpush1.bf16.msra.mxu0 %v826
    %1147 = vmatprep.subr.bf16.mxu0 %v835
    %1148 = vmatpush1.bf16.msra.mxu0 %v834
    %1149 = vmatprep.subr.bf16.mxu0 %v843
    %1150 = vmatpush1.bf16.msra.mxu0 %v842
    %1151 = vmatprep.subr.bf16.mxu0 %v851
    %1152 = vmatpush1.bf16.msra.mxu0 %v850
    %1153 = vmatprep.subr.bf16.mxu0 %v859
    %1154 = vmatpush1.bf16.msra.mxu0 %v858
    %1155 = vmatprep.subr.bf16.mxu0 %v867
    %1156 = vmatpush1.bf16.msra.mxu0 %v866
    %1157 = vmatprep.subr.bf16.mxu0 %v875
    %1158 = vmatpush1.bf16.msra.mxu0 %v874
    %1159 = vmatprep.subr.bf16.mxu0 %v883
    %1160 = vmatpush1.bf16.msra.mxu0 %v882
    %1161 = vmatprep.mubr.bf16.mxu0 %v345
    %1162 = vmatmul.mubr.bf16.gmra.mrb[0].mxu0 %v344
    %v1163 = vpop.f32.mrb[0].mxu0
    %v1164 = vadd.f32 %v267, %v1163
    %v1165 = vpop.f32.mrb[0].mxu0
    %v1166 = vadd.f32 %v271, %v1165
    %v1167 = vpop.f32.mrb[0].mxu0
    %v1168 = vadd.f32 %v267, %v1167
    %v1169 = vpop.f32.mrb[0].mxu0
    %v1170 = vadd.f32 %v271, %v1169
    %1171 = vmatprep.mubr.bf16.mxu0 %v347
    %1172 = vmatmul.mubr.bf16.gmra.mrb[0].mxu0 %v346
    %v1173 = vpop.f32.mrb[0].mxu0
    %v1174 = vadd.f32 %v267, %v1173
    %v1175 = vpop.f32.mrb[0].mxu0
    %v1176 = vadd.f32 %v271, %v1175
    %v1177 = vpop.f32.mrb[0].mxu0
    %v1178 = vadd.f32 %v267, %v1177
    %v1179 = vpop.f32.mrb[0].mxu0
    %v1180 = vadd.f32 %v271, %v1179
    %1181 = vmatprep.mubr.bf16.mxu0 %v349
    %1182 = vmatmul.mubr.bf16.gmra.mrb[0].mxu0 %v348
    %v1183 = vpop.f32.mrb[0].mxu0
    %v1184 = vadd.f32 %v267, %v1183
    %v1185 = vpop.f32.mrb[0].mxu0
    %v1186 = vadd.f32 %v271, %v1185
    %v1187 = vpop.f32.mrb[0].mxu0
    %v1188 = vadd.f32 %v267, %v1187
    %v1189 = vpop.f32.mrb[0].mxu0
    %v1190 = vadd.f32 %v271, %v1189
    %1191 = vmatprep.mubr.bf16.mxu0 %v351
    %1192 = vmatmul.mubr.bf16.gmra.mrb[0].mxu0 %v350
    %v1193 = vpop.f32.mrb[0].mxu0
    %v1194 = vadd.f32 %v267, %v1193
    %v1195 = vpop.f32.mrb[0].mxu0
    %v1196 = vadd.f32 %v271, %v1195
    %v1197 = vpop.f32.mrb[0].mxu0
    %v1198 = vadd.f32 %v267, %v1197
    %v1199 = vpop.f32.mrb[0].mxu0
    %v1200 = vadd.f32 %v271, %v1199
    %1201 = vmatprep.mubr.bf16.mxu0 %v353
    %1202 = vmatmul.mubr.bf16.gmra.mrb[0].mxu0 %v352
    %v1203 = vpop.f32.mrb[0].mxu0
    %v1204 = vadd.f32 %v267, %v1203
    %v1205 = vpop.f32.mrb[0].mxu0
    %v1206 = vadd.f32 %v271, %v1205
    %v1207 = vpop.f32.mrb[0].mxu0
    %v1208 = vadd.f32 %v267, %v1207
    %v1209 = vpop.f32.mrb[0].mxu0
    %v1210 = vadd.f32 %v271, %v1209
    %1211 = vmatprep.mubr.bf16.mxu0 %v355
    %1212 = vmatmul.mubr.bf16.gmra.mrb[0].mxu0 %v354
    %v1213 = vpop.f32.mrb[0].mxu0
    %v1214 = vadd.f32 %v267, %v1213
    %v1215 = vpop.f32.mrb[0].mxu0
    %v1216 = vadd.f32 %v271, %v1215
    %v1217 = vpop.f32.mrb[0].mxu0
    %v1218 = vadd.f32 %v267, %v1217
    %v1219 = vpop.f32.mrb[0].mxu0
    %v1220 = vadd.f32 %v271, %v1219
    %1221 = vmatprep.mubr.bf16.mxu0 %v357
    %1222 = vmatmul.mubr.bf16.gmra.mrb[0].mxu0 %v356
    %v1223 = vpop.f32.mrb[0].mxu0
    %v1224 = vadd.f32 %v267, %v1223
    %v1225 = vpop.f32.mrb[0].mxu0
    %v1226 = vadd.f32 %v271, %v1225
    %v1227 = vpop.f32.mrb[0].mxu0
    %v1228 = vadd.f32 %v267, %v1227
    %v1229 = vpop.f32.mrb[0].mxu0
    %v1230 = vadd.f32 %v271, %v1229
    %1231 = vmatprep.mubr.bf16.mxu0 %v359
    %1232 = vmatmul.mubr.bf16.gmra.mrb[0].mxu0 %v358
    %v1233 = vpop.f32.mrb[0].mxu0
    %v1234 = vadd.f32 %v267, %v1233
    %v1235 = vpop.f32.mrb[0].mxu0
    %v1236 = vadd.f32 %v271, %v1235
    %v1237 = vpop.f32.mrb[0].mxu0
    %v1238 = vadd.f32 %v267, %v1237
    %v1239 = vpop.f32.mrb[0].mxu0
    %v1240 = vadd.f32 %v271, %v1239
    %1241 = vdwg.mxu0
    %1242 = vmatprep.subr.bf16.mxu0 %v765
    %1243 = vmatpush1.bf16.msra.mxu0 %v764
    %1244 = vmatprep.subr.bf16.mxu0 %v773
    %1245 = vmatpush1.bf16.msra.mxu0 %v772
    %1246 = vmatprep.subr.bf16.mxu0 %v781
    %1247 = vmatpush1.bf16.msra.mxu0 %v780
    %1248 = vmatprep.subr.bf16.mxu0 %v789
    %1249 = vmatpush1.bf16.msra.mxu0 %v788
    %1250 = vmatprep.subr.bf16.mxu0 %v797
    %1251 = vmatpush1.bf16.msra.mxu0 %v796
    %1252 = vmatprep.subr.bf16.mxu0 %v805
    %1253 = vmatpush1.bf16.msra.mxu0 %v804
    %1254 = vmatprep.subr.bf16.mxu0 %v813
    %1255 = vmatpush1.bf16.msra.mxu0 %v812
    %1256 = vmatprep.subr.bf16.mxu0 %v821
    %1257 = vmatpush1.bf16.msra.mxu0 %v820
    %1258 = vmatprep.subr.bf16.mxu0 %v829
    %1259 = vmatpush1.bf16.msra.mxu0 %v828
    %1260 = vmatprep.subr.bf16.mxu0 %v837
    %1261 = vmatpush1.bf16.msra.mxu0 %v836
    %1262 = vmatprep.subr.bf16.mxu0 %v845
    %1263 = vmatpush1.bf16.msra.mxu0 %v844
    %1264 = vmatprep.subr.bf16.mxu0 %v853
    %1265 = vmatpush1.bf16.msra.mxu0 %v852
    %1266 = vmatprep.subr.bf16.mxu0 %v861
    %1267 = vmatpush1.bf16.msra.mxu0 %v860
    %1268 = vmatprep.subr.bf16.mxu0 %v869
    %1269 = vmatpush1.bf16.msra.mxu0 %v868
    %1270 = vmatprep.subr.bf16.mxu0 %v877
    %1271 = vmatpush1.bf16.msra.mxu0 %v876
    %1272 = vmatprep.subr.bf16.mxu0 %v885
    %1273 = vmatpush1.bf16.msra.mxu0 %v884
    %1274 = vmatprep.mubr.bf16.mxu0 %v345
    %1275 = vmatmul.mubr.bf16.gmra.mrb[0].mxu0 %v344
    %v1276 = vpop.f32.mrb[0].mxu0
    %v1277 = vadd.f32 %v275, %v1276
    %v1278 = vpop.f32.mrb[0].mxu0
    %v1279 = vadd.f32 %v279, %v1278
    %v1280 = vpop.f32.mrb[0].mxu0
    %v1281 = vadd.f32 %v275, %v1280
    %v1282 = vpop.f32.mrb[0].mxu0
    %v1283 = vadd.f32 %v279, %v1282
    %1284 = vmatprep.mubr.bf16.mxu0 %v347
    %1285 = vmatmul.mubr.bf16.gmra.mrb[0].mxu0 %v346
    %v1286 = vpop.f32.mrb[0].mxu0
    %v1287 = vadd.f32 %v275, %v1286
    %v1288 = vpop.f32.mrb[0].mxu0
    %v1289 = vadd.f32 %v279, %v1288
    %v1290 = vpop.f32.mrb[0].mxu0
    %v1291 = vadd.f32 %v275, %v1290
    %v1292 = vpop.f32.mrb[0].mxu0
    %v1293 = vadd.f32 %v279, %v1292
    %1294 = vmatprep.mubr.bf16.mxu0 %v349
    %1295 = vmatmul.mubr.bf16.gmra.mrb[0].mxu0 %v348
    %v1296 = vpop.f32.mrb[0].mxu0
    %v1297 = vadd.f32 %v275, %v1296
    %v1298 = vpop.f32.mrb[0].mxu0
    %v1299 = vadd.f32 %v279, %v1298
    %v1300 = vpop.f32.mrb[0].mxu0
    %v1301 = vadd.f32 %v275, %v1300
    %v1302 = vpop.f32.mrb[0].mxu0
    %v1303 = vadd.f32 %v279, %v1302
    %1304 = vmatprep.mubr.bf16.mxu0 %v351
    %1305 = vmatmul.mubr.bf16.gmra.mrb[0].mxu0 %v350
    %v1306 = vpop.f32.mrb[0].mxu0
    %v1307 = vadd.f32 %v275, %v1306
    %v1308 = vpop.f32.mrb[0].mxu0
    %v1309 = vadd.f32 %v279, %v1308
    %v1310 = vpop.f32.mrb[0].mxu0
    %v1311 = vadd.f32 %v275, %v1310
    %v1312 = vpop.f32.mrb[0].mxu0
    %v1313 = vadd.f32 %v279, %v1312
    %1314 = vmatprep.mubr.bf16.mxu0 %v353
    %1315 = vmatmul.mubr.bf16.gmra.mrb[0].mxu0 %v352
    %v1316 = vpop.f32.mrb[0].mxu0
    %v1317 = vadd.f32 %v275, %v1316
    %v1318 = vpop.f32.mrb[0].mxu0
    %v1319 = vadd.f32 %v279, %v1318
    %v1320 = vpop.f32.mrb[0].mxu0
    %v1321 = vadd.f32 %v275, %v1320
    %v1322 = vpop.f32.mrb[0].mxu0
    %v1323 = vadd.f32 %v279, %v1322
    %1324 = vmatprep.mubr.bf16.mxu0 %v355
    %1325 = vmatmul.mubr.bf16.gmra.mrb[0].mxu0 %v354
    %v1326 = vpop.f32.mrb[0].mxu0
    %v1327 = vadd.f32 %v275, %v1326
    %v1328 = vpop.f32.mrb[0].mxu0
    %v1329 = vadd.f32 %v279, %v1328
    %v1330 = vpop.f32.mrb[0].mxu0
    %v1331 = vadd.f32 %v275, %v1330
    %v1332 = vpop.f32.mrb[0].mxu0
    %v1333 = vadd.f32 %v279, %v1332
    %1334 = vmatprep.mubr.bf16.mxu0 %v357
    %1335 = vmatmul.mubr.bf16.gmra.mrb[0].mxu0 %v356
    %v1336 = vpop.f32.mrb[0].mxu0
    %v1337 = vadd.f32 %v275, %v1336
    %v1338 = vpop.f32.mrb[0].mxu0
    %v1339 = vadd.f32 %v279, %v1338
    %v1340 = vpop.f32.mrb[0].mxu0
    %v1341 = vadd.f32 %v275, %v1340
    %v1342 = vpop.f32.mrb[0].mxu0
    %v1343 = vadd.f32 %v279, %v1342
    %1344 = vmatprep.mubr.bf16.mxu0 %v359
    %1345 = vmatmul.mubr.bf16.gmra.mrb[0].mxu0 %v358
    %v1346 = vpop.f32.mrb[0].mxu0
    %v1347 = vadd.f32 %v275, %v1346
    %v1348 = vpop.f32.mrb[0].mxu0
    %v1349 = vadd.f32 %v279, %v1348
    %v1350 = vpop.f32.mrb[0].mxu0
    %v1351 = vadd.f32 %v275, %v1350
    %v1352 = vpop.f32.mrb[0].mxu0
    %v1353 = vadd.f32 %v279, %v1352
    %1354 = vdwg.mxu0
    %1355 = vmatprep.subr.bf16.mxu0 %v767
    %1356 = vmatpush1.bf16.msra.mxu0 %v766
    %1357 = vmatprep.subr.bf16.mxu0 %v775
    %1358 = vmatpush1.bf16.msra.mxu0 %v774
    %1359 = vmatprep.subr.bf16.mxu0 %v783
    %1360 = vmatpush1.bf16.msra.mxu0 %v782
    %1361 = vmatprep.subr.bf16.mxu0 %v791
    %1362 = vmatpush1.bf16.msra.mxu0 %v790
    %1363 = vmatprep.subr.bf16.mxu0 %v799
    %1364 = vmatpush1.bf16.msra.mxu0 %v798
    %1365 = vmatprep.subr.bf16.mxu0 %v807
    %1366 = vmatpush1.bf16.msra.mxu0 %v806
    %1367 = vmatprep.subr.bf16.mxu0 %v815
    %1368 = vmatpush1.bf16.msra.mxu0 %v814
    %1369 = vmatprep.subr.bf16.mxu0 %v823
    %1370 = vmatpush1.bf16.msra.mxu0 %v822
    %1371 = vmatprep.subr.bf16.mxu0 %v831
    %1372 = vmatpush1.bf16.msra.mxu0 %v830
    %1373 = vmatprep.subr.bf16.mxu0 %v839
    %1374 = vmatpush1.bf16.msra.mxu0 %v838
    %1375 = vmatprep.subr.bf16.mxu0 %v847
    %1376 = vmatpush1.bf16.msra.mxu0 %v846
    %1377 = vmatprep.subr.bf16.mxu0 %v855
    %1378 = vmatpush1.bf16.msra.mxu0 %v854
    %1379 = vmatprep.subr.bf16.mxu0 %v863
    %1380 = vmatpush1.bf16.msra.mxu0 %v862
    %1381 = vmatprep.subr.bf16.mxu0 %v871
    %1382 = vmatpush1.bf16.msra.mxu0 %v870
    %1383 = vmatprep.subr.bf16.mxu0 %v879
    %1384 = vmatpush1.bf16.msra.mxu0 %v878
    %1385 = vmatprep.subr.bf16.mxu0 %v887
    %1386 = vmatpush1.bf16.msra.mxu0 %v886
    %1387 = vmatprep.mubr.bf16.mxu0 %v345
    %1388 = vmatmul.mubr.bf16.gmra.mrb[0].mxu0 %v344
    %v1389 = vpop.f32.mrb[0].mxu0
    %v1390 = vadd.f32 %v283, %v1389
    %v1391 = vpop.f32.mrb[0].mxu0
    %v1392 = vadd.f32 %v287, %v1391
    %v1393 = vpop.f32.mrb[0].mxu0
    %v1394 = vadd.f32 %v283, %v1393
    %v1395 = vpop.f32.mrb[0].mxu0
    %v1396 = vadd.f32 %v287, %v1395
    %1397 = vmatprep.mubr.bf16.mxu0 %v347
    %1398 = vmatmul.mubr.bf16.gmra.mrb[0].mxu0 %v346
    %v1399 = vpop.f32.mrb[0].mxu0
    %v1400 = vadd.f32 %v283, %v1399
    %v1401 = vpop.f32.mrb[0].mxu0
    %v1402 = vadd.f32 %v287, %v1401
    %v1403 = vpop.f32.mrb[0].mxu0
    %v1404 = vadd.f32 %v283, %v1403
    %v1405 = vpop.f32.mrb[0].mxu0
    %v1406 = vadd.f32 %v287, %v1405
    %1407 = vmatprep.mubr.bf16.mxu0 %v349
    %1408 = vmatmul.mubr.bf16.gmra.mrb[0].mxu0 %v348
    %v1409 = vpop.f32.mrb[0].mxu0
    %v1410 = vadd.f32 %v283, %v1409
    %v1411 = vpop.f32.mrb[0].mxu0
    %v1412 = vadd.f32 %v287, %v1411
    %v1413 = vpop.f32.mrb[0].mxu0
    %v1414 = vadd.f32 %v283, %v1413
    %v1415 = vpop.f32.mrb[0].mxu0
    %v1416 = vadd.f32 %v287, %v1415
    %1417 = vmatprep.mubr.bf16.mxu0 %v351
    %1418 = vmatmul.mubr.bf16.gmra.mrb[0].mxu0 %v350
    %v1419 = vpop.f32.mrb[0].mxu0
    %v1420 = vadd.f32 %v283, %v1419
    %v1421 = vpop.f32.mrb[0].mxu0
    %v1422 = vadd.f32 %v287, %v1421
    %v1423 = vpop.f32.mrb[0].mxu0
    %v1424 = vadd.f32 %v283, %v1423
    %v1425 = vpop.f32.mrb[0].mxu0
    %v1426 = vadd.f32 %v287, %v1425
    %1427 = vmatprep.mubr.bf16.mxu0 %v353
    %1428 = vmatmul.mubr.bf16.gmra.mrb[0].mxu0 %v352
    %v1429 = vpop.f32.mrb[0].mxu0
    %v1430 = vadd.f32 %v283, %v1429
    %v1431 = vpop.f32.mrb[0].mxu0
    %v1432 = vadd.f32 %v287, %v1431
    %v1433 = vpop.f32.mrb[0].mxu0
    %v1434 = vadd.f32 %v283, %v1433
    %v1435 = vpop.f32.mrb[0].mxu0
    %v1436 = vadd.f32 %v287, %v1435
    %1437 = vmatprep.mubr.bf16.mxu0 %v355
    %1438 = vmatmul.mubr.bf16.gmra.mrb[0].mxu0 %v354
    %v1439 = vpop.f32.mrb[0].mxu0
    %v1440 = vadd.f32 %v283, %v1439
    %v1441 = vpop.f32.mrb[0].mxu0
    %v1442 = vadd.f32 %v287, %v1441
    %v1443 = vpop.f32.mrb[0].mxu0
    %v1444 = vadd.f32 %v283, %v1443
    %v1445 = vpop.f32.mrb[0].mxu0
    %v1446 = vadd.f32 %v287, %v1445
    %1447 = vmatprep.mubr.bf16.mxu0 %v357
    %1448 = vmatmul.mubr.bf16.gmra.mrb[0].mxu0 %v356
    %v1449 = vpop.f32.mrb[0].mxu0
    %v1450 = vadd.f32 %v283, %v1449
    %v1451 = vpop.f32.mrb[0].mxu0
    %v1452 = vadd.f32 %v287, %v1451
    %v1453 = vpop.f32.mrb[0].mxu0
    %v1454 = vadd.f32 %v283, %v1453
    %v1455 = vpop.f32.mrb[0].mxu0
    %v1456 = vadd.f32 %v287, %v1455
    %1457 = vmatprep.mubr.bf16.mxu0 %v359
    %1458 = vmatmul.mubr.bf16.gmra.mrb[0].mxu0 %v358
    %v1459 = vpop.f32.mrb[0].mxu0
    %v1460 = vadd.f32 %v283, %v1459
    %v1461 = vpop.f32.mrb[0].mxu0
    %v1462 = vadd.f32 %v287, %v1461
    %v1463 = vpop.f32.mrb[0].mxu0
    %v1464 = vadd.f32 %v283, %v1463
    %v1465 = vpop.f32.mrb[0].mxu0
    %v1466 = vadd.f32 %v287, %v1465
    %1467 = vdwg.mxu0
    %v1468 = vmax.f32 %v1051, 0.0
    %v1469 = vmax.f32 %v1053, 0.0
    %v1470 = vmax.f32 %v1164, 0.0
    %v1471 = vmax.f32 %v1166, 0.0
    %v1472 = vmax.f32 %v1277, 0.0
    %v1473 = vmax.f32 %v1279, 0.0
    %v1474 = vmax.f32 %v1390, 0.0
    %v1475 = vmax.f32 %v1392, 0.0
    %v1476 = vmax.f32 %v1055, 0.0
    %v1477 = vmax.f32 %v1057, 0.0
    %v1478 = vmax.f32 %v1168, 0.0
    %v1479 = vmax.f32 %v1170, 0.0
    %v1480 = vmax.f32 %v1281, 0.0
    %v1481 = vmax.f32 %v1283, 0.0
    %v1482 = vmax.f32 %v1394, 0.0
    %v1483 = vmax.f32 %v1396, 0.0
    %v1484 = vmax.f32 %v1061, 0.0
    %v1485 = vmax.f32 %v1063, 0.0
    %v1486 = vmax.f32 %v1174, 0.0
    %v1487 = vmax.f32 %v1176, 0.0
    %v1488 = vmax.f32 %v1287, 0.0
    %v1489 = vmax.f32 %v1289, 0.0
    %v1490 = vmax.f32 %v1400, 0.0
    %v1491 = vmax.f32 %v1402, 0.0
    %v1492 = vmax.f32 %v1065, 0.0
    %v1493 = vmax.f32 %v1067, 0.0
    %v1494 = vmax.f32 %v1178, 0.0
    %v1495 = vmax.f32 %v1180, 0.0
    %v1496 = vmax.f32 %v1291, 0.0
    %v1497 = vmax.f32 %v1293, 0.0
    %v1498 = vmax.f32 %v1404, 0.0
    %v1499 = vmax.f32 %v1406, 0.0
    %v1500 = vmax.f32 %v1071, 0.0
    %v1501 = vmax.f32 %v1073, 0.0
    %v1502 = vmax.f32 %v1184, 0.0
    %v1503 = vmax.f32 %v1186, 0.0
    %v1504 = vmax.f32 %v1297, 0.0
    %v1505 = vmax.f32 %v1299, 0.0
    %v1506 = vmax.f32 %v1410, 0.0
    %v1507 = vmax.f32 %v1412, 0.0
    %v1508 = vmax.f32 %v1075, 0.0
    %v1509 = vmax.f32 %v1077, 0.0
    %v1510 = vmax.f32 %v1188, 0.0
    %v1511 = vmax.f32 %v1190, 0.0
    %v1512 = vmax.f32 %v1301, 0.0
    %v1513 = vmax.f32 %v1303, 0.0
    %v1514 = vmax.f32 %v1414, 0.0
    %v1515 = vmax.f32 %v1416, 0.0
    %v1516 = vmax.f32 %v1081, 0.0
    %v1517 = vmax.f32 %v1083, 0.0
    %v1518 = vmax.f32 %v1194, 0.0
    %v1519 = vmax.f32 %v1196, 0.0
    %v1520 = vmax.f32 %v1307, 0.0
    %v1521 = vmax.f32 %v1309, 0.0
    %v1522 = vmax.f32 %v1420, 0.0
    %v1523 = vmax.f32 %v1422, 0.0
    %v1524 = vmax.f32 %v1085, 0.0
    %v1525 = vmax.f32 %v1087, 0.0
    %v1526 = vmax.f32 %v1198, 0.0
    %v1527 = vmax.f32 %v1200, 0.0
    %v1528 = vmax.f32 %v1311, 0.0
    %v1529 = vmax.f32 %v1313, 0.0
    %v1530 = vmax.f32 %v1424, 0.0
    %v1531 = vmax.f32 %v1426, 0.0
    %v1532 = vmax.f32 %v1091, 0.0
    %v1533 = vmax.f32 %v1093, 0.0
    %v1534 = vmax.f32 %v1204, 0.0
    %v1535 = vmax.f32 %v1206, 0.0
    %v1536 = vmax.f32 %v1317, 0.0
    %v1537 = vmax.f32 %v1319, 0.0
    %v1538 = vmax.f32 %v1430, 0.0
    %v1539 = vmax.f32 %v1432, 0.0
    %v1540 = vmax.f32 %v1095, 0.0
    %v1541 = vmax.f32 %v1097, 0.0
    %v1542 = vmax.f32 %v1208, 0.0
    %v1543 = vmax.f32 %v1210, 0.0
    %v1544 = vmax.f32 %v1321, 0.0
    %v1545 = vmax.f32 %v1323, 0.0
    %v1546 = vmax.f32 %v1434, 0.0
    %v1547 = vmax.f32 %v1436, 0.0
    %v1548 = vmax.f32 %v1101, 0.0
    %v1549 = vmax.f32 %v1103, 0.0
    %v1550 = vmax.f32 %v1214, 0.0
    %v1551 = vmax.f32 %v1216, 0.0
    %v1552 = vmax.f32 %v1327, 0.0
    %v1553 = vmax.f32 %v1329, 0.0
    %v1554 = vmax.f32 %v1440, 0.0
    %v1555 = vmax.f32 %v1442, 0.0
    %v1556 = vmax.f32 %v1105, 0.0
    %v1557 = vmax.f32 %v1107, 0.0
    %v1558 = vmax.f32 %v1218, 0.0
    %v1559 = vmax.f32 %v1220, 0.0
    %v1560 = vmax.f32 %v1331, 0.0
    %v1561 = vmax.f32 %v1333, 0.0
    %v1562 = vmax.f32 %v1444, 0.0
    %v1563 = vmax.f32 %v1446, 0.0
    %v1564 = vmax.f32 %v1111, 0.0
    %v1565 = vmax.f32 %v1113, 0.0
    %v1566 = vmax.f32 %v1224, 0.0
    %v1567 = vmax.f32 %v1226, 0.0
    %v1568 = vmax.f32 %v1337, 0.0
    %v1569 = vmax.f32 %v1339, 0.0
    %v1570 = vmax.f32 %v1450, 0.0
    %v1571 = vmax.f32 %v1452, 0.0
    %v1572 = vmax.f32 %v1115, 0.0
    %v1573 = vmax.f32 %v1117, 0.0
    %v1574 = vmax.f32 %v1228, 0.0
    %v1575 = vmax.f32 %v1230, 0.0
    %v1576 = vmax.f32 %v1341, 0.0
    %v1577 = vmax.f32 %v1343, 0.0
    %v1578 = vmax.f32 %v1454, 0.0
    %v1579 = vmax.f32 %v1456, 0.0
    %v1580 = vmax.f32 %v1121, 0.0
    %v1581 = vmax.f32 %v1123, 0.0
    %v1582 = vmax.f32 %v1234, 0.0
    %v1583 = vmax.f32 %v1236, 0.0
    %v1584 = vmax.f32 %v1347, 0.0
    %v1585 = vmax.f32 %v1349, 0.0
    %v1586 = vmax.f32 %v1460, 0.0
    %v1587 = vmax.f32 %v1462, 0.0
    %v1588 = vmax.f32 %v1125, 0.0
    %v1589 = vmax.f32 %v1127, 0.0
    %v1590 = vmax.f32 %v1238, 0.0
    %v1591 = vmax.f32 %v1240, 0.0
    %v1592 = vmax.f32 %v1351, 0.0
    %v1593 = vmax.f32 %v1353, 0.0
    %v1594 = vmax.f32 %v1464, 0.0
    %v1595 = vmax.f32 %v1466, 0.0
    %v1596 = vpack.c.bf16 %v1476, %v1468
    %v1597 = vpack.c.bf16 %v1477, %v1469
    %v1598 = vpack.c.bf16 %v1478, %v1470
    %v1599 = vpack.c.bf16 %v1479, %v1471
    %v1600 = vpack.c.bf16 %v1480, %v1472
    %v1601 = vpack.c.bf16 %v1481, %v1473
    %v1602 = vpack.c.bf16 %v1482, %v1474
    %v1603 = vpack.c.bf16 %v1483, %v1475
    %v1604 = vpack.c.bf16 %v1492, %v1484
    %v1605 = vpack.c.bf16 %v1493, %v1485
    %v1606 = vpack.c.bf16 %v1494, %v1486
    %v1607 = vpack.c.bf16 %v1495, %v1487
    %v1608 = vpack.c.bf16 %v1496, %v1488
    %v1609 = vpack.c.bf16 %v1497, %v1489
    %v1610 = vpack.c.bf16 %v1498, %v1490
    %v1611 = vpack.c.bf16 %v1499, %v1491
    %v1612 = vpack.c.bf16 %v1508, %v1500
    %v1613 = vpack.c.bf16 %v1509, %v1501
    %v1614 = vpack.c.bf16 %v1510, %v1502
    %v1615 = vpack.c.bf16 %v1511, %v1503
    %v1616 = vpack.c.bf16 %v1512, %v1504
    %v1617 = vpack.c.bf16 %v1513, %v1505
    %v1618 = vpack.c.bf16 %v1514, %v1506
    %v1619 = vpack.c.bf16 %v1515, %v1507
    %v1620 = vpack.c.bf16 %v1524, %v1516
    %v1621 = vpack.c.bf16 %v1525, %v1517
    %v1622 = vpack.c.bf16 %v1526, %v1518
    %v1623 = vpack.c.bf16 %v1527, %v1519
    %v1624 = vpack.c.bf16 %v1528, %v1520
    %v1625 = vpack.c.bf16 %v1529, %v1521
    %v1626 = vpack.c.bf16 %v1530, %v1522
    %v1627 = vpack.c.bf16 %v1531, %v1523
    %v1628 = vpack.c.bf16 %v1540, %v1532
    %v1629 = vpack.c.bf16 %v1541, %v1533
    %v1630 = vpack.c.bf16 %v1542, %v1534
    %v1631 = vpack.c.bf16 %v1543, %v1535
    %v1632 = vpack.c.bf16 %v1544, %v1536
    %v1633 = vpack.c.bf16 %v1545, %v1537
    %v1634 = vpack.c.bf16 %v1546, %v1538
    %v1635 = vpack.c.bf16 %v1547, %v1539
    %v1636 = vpack.c.bf16 %v1556, %v1548
    %v1637 = vpack.c.bf16 %v1557, %v1549
    %v1638 = vpack.c.bf16 %v1558, %v1550
    %v1639 = vpack.c.bf16 %v1559, %v1551
    %v1640 = vpack.c.bf16 %v1560, %v1552
    %v1641 = vpack.c.bf16 %v1561, %v1553
    %v1642 = vpack.c.bf16 %v1562, %v1554
    %v1643 = vpack.c.bf16 %v1563, %v1555
    %v1644 = vpack.c.bf16 %v1572, %v1564
    %v1645 = vpack.c.bf16 %v1573, %v1565
    %v1646 = vpack.c.bf16 %v1574, %v1566
    %v1647 = vpack.c.bf16 %v1575, %v1567
    %v1648 = vpack.c.bf16 %v1576, %v1568
    %v1649 = vpack.c.bf16 %v1577, %v1569
    %v1650 = vpack.c.bf16 %v1578, %v1570
    %v1651 = vpack.c.bf16 %v1579, %v1571
    %v1652 = vpack.c.bf16 %v1588, %v1580
    %v1653 = vpack.c.bf16 %v1589, %v1581
    %v1654 = vpack.c.bf16 %v1590, %v1582
    %v1655 = vpack.c.bf16 %v1591, %v1583
    %v1656 = vpack.c.bf16 %v1592, %v1584
    %v1657 = vpack.c.bf16 %v1593, %v1585
    %v1658 = vpack.c.bf16 %v1594, %v1586
    %v1659 = vpack.c.bf16 %v1595, %v1587
    %v1660 = vld [vmem:[#allocation8] sm:$0xff]
    %v1661 = vld [vmem:[#allocation8 + $0x8] sm:$0xff]
    %v1662 = vld [vmem:[#allocation8 + $0x10] sm:$0xff]
    %v1663 = vld [vmem:[#allocation8 + $0x18] sm:$0xff]
    %v1664 = vld [vmem:[#allocation8 + $0x20] sm:$0xff]
    %v1665 = vld [vmem:[#allocation8 + $0x28] sm:$0xff]
    %v1666 = vld [vmem:[#allocation8 + $0x30] sm:$0xff]
    %v1667 = vld [vmem:[#allocation8 + $0x38] sm:$0xff]
    %v1668 = vld [vmem:[#allocation8 + $0x40] sm:$0xff]
    %v1669 = vld [vmem:[#allocation8 + $0x48] sm:$0xff]
    %v1670 = vld [vmem:[#allocation8 + $0x50] sm:$0xff]
    %v1671 = vld [vmem:[#allocation8 + $0x58] sm:$0xff]
    %v1672 = vld [vmem:[#allocation8 + $0x60] sm:$0xff]
    %v1673 = vld [vmem:[#allocation8 + $0x68] sm:$0xff]
    %v1674 = vld [vmem:[#allocation8 + $0x70] sm:$0xff]
    %v1675 = vld [vmem:[#allocation8 + $0x78] sm:$0xff]
    %v1676 = vld [vmem:[#allocation8 + $0x80] sm:$0xff]
    %v1677 = vld [vmem:[#allocation8 + $0x88] sm:$0xff]
    %v1678 = vld [vmem:[#allocation8 + $0x90] sm:$0xff]
    %v1679 = vld [vmem:[#allocation8 + $0x98] sm:$0xff]
    %v1680 = vld [vmem:[#allocation8 + $0xa0] sm:$0xff]
    %v1681 = vld [vmem:[#allocation8 + $0xa8] sm:$0xff]
    %v1682 = vld [vmem:[#allocation8 + $0xb0] sm:$0xff]
    %v1683 = vld [vmem:[#allocation8 + $0xb8] sm:$0xff]
    %v1684 = vld [vmem:[#allocation8 + $0xc0] sm:$0xff]
    %v1685 = vld [vmem:[#allocation8 + $0xc8] sm:$0xff]
    %v1686 = vld [vmem:[#allocation8 + $0xd0] sm:$0xff]
    %v1687 = vld [vmem:[#allocation8 + $0xd8] sm:$0xff]
    %v1688 = vld [vmem:[#allocation8 + $0xe0] sm:$0xff]
    %v1689 = vld [vmem:[#allocation8 + $0xe8] sm:$0xff]
    %v1690 = vld [vmem:[#allocation8 + $0xf0] sm:$0xff]
    %v1691 = vld [vmem:[#allocation8 + $0xf8] sm:$0xff]
    %v1692 = vld [vmem:[#allocation8 + $0x100] sm:$0xff]
    %v1693 = vld [vmem:[#allocation8 + $0x108] sm:$0xff]
    %v1694 = vld [vmem:[#allocation8 + $0x110] sm:$0xff]
    %v1695 = vld [vmem:[#allocation8 + $0x118] sm:$0xff]
    %v1696 = vld [vmem:[#allocation8 + $0x120] sm:$0xff]
    %v1697 = vld [vmem:[#allocation8 + $0x128] sm:$0xff]
    %v1698 = vld [vmem:[#allocation8 + $0x130] sm:$0xff]
    %v1699 = vld [vmem:[#allocation8 + $0x138] sm:$0xff]
    %v1700 = vld [vmem:[#allocation8 + $0x140] sm:$0xff]
    %v1701 = vld [vmem:[#allocation8 + $0x148] sm:$0xff]
    %v1702 = vld [vmem:[#allocation8 + $0x150] sm:$0xff]
    %v1703 = vld [vmem:[#allocation8 + $0x158] sm:$0xff]
    %v1704 = vld [vmem:[#allocation8 + $0x160] sm:$0xff]
    %v1705 = vld [vmem:[#allocation8 + $0x168] sm:$0xff]
    %v1706 = vld [vmem:[#allocation8 + $0x170] sm:$0xff]
    %v1707 = vld [vmem:[#allocation8 + $0x178] sm:$0xff]
    %v1708 = vld [vmem:[#allocation8 + $0x180] sm:$0xff]
    %v1709 = vld [vmem:[#allocation8 + $0x188] sm:$0xff]
    %v1710 = vld [vmem:[#allocation8 + $0x190] sm:$0xff]
    %v1711 = vld [vmem:[#allocation8 + $0x198] sm:$0xff]
    %v1712 = vld [vmem:[#allocation8 + $0x1a0] sm:$0xff]
    %v1713 = vld [vmem:[#allocation8 + $0x1a8] sm:$0xff]
    %v1714 = vld [vmem:[#allocation8 + $0x1b0] sm:$0xff]
    %v1715 = vld [vmem:[#allocation8 + $0x1b8] sm:$0xff]
    %v1716 = vld [vmem:[#allocation8 + $0x1c0] sm:$0xff]
    %v1717 = vld [vmem:[#allocation8 + $0x1c8] sm:$0xff]
    %v1718 = vld [vmem:[#allocation8 + $0x1d0] sm:$0xff]
    %v1719 = vld [vmem:[#allocation8 + $0x1d8] sm:$0xff]
    %v1720 = vld [vmem:[#allocation8 + $0x1e0] sm:$0xff]
    %v1721 = vld [vmem:[#allocation8 + $0x1e8] sm:$0xff]
    %v1722 = vld [vmem:[#allocation8 + $0x1f0] sm:$0xff]
    %v1723 = vld [vmem:[#allocation8 + $0x1f8] sm:$0xff]
    %v1724 = vld [vmem:[#allocation8 + $0x200] sm:$0xff]
    %v1725 = vld [vmem:[#allocation8 + $0x208] sm:$0xff]
    %v1726 = vld [vmem:[#allocation8 + $0x210] sm:$0xff]
    %v1727 = vld [vmem:[#allocation8 + $0x218] sm:$0xff]
    %v1728 = vld [vmem:[#allocation8 + $0x220] sm:$0xff]
    %v1729 = vld [vmem:[#allocation8 + $0x228] sm:$0xff]
    %v1730 = vld [vmem:[#allocation8 + $0x230] sm:$0xff]
    %v1731 = vld [vmem:[#allocation8 + $0x238] sm:$0xff]
    %v1732 = vld [vmem:[#allocation8 + $0x240] sm:$0xff]
    %v1733 = vld [vmem:[#allocation8 + $0x248] sm:$0xff]
    %v1734 = vld [vmem:[#allocation8 + $0x250] sm:$0xff]
    %v1735 = vld [vmem:[#allocation8 + $0x258] sm:$0xff]
    %v1736 = vld [vmem:[#allocation8 + $0x260] sm:$0xff]
    %v1737 = vld [vmem:[#allocation8 + $0x268] sm:$0xff]
    %v1738 = vld [vmem:[#allocation8 + $0x270] sm:$0xff]
    %v1739 = vld [vmem:[#allocation8 + $0x278] sm:$0xff]
    %v1740 = vld [vmem:[#allocation8 + $0x280] sm:$0xff]
    %v1741 = vld [vmem:[#allocation8 + $0x288] sm:$0xff]
    %v1742 = vld [vmem:[#allocation8 + $0x290] sm:$0xff]
    %v1743 = vld [vmem:[#allocation8 + $0x298] sm:$0xff]
    %v1744 = vld [vmem:[#allocation8 + $0x2a0] sm:$0xff]
    %v1745 = vld [vmem:[#allocation8 + $0x2a8] sm:$0xff]
    %v1746 = vld [vmem:[#allocation8 + $0x2b0] sm:$0xff]
    %v1747 = vld [vmem:[#allocation8 + $0x2b8] sm:$0xff]
    %v1748 = vld [vmem:[#allocation8 + $0x2c0] sm:$0xff]
    %v1749 = vld [vmem:[#allocation8 + $0x2c8] sm:$0xff]
    %v1750 = vld [vmem:[#allocation8 + $0x2d0] sm:$0xff]
    %v1751 = vld [vmem:[#allocation8 + $0x2d8] sm:$0xff]
    %v1752 = vld [vmem:[#allocation8 + $0x2e0] sm:$0xff]
    %v1753 = vld [vmem:[#allocation8 + $0x2e8] sm:$0xff]
    %v1754 = vld [vmem:[#allocation8 + $0x2f0] sm:$0xff]
    %v1755 = vld [vmem:[#allocation8 + $0x2f8] sm:$0xff]
    %v1756 = vld [vmem:[#allocation8 + $0x300] sm:$0xff]
    %v1757 = vld [vmem:[#allocation8 + $0x308] sm:$0xff]
    %v1758 = vld [vmem:[#allocation8 + $0x310] sm:$0xff]
    %v1759 = vld [vmem:[#allocation8 + $0x318] sm:$0xff]
    %v1760 = vld [vmem:[#allocation8 + $0x320] sm:$0xff]
    %v1761 = vld [vmem:[#allocation8 + $0x328] sm:$0xff]
    %v1762 = vld [vmem:[#allocation8 + $0x330] sm:$0xff]
    %v1763 = vld [vmem:[#allocation8 + $0x338] sm:$0xff]
    %v1764 = vld [vmem:[#allocation8 + $0x340] sm:$0xff]
    %v1765 = vld [vmem:[#allocation8 + $0x348] sm:$0xff]
    %v1766 = vld [vmem:[#allocation8 + $0x350] sm:$0xff]
    %v1767 = vld [vmem:[#allocation8 + $0x358] sm:$0xff]
    %v1768 = vld [vmem:[#allocation8 + $0x360] sm:$0xff]
    %v1769 = vld [vmem:[#allocation8 + $0x368] sm:$0xff]
    %v1770 = vld [vmem:[#allocation8 + $0x370] sm:$0xff]
    %v1771 = vld [vmem:[#allocation8 + $0x378] sm:$0xff]
    %v1772 = vld [vmem:[#allocation8 + $0x380] sm:$0xff]
    %v1773 = vld [vmem:[#allocation8 + $0x388] sm:$0xff]
    %v1774 = vld [vmem:[#allocation8 + $0x390] sm:$0xff]
    %v1775 = vld [vmem:[#allocation8 + $0x398] sm:$0xff]
    %v1776 = vld [vmem:[#allocation8 + $0x3a0] sm:$0xff]
    %v1777 = vld [vmem:[#allocation8 + $0x3a8] sm:$0xff]
    %v1778 = vld [vmem:[#allocation8 + $0x3b0] sm:$0xff]
    %v1779 = vld [vmem:[#allocation8 + $0x3b8] sm:$0xff]
    %v1780 = vld [vmem:[#allocation8 + $0x3c0] sm:$0xff]
    %v1781 = vld [vmem:[#allocation8 + $0x3c8] sm:$0xff]
    %v1782 = vld [vmem:[#allocation8 + $0x3d0] sm:$0xff]
    %v1783 = vld [vmem:[#allocation8 + $0x3d8] sm:$0xff]
    %v1784 = vld [vmem:[#allocation8 + $0x3e0] sm:$0xff]
    %v1785 = vld [vmem:[#allocation8 + $0x3e8] sm:$0xff]
    %v1786 = vld [vmem:[#allocation8 + $0x3f0] sm:$0xff]
    %v1787 = vld [vmem:[#allocation8 + $0x3f8] sm:$0xff]
    %v1788 = vld [vmem:[#allocation8 + $0x400] sm:$0xff]
    %v1789 = vld [vmem:[#allocation8 + $0x408] sm:$0xff]
    %v1790 = vld [vmem:[#allocation8 + $0x410] sm:$0xff]
    %v1791 = vld [vmem:[#allocation8 + $0x418] sm:$0xff]
    %v1792 = vld [vmem:[#allocation8 + $0x420] sm:$0xff]
    %v1793 = vld [vmem:[#allocation8 + $0x428] sm:$0xff]
    %v1794 = vld [vmem:[#allocation8 + $0x430] sm:$0xff]
    %v1795 = vld [vmem:[#allocation8 + $0x438] sm:$0xff]
    %v1796 = vld [vmem:[#allocation8 + $0x440] sm:$0xff]
    %v1797 = vld [vmem:[#allocation8 + $0x448] sm:$0xff]
    %v1798 = vld [vmem:[#allocation8 + $0x450] sm:$0xff]
    %v1799 = vld [vmem:[#allocation8 + $0x458] sm:$0xff]
    %v1800 = vld [vmem:[#allocation8 + $0x460] sm:$0xff]
    %v1801 = vld [vmem:[#allocation8 + $0x468] sm:$0xff]
    %v1802 = vld [vmem:[#allocation8 + $0x470] sm:$0xff]
    %v1803 = vld [vmem:[#allocation8 + $0x478] sm:$0xff]
    %v1804 = vld [vmem:[#allocation8 + $0x480] sm:$0xff]
    %v1805 = vld [vmem:[#allocation8 + $0x488] sm:$0xff]
    %v1806 = vld [vmem:[#allocation8 + $0x490] sm:$0xff]
    %v1807 = vld [vmem:[#allocation8 + $0x498] sm:$0xff]
    %v1808 = vld [vmem:[#allocation8 + $0x4a0] sm:$0xff]
    %v1809 = vld [vmem:[#allocation8 + $0x4a8] sm:$0xff]
    %v1810 = vld [vmem:[#allocation8 + $0x4b0] sm:$0xff]
    %v1811 = vld [vmem:[#allocation8 + $0x4b8] sm:$0xff]
    %v1812 = vld [vmem:[#allocation8 + $0x4c0] sm:$0xff]
    %v1813 = vld [vmem:[#allocation8 + $0x4c8] sm:$0xff]
    %v1814 = vld [vmem:[#allocation8 + $0x4d0] sm:$0xff]
    %v1815 = vld [vmem:[#allocation8 + $0x4d8] sm:$0xff]
    %v1816 = vld [vmem:[#allocation8 + $0x4e0] sm:$0xff]
    %v1817 = vld [vmem:[#allocation8 + $0x4e8] sm:$0xff]
    %v1818 = vld [vmem:[#allocation8 + $0x4f0] sm:$0xff]
    %v1819 = vld [vmem:[#allocation8 + $0x4f8] sm:$0xff]
    %v1820 = vld [vmem:[#allocation8 + $0x500] sm:$0xff]
    %v1821 = vld [vmem:[#allocation8 + $0x508] sm:$0xff]
    %v1822 = vld [vmem:[#allocation8 + $0x510] sm:$0xff]
    %v1823 = vld [vmem:[#allocation8 + $0x518] sm:$0xff]
    %v1824 = vld [vmem:[#allocation8 + $0x520] sm:$0xff]
    %v1825 = vld [vmem:[#allocation8 + $0x528] sm:$0xff]
    %v1826 = vld [vmem:[#allocation8 + $0x530] sm:$0xff]
    %v1827 = vld [vmem:[#allocation8 + $0x538] sm:$0xff]
    %v1828 = vld [vmem:[#allocation8 + $0x540] sm:$0xff]
    %v1829 = vld [vmem:[#allocation8 + $0x548] sm:$0xff]
    %v1830 = vld [vmem:[#allocation8 + $0x550] sm:$0xff]
    %v1831 = vld [vmem:[#allocation8 + $0x558] sm:$0xff]
    %v1832 = vld [vmem:[#allocation8 + $0x560] sm:$0xff]
    %v1833 = vld [vmem:[#allocation8 + $0x568] sm:$0xff]
    %v1834 = vld [vmem:[#allocation8 + $0x570] sm:$0xff]
    %v1835 = vld [vmem:[#allocation8 + $0x578] sm:$0xff]
    %v1836 = vld [vmem:[#allocation8 + $0x580] sm:$0xff]
    %v1837 = vld [vmem:[#allocation8 + $0x588] sm:$0xff]
    %v1838 = vld [vmem:[#allocation8 + $0x590] sm:$0xff]
    %v1839 = vld [vmem:[#allocation8 + $0x598] sm:$0xff]
    %v1840 = vld [vmem:[#allocation8 + $0x5a0] sm:$0xff]
    %v1841 = vld [vmem:[#allocation8 + $0x5a8] sm:$0xff]
    %v1842 = vld [vmem:[#allocation8 + $0x5b0] sm:$0xff]
    %v1843 = vld [vmem:[#allocation8 + $0x5b8] sm:$0xff]
    %v1844 = vld [vmem:[#allocation8 + $0x5c0] sm:$0xff]
    %v1845 = vld [vmem:[#allocation8 + $0x5c8] sm:$0xff]
    %v1846 = vld [vmem:[#allocation8 + $0x5d0] sm:$0xff]
    %v1847 = vld [vmem:[#allocation8 + $0x5d8] sm:$0xff]
    %v1848 = vld [vmem:[#allocation8 + $0x5e0] sm:$0xff]
    %v1849 = vld [vmem:[#allocation8 + $0x5e8] sm:$0xff]
    %v1850 = vld [vmem:[#allocation8 + $0x5f0] sm:$0xff]
    %v1851 = vld [vmem:[#allocation8 + $0x5f8] sm:$0xff]
    %v1852 = vld [vmem:[#allocation8 + $0x600] sm:$0xff]
    %v1853 = vld [vmem:[#allocation8 + $0x608] sm:$0xff]
    %v1854 = vld [vmem:[#allocation8 + $0x610] sm:$0xff]
    %v1855 = vld [vmem:[#allocation8 + $0x618] sm:$0xff]
    %v1856 = vld [vmem:[#allocation8 + $0x620] sm:$0xff]
    %v1857 = vld [vmem:[#allocation8 + $0x628] sm:$0xff]
    %v1858 = vld [vmem:[#allocation8 + $0x630] sm:$0xff]
    %v1859 = vld [vmem:[#allocation8 + $0x638] sm:$0xff]
    %v1860 = vld [vmem:[#allocation8 + $0x640] sm:$0xff]
    %v1861 = vld [vmem:[#allocation8 + $0x648] sm:$0xff]
    %v1862 = vld [vmem:[#allocation8 + $0x650] sm:$0xff]
    %v1863 = vld [vmem:[#allocation8 + $0x658] sm:$0xff]
    %v1864 = vld [vmem:[#allocation8 + $0x660] sm:$0xff]
    %v1865 = vld [vmem:[#allocation8 + $0x668] sm:$0xff]
    %v1866 = vld [vmem:[#allocation8 + $0x670] sm:$0xff]
    %v1867 = vld [vmem:[#allocation8 + $0x678] sm:$0xff]
    %v1868 = vld [vmem:[#allocation8 + $0x680] sm:$0xff]
    %v1869 = vld [vmem:[#allocation8 + $0x688] sm:$0xff]
    %v1870 = vld [vmem:[#allocation8 + $0x690] sm:$0xff]
    %v1871 = vld [vmem:[#allocation8 + $0x698] sm:$0xff]
    %v1872 = vld [vmem:[#allocation8 + $0x6a0] sm:$0xff]
    %v1873 = vld [vmem:[#allocation8 + $0x6a8] sm:$0xff]
    %v1874 = vld [vmem:[#allocation8 + $0x6b0] sm:$0xff]
    %v1875 = vld [vmem:[#allocation8 + $0x6b8] sm:$0xff]
    %v1876 = vld [vmem:[#allocation8 + $0x6c0] sm:$0xff]
    %v1877 = vld [vmem:[#allocation8 + $0x6c8] sm:$0xff]
    %v1878 = vld [vmem:[#allocation8 + $0x6d0] sm:$0xff]
    %v1879 = vld [vmem:[#allocation8 + $0x6d8] sm:$0xff]
    %v1880 = vld [vmem:[#allocation8 + $0x6e0] sm:$0xff]
    %v1881 = vld [vmem:[#allocation8 + $0x6e8] sm:$0xff]
    %v1882 = vld [vmem:[#allocation8 + $0x6f0] sm:$0xff]
    %v1883 = vld [vmem:[#allocation8 + $0x6f8] sm:$0xff]
    %v1884 = vld [vmem:[#allocation8 + $0x700] sm:$0xff]
    %v1885 = vld [vmem:[#allocation8 + $0x708] sm:$0xff]
    %v1886 = vld [vmem:[#allocation8 + $0x710] sm:$0xff]
    %v1887 = vld [vmem:[#allocation8 + $0x718] sm:$0xff]
    %v1888 = vld [vmem:[#allocation8 + $0x720] sm:$0xff]
    %v1889 = vld [vmem:[#allocation8 + $0x728] sm:$0xff]
    %v1890 = vld [vmem:[#allocation8 + $0x730] sm:$0xff]
    %v1891 = vld [vmem:[#allocation8 + $0x738] sm:$0xff]
    %v1892 = vld [vmem:[#allocation8 + $0x740] sm:$0xff]
    %v1893 = vld [vmem:[#allocation8 + $0x748] sm:$0xff]
    %v1894 = vld [vmem:[#allocation8 + $0x750] sm:$0xff]
    %v1895 = vld [vmem:[#allocation8 + $0x758] sm:$0xff]
    %v1896 = vld [vmem:[#allocation8 + $0x760] sm:$0xff]
    %v1897 = vld [vmem:[#allocation8 + $0x768] sm:$0xff]
    %v1898 = vld [vmem:[#allocation8 + $0x770] sm:$0xff]
    %v1899 = vld [vmem:[#allocation8 + $0x778] sm:$0xff]
    %v1900 = vld [vmem:[#allocation8 + $0x780] sm:$0xff]
    %v1901 = vld [vmem:[#allocation8 + $0x788] sm:$0xff]
    %v1902 = vld [vmem:[#allocation8 + $0x790] sm:$0xff]
    %v1903 = vld [vmem:[#allocation8 + $0x798] sm:$0xff]
    %v1904 = vld [vmem:[#allocation8 + $0x7a0] sm:$0xff]
    %v1905 = vld [vmem:[#allocation8 + $0x7a8] sm:$0xff]
    %v1906 = vld [vmem:[#allocation8 + $0x7b0] sm:$0xff]
    %v1907 = vld [vmem:[#allocation8 + $0x7b8] sm:$0xff]
    %v1908 = vld [vmem:[#allocation8 + $0x7c0] sm:$0xff]
    %v1909 = vld [vmem:[#allocation8 + $0x7c8] sm:$0xff]
    %v1910 = vld [vmem:[#allocation8 + $0x7d0] sm:$0xff]
    %v1911 = vld [vmem:[#allocation8 + $0x7d8] sm:$0xff]
    %v1912 = vld [vmem:[#allocation8 + $0x7e0] sm:$0xff]
    %v1913 = vld [vmem:[#allocation8 + $0x7e8] sm:$0xff]
    %v1914 = vld [vmem:[#allocation8 + $0x7f0] sm:$0xff]
    %v1915 = vld [vmem:[#allocation8 + $0x7f8] sm:$0xff]
    %v1916 = vld [vmem:[%s4] sm:$0xf]
    %v1918 = vlaneseq
    %v1919 = vshrl.u32 %v1918, 7
    %v1920 = vsub.s32 0, %v1919
    %v1921 = vrot.slane %v1916, %v1920
    %v1922 = vlaneseq
    %v1923 = vshrl.u32 %v1922, 7
    %v1924 = vsub.s32 1, %v1923
    %v1925 = vrot.slane %v1916, %v1924
    %v1926 = vlaneseq
    %v1927 = vshrl.u32 %v1926, 7
    %v1928 = vsub.s32 2, %v1927
    %v1929 = vrot.slane %v1916, %v1928
    %v1930 = vlaneseq
    %v1931 = vshrl.u32 %v1930, 7
    %v1932 = vsub.s32 3, %v1931
    %v1933 = vrot.slane %v1916, %v1932
    %v2194 = vunpack.c.l.b16 %v1660
    %v2195 = vunpack.c.h.b16 %v1660
    %v2196 = vunpack.c.l.b16 %v1661
    %v2197 = vunpack.c.h.b16 %v1661
    %v2198 = vunpack.c.l.b16 %v1662
    %v2199 = vunpack.c.h.b16 %v1662
    %v2200 = vunpack.c.l.b16 %v1663
    %v2201 = vunpack.c.h.b16 %v1663
    %v2202 = vunpack.c.l.b16 %v1664
    %v2203 = vunpack.c.h.b16 %v1664
    %v2204 = vunpack.c.l.b16 %v1665
    %v2205 = vunpack.c.h.b16 %v1665
    %v2206 = vunpack.c.l.b16 %v1666
    %v2207 = vunpack.c.h.b16 %v1666
    %v2208 = vunpack.c.l.b16 %v1667
    %v2209 = vunpack.c.h.b16 %v1667
    %v2210 = vunpack.c.l.b16 %v1668
    %v2211 = vunpack.c.h.b16 %v1668
    %v2212 = vunpack.c.l.b16 %v1669
    %v2213 = vunpack.c.h.b16 %v1669
    %v2214 = vunpack.c.l.b16 %v1670
    %v2215 = vunpack.c.h.b16 %v1670
    %v2216 = vunpack.c.l.b16 %v1671
    %v2217 = vunpack.c.h.b16 %v1671
    %v2218 = vunpack.c.l.b16 %v1672
    %v2219 = vunpack.c.h.b16 %v1672
    %v2220 = vunpack.c.l.b16 %v1673
    %v2221 = vunpack.c.h.b16 %v1673
    %v2222 = vunpack.c.l.b16 %v1674
    %v2223 = vunpack.c.h.b16 %v1674
    %v2224 = vunpack.c.l.b16 %v1675
    %v2225 = vunpack.c.h.b16 %v1675
    %v2226 = vunpack.c.l.b16 %v1676
    %v2227 = vunpack.c.h.b16 %v1676
    %v2228 = vunpack.c.l.b16 %v1677
    %v2229 = vunpack.c.h.b16 %v1677
    %v2230 = vunpack.c.l.b16 %v1678
    %v2231 = vunpack.c.h.b16 %v1678
    %v2232 = vunpack.c.l.b16 %v1679
    %v2233 = vunpack.c.h.b16 %v1679
    %v2234 = vunpack.c.l.b16 %v1680
    %v2235 = vunpack.c.h.b16 %v1680
    %v2236 = vunpack.c.l.b16 %v1681
    %v2237 = vunpack.c.h.b16 %v1681
    %v2238 = vunpack.c.l.b16 %v1682
    %v2239 = vunpack.c.h.b16 %v1682
    %v2240 = vunpack.c.l.b16 %v1683
    %v2241 = vunpack.c.h.b16 %v1683
    %v2242 = vunpack.c.l.b16 %v1684
    %v2243 = vunpack.c.h.b16 %v1684
    %v2244 = vunpack.c.l.b16 %v1685
    %v2245 = vunpack.c.h.b16 %v1685
    %v2246 = vunpack.c.l.b16 %v1686
    %v2247 = vunpack.c.h.b16 %v1686
    %v2248 = vunpack.c.l.b16 %v1687
    %v2249 = vunpack.c.h.b16 %v1687
    %v2250 = vunpack.c.l.b16 %v1688
    %v2251 = vunpack.c.h.b16 %v1688
    %v2252 = vunpack.c.l.b16 %v1689
    %v2253 = vunpack.c.h.b16 %v1689
    %v2254 = vunpack.c.l.b16 %v1690
    %v2255 = vunpack.c.h.b16 %v1690
    %v2256 = vunpack.c.l.b16 %v1691
    %v2257 = vunpack.c.h.b16 %v1691
    %v2258 = vunpack.c.l.b16 %v1692
    %v2259 = vunpack.c.h.b16 %v1692
    %v2260 = vunpack.c.l.b16 %v1693
    %v2261 = vunpack.c.h.b16 %v1693
    %v2262 = vunpack.c.l.b16 %v1694
    %v2263 = vunpack.c.h.b16 %v1694
    %v2264 = vunpack.c.l.b16 %v1695
    %v2265 = vunpack.c.h.b16 %v1695
    %v2266 = vunpack.c.l.b16 %v1696
    %v2267 = vunpack.c.h.b16 %v1696
    %v2268 = vunpack.c.l.b16 %v1697
    %v2269 = vunpack.c.h.b16 %v1697
    %v2270 = vunpack.c.l.b16 %v1698
    %v2271 = vunpack.c.h.b16 %v1698
    %v2272 = vunpack.c.l.b16 %v1699
    %v2273 = vunpack.c.h.b16 %v1699
    %v2274 = vunpack.c.l.b16 %v1700
    %v2275 = vunpack.c.h.b16 %v1700
    %v2276 = vunpack.c.l.b16 %v1701
    %v2277 = vunpack.c.h.b16 %v1701
    %v2278 = vunpack.c.l.b16 %v1702
    %v2279 = vunpack.c.h.b16 %v1702
    %v2280 = vunpack.c.l.b16 %v1703
    %v2281 = vunpack.c.h.b16 %v1703
    %v2282 = vunpack.c.l.b16 %v1704
    %v2283 = vunpack.c.h.b16 %v1704
    %v2284 = vunpack.c.l.b16 %v1705
    %v2285 = vunpack.c.h.b16 %v1705
    %v2286 = vunpack.c.l.b16 %v1706
    %v2287 = vunpack.c.h.b16 %v1706
    %v2288 = vunpack.c.l.b16 %v1707
    %v2289 = vunpack.c.h.b16 %v1707
    %v2290 = vunpack.c.l.b16 %v1708
    %v2291 = vunpack.c.h.b16 %v1708
    %v2292 = vunpack.c.l.b16 %v1709
    %v2293 = vunpack.c.h.b16 %v1709
    %v2294 = vunpack.c.l.b16 %v1710
    %v2295 = vunpack.c.h.b16 %v1710
    %v2296 = vunpack.c.l.b16 %v1711
    %v2297 = vunpack.c.h.b16 %v1711
    %v2298 = vunpack.c.l.b16 %v1712
    %v2299 = vunpack.c.h.b16 %v1712
    %v2300 = vunpack.c.l.b16 %v1713
    %v2301 = vunpack.c.h.b16 %v1713
    %v2302 = vunpack.c.l.b16 %v1714
    %v2303 = vunpack.c.h.b16 %v1714
    %v2304 = vunpack.c.l.b16 %v1715
    %v2305 = vunpack.c.h.b16 %v1715
    %v2306 = vunpack.c.l.b16 %v1716
    %v2307 = vunpack.c.h.b16 %v1716
    %v2308 = vunpack.c.l.b16 %v1717
    %v2309 = vunpack.c.h.b16 %v1717
    %v2310 = vunpack.c.l.b16 %v1718
    %v2311 = vunpack.c.h.b16 %v1718
    %v2312 = vunpack.c.l.b16 %v1719
    %v2313 = vunpack.c.h.b16 %v1719
    %v2314 = vunpack.c.l.b16 %v1720
    %v2315 = vunpack.c.h.b16 %v1720
    %v2316 = vunpack.c.l.b16 %v1721
    %v2317 = vunpack.c.h.b16 %v1721
    %v2318 = vunpack.c.l.b16 %v1722
    %v2319 = vunpack.c.h.b16 %v1722
    %v2320 = vunpack.c.l.b16 %v1723
    %v2321 = vunpack.c.h.b16 %v1723
    %v2322 = vunpack.c.l.b16 %v1724
    %v2323 = vunpack.c.h.b16 %v1724
    %v2324 = vunpack.c.l.b16 %v1725
    %v2325 = vunpack.c.h.b16 %v1725
    %v2326 = vunpack.c.l.b16 %v1726
    %v2327 = vunpack.c.h.b16 %v1726
    %v2328 = vunpack.c.l.b16 %v1727
    %v2329 = vunpack.c.h.b16 %v1727
    %v2330 = vunpack.c.l.b16 %v1728
    %v2331 = vunpack.c.h.b16 %v1728
    %v2332 = vunpack.c.l.b16 %v1729
    %v2333 = vunpack.c.h.b16 %v1729
    %v2334 = vunpack.c.l.b16 %v1730
    %v2335 = vunpack.c.h.b16 %v1730
    %v2336 = vunpack.c.l.b16 %v1731
    %v2337 = vunpack.c.h.b16 %v1731
    %v2338 = vunpack.c.l.b16 %v1732
    %v2339 = vunpack.c.h.b16 %v1732
    %v2340 = vunpack.c.l.b16 %v1733
    %v2341 = vunpack.c.h.b16 %v1733
    %v2342 = vunpack.c.l.b16 %v1734
    %v2343 = vunpack.c.h.b16 %v1734
    %v2344 = vunpack.c.l.b16 %v1735
    %v2345 = vunpack.c.h.b16 %v1735
    %v2346 = vunpack.c.l.b16 %v1736
    %v2347 = vunpack.c.h.b16 %v1736
    %v2348 = vunpack.c.l.b16 %v1737
    %v2349 = vunpack.c.h.b16 %v1737
    %v2350 = vunpack.c.l.b16 %v1738
    %v2351 = vunpack.c.h.b16 %v1738
    %v2352 = vunpack.c.l.b16 %v1739
    %v2353 = vunpack.c.h.b16 %v1739
    %v2354 = vunpack.c.l.b16 %v1740
    %v2355 = vunpack.c.h.b16 %v1740
    %v2356 = vunpack.c.l.b16 %v1741
    %v2357 = vunpack.c.h.b16 %v1741
    %v2358 = vunpack.c.l.b16 %v1742
    %v2359 = vunpack.c.h.b16 %v1742
    %v2360 = vunpack.c.l.b16 %v1743
    %v2361 = vunpack.c.h.b16 %v1743
    %v2362 = vunpack.c.l.b16 %v1744
    %v2363 = vunpack.c.h.b16 %v1744
    %v2364 = vunpack.c.l.b16 %v1745
    %v2365 = vunpack.c.h.b16 %v1745
    %v2366 = vunpack.c.l.b16 %v1746
    %v2367 = vunpack.c.h.b16 %v1746
    %v2368 = vunpack.c.l.b16 %v1747
    %v2369 = vunpack.c.h.b16 %v1747
    %v2370 = vunpack.c.l.b16 %v1748
    %v2371 = vunpack.c.h.b16 %v1748
    %v2372 = vunpack.c.l.b16 %v1749
    %v2373 = vunpack.c.h.b16 %v1749
    %v2374 = vunpack.c.l.b16 %v1750
    %v2375 = vunpack.c.h.b16 %v1750
    %v2376 = vunpack.c.l.b16 %v1751
    %v2377 = vunpack.c.h.b16 %v1751
    %v2378 = vunpack.c.l.b16 %v1752
    %v2379 = vunpack.c.h.b16 %v1752
    %v2380 = vunpack.c.l.b16 %v1753
    %v2381 = vunpack.c.h.b16 %v1753
    %v2382 = vunpack.c.l.b16 %v1754
    %v2383 = vunpack.c.h.b16 %v1754
    %v2384 = vunpack.c.l.b16 %v1755
    %v2385 = vunpack.c.h.b16 %v1755
    %v2386 = vunpack.c.l.b16 %v1756
    %v2387 = vunpack.c.h.b16 %v1756
    %v2388 = vunpack.c.l.b16 %v1757
    %v2389 = vunpack.c.h.b16 %v1757
    %v2390 = vunpack.c.l.b16 %v1758
    %v2391 = vunpack.c.h.b16 %v1758
    %v2392 = vunpack.c.l.b16 %v1759
    %v2393 = vunpack.c.h.b16 %v1759
    %v2394 = vunpack.c.l.b16 %v1760
    %v2395 = vunpack.c.h.b16 %v1760
    %v2396 = vunpack.c.l.b16 %v1761
    %v2397 = vunpack.c.h.b16 %v1761
    %v2398 = vunpack.c.l.b16 %v1762
    %v2399 = vunpack.c.h.b16 %v1762
    %v2400 = vunpack.c.l.b16 %v1763
    %v2401 = vunpack.c.h.b16 %v1763
    %v2402 = vunpack.c.l.b16 %v1764
    %v2403 = vunpack.c.h.b16 %v1764
    %v2404 = vunpack.c.l.b16 %v1765
    %v2405 = vunpack.c.h.b16 %v1765
    %v2406 = vunpack.c.l.b16 %v1766
    %v2407 = vunpack.c.h.b16 %v1766
    %v2408 = vunpack.c.l.b16 %v1767
    %v2409 = vunpack.c.h.b16 %v1767
    %v2410 = vunpack.c.l.b16 %v1768
    %v2411 = vunpack.c.h.b16 %v1768
    %v2412 = vunpack.c.l.b16 %v1769
    %v2413 = vunpack.c.h.b16 %v1769
    %v2414 = vunpack.c.l.b16 %v1770
    %v2415 = vunpack.c.h.b16 %v1770
    %v2416 = vunpack.c.l.b16 %v1771
    %v2417 = vunpack.c.h.b16 %v1771
    %v2418 = vunpack.c.l.b16 %v1772
    %v2419 = vunpack.c.h.b16 %v1772
    %v2420 = vunpack.c.l.b16 %v1773
    %v2421 = vunpack.c.h.b16 %v1773
    %v2422 = vunpack.c.l.b16 %v1774
    %v2423 = vunpack.c.h.b16 %v1774
    %v2424 = vunpack.c.l.b16 %v1775
    %v2425 = vunpack.c.h.b16 %v1775
    %v2426 = vunpack.c.l.b16 %v1776
    %v2427 = vunpack.c.h.b16 %v1776
    %v2428 = vunpack.c.l.b16 %v1777
    %v2429 = vunpack.c.h.b16 %v1777
    %v2430 = vunpack.c.l.b16 %v1778
    %v2431 = vunpack.c.h.b16 %v1778
    %v2432 = vunpack.c.l.b16 %v1779
    %v2433 = vunpack.c.h.b16 %v1779
    %v2434 = vunpack.c.l.b16 %v1780
    %v2435 = vunpack.c.h.b16 %v1780
    %v2436 = vunpack.c.l.b16 %v1781
    %v2437 = vunpack.c.h.b16 %v1781
    %v2438 = vunpack.c.l.b16 %v1782
    %v2439 = vunpack.c.h.b16 %v1782
    %v2440 = vunpack.c.l.b16 %v1783
    %v2441 = vunpack.c.h.b16 %v1783
    %v2442 = vunpack.c.l.b16 %v1784
    %v2443 = vunpack.c.h.b16 %v1784
    %v2444 = vunpack.c.l.b16 %v1785
    %v2445 = vunpack.c.h.b16 %v1785
    %v2446 = vunpack.c.l.b16 %v1786
    %v2447 = vunpack.c.h.b16 %v1786
    %v2448 = vunpack.c.l.b16 %v1787
    %v2449 = vunpack.c.h.b16 %v1787
    %v2450 = vunpack.c.l.b16 %v1788
    %v2451 = vunpack.c.h.b16 %v1788
    %v2452 = vunpack.c.l.b16 %v1789
    %v2453 = vunpack.c.h.b16 %v1789
    %v2454 = vunpack.c.l.b16 %v1790
    %v2455 = vunpack.c.h.b16 %v1790
    %v2456 = vunpack.c.l.b16 %v1791
    %v2457 = vunpack.c.h.b16 %v1791
    %v2458 = vunpack.c.l.b16 %v1792
    %v2459 = vunpack.c.h.b16 %v1792
    %v2460 = vunpack.c.l.b16 %v1793
    %v2461 = vunpack.c.h.b16 %v1793
    %v2462 = vunpack.c.l.b16 %v1794
    %v2463 = vunpack.c.h.b16 %v1794
    %v2464 = vunpack.c.l.b16 %v1795
    %v2465 = vunpack.c.h.b16 %v1795
    %v2466 = vunpack.c.l.b16 %v1796
    %v2467 = vunpack.c.h.b16 %v1796
    %v2468 = vunpack.c.l.b16 %v1797
    %v2469 = vunpack.c.h.b16 %v1797
    %v2470 = vunpack.c.l.b16 %v1798
    %v2471 = vunpack.c.h.b16 %v1798
    %v2472 = vunpack.c.l.b16 %v1799
    %v2473 = vunpack.c.h.b16 %v1799
    %v2474 = vunpack.c.l.b16 %v1800
    %v2475 = vunpack.c.h.b16 %v1800
    %v2476 = vunpack.c.l.b16 %v1801
    %v2477 = vunpack.c.h.b16 %v1801
    %v2478 = vunpack.c.l.b16 %v1802
    %v2479 = vunpack.c.h.b16 %v1802
    %v2480 = vunpack.c.l.b16 %v1803
    %v2481 = vunpack.c.h.b16 %v1803
    %v2482 = vunpack.c.l.b16 %v1804
    %v2483 = vunpack.c.h.b16 %v1804
    %v2484 = vunpack.c.l.b16 %v1805
    %v2485 = vunpack.c.h.b16 %v1805
    %v2486 = vunpack.c.l.b16 %v1806
    %v2487 = vunpack.c.h.b16 %v1806
    %v2488 = vunpack.c.l.b16 %v1807
    %v2489 = vunpack.c.h.b16 %v1807
    %v2490 = vunpack.c.l.b16 %v1808
    %v2491 = vunpack.c.h.b16 %v1808
    %v2492 = vunpack.c.l.b16 %v1809
    %v2493 = vunpack.c.h.b16 %v1809
    %v2494 = vunpack.c.l.b16 %v1810
    %v2495 = vunpack.c.h.b16 %v1810
    %v2496 = vunpack.c.l.b16 %v1811
    %v2497 = vunpack.c.h.b16 %v1811
    %v2498 = vunpack.c.l.b16 %v1812
    %v2499 = vunpack.c.h.b16 %v1812
    %v2500 = vunpack.c.l.b16 %v1813
    %v2501 = vunpack.c.h.b16 %v1813
    %v2502 = vunpack.c.l.b16 %v1814
    %v2503 = vunpack.c.h.b16 %v1814
    %v2504 = vunpack.c.l.b16 %v1815
    %v2505 = vunpack.c.h.b16 %v1815
    %v2506 = vunpack.c.l.b16 %v1816
    %v2507 = vunpack.c.h.b16 %v1816
    %v2508 = vunpack.c.l.b16 %v1817
    %v2509 = vunpack.c.h.b16 %v1817
    %v2510 = vunpack.c.l.b16 %v1818
    %v2511 = vunpack.c.h.b16 %v1818
    %v2512 = vunpack.c.l.b16 %v1819
    %v2513 = vunpack.c.h.b16 %v1819
    %v2514 = vunpack.c.l.b16 %v1820
    %v2515 = vunpack.c.h.b16 %v1820
    %v2516 = vunpack.c.l.b16 %v1821
    %v2517 = vunpack.c.h.b16 %v1821
    %v2518 = vunpack.c.l.b16 %v1822
    %v2519 = vunpack.c.h.b16 %v1822
    %v2520 = vunpack.c.l.b16 %v1823
    %v2521 = vunpack.c.h.b16 %v1823
    %v2522 = vunpack.c.l.b16 %v1824
    %v2523 = vunpack.c.h.b16 %v1824
    %v2524 = vunpack.c.l.b16 %v1825
    %v2525 = vunpack.c.h.b16 %v1825
    %v2526 = vunpack.c.l.b16 %v1826
    %v2527 = vunpack.c.h.b16 %v1826
    %v2528 = vunpack.c.l.b16 %v1827
    %v2529 = vunpack.c.h.b16 %v1827
    %v2530 = vunpack.c.l.b16 %v1828
    %v2531 = vunpack.c.h.b16 %v1828
    %v2532 = vunpack.c.l.b16 %v1829
    %v2533 = vunpack.c.h.b16 %v1829
    %v2534 = vunpack.c.l.b16 %v1830
    %v2535 = vunpack.c.h.b16 %v1830
    %v2536 = vunpack.c.l.b16 %v1831
    %v2537 = vunpack.c.h.b16 %v1831
    %v2538 = vunpack.c.l.b16 %v1832
    %v2539 = vunpack.c.h.b16 %v1832
    %v2540 = vunpack.c.l.b16 %v1833
    %v2541 = vunpack.c.h.b16 %v1833
    %v2542 = vunpack.c.l.b16 %v1834
    %v2543 = vunpack.c.h.b16 %v1834
    %v2544 = vunpack.c.l.b16 %v1835
    %v2545 = vunpack.c.h.b16 %v1835
    %v2546 = vunpack.c.l.b16 %v1836
    %v2547 = vunpack.c.h.b16 %v1836
    %v2548 = vunpack.c.l.b16 %v1837
    %v2549 = vunpack.c.h.b16 %v1837
    %v2550 = vunpack.c.l.b16 %v1838
    %v2551 = vunpack.c.h.b16 %v1838
    %v2552 = vunpack.c.l.b16 %v1839
    %v2553 = vunpack.c.h.b16 %v1839
    %v2554 = vunpack.c.l.b16 %v1840
    %v2555 = vunpack.c.h.b16 %v1840
    %v2556 = vunpack.c.l.b16 %v1841
    %v2557 = vunpack.c.h.b16 %v1841
    %v2558 = vunpack.c.l.b16 %v1842
    %v2559 = vunpack.c.h.b16 %v1842
    %v2560 = vunpack.c.l.b16 %v1843
    %v2561 = vunpack.c.h.b16 %v1843
    %v2562 = vunpack.c.l.b16 %v1844
    %v2563 = vunpack.c.h.b16 %v1844
    %v2564 = vunpack.c.l.b16 %v1845
    %v2565 = vunpack.c.h.b16 %v1845
    %v2566 = vunpack.c.l.b16 %v1846
    %v2567 = vunpack.c.h.b16 %v1846
    %v2568 = vunpack.c.l.b16 %v1847
    %v2569 = vunpack.c.h.b16 %v1847
    %v2570 = vunpack.c.l.b16 %v1848
    %v2571 = vunpack.c.h.b16 %v1848
    %v2572 = vunpack.c.l.b16 %v1849
    %v2573 = vunpack.c.h.b16 %v1849
    %v2574 = vunpack.c.l.b16 %v1850
    %v2575 = vunpack.c.h.b16 %v1850
    %v2576 = vunpack.c.l.b16 %v1851
    %v2577 = vunpack.c.h.b16 %v1851
    %v2578 = vunpack.c.l.b16 %v1852
    %v2579 = vunpack.c.h.b16 %v1852
    %v2580 = vunpack.c.l.b16 %v1853
    %v2581 = vunpack.c.h.b16 %v1853
    %v2582 = vunpack.c.l.b16 %v1854
    %v2583 = vunpack.c.h.b16 %v1854
    %v2584 = vunpack.c.l.b16 %v1855
    %v2585 = vunpack.c.h.b16 %v1855
    %v2586 = vunpack.c.l.b16 %v1856
    %v2587 = vunpack.c.h.b16 %v1856
    %v2588 = vunpack.c.l.b16 %v1857
    %v2589 = vunpack.c.h.b16 %v1857
    %v2590 = vunpack.c.l.b16 %v1858
    %v2591 = vunpack.c.h.b16 %v1858
    %v2592 = vunpack.c.l.b16 %v1859
    %v2593 = vunpack.c.h.b16 %v1859
    %v2594 = vunpack.c.l.b16 %v1860
    %v2595 = vunpack.c.h.b16 %v1860
    %v2596 = vunpack.c.l.b16 %v1861
    %v2597 = vunpack.c.h.b16 %v1861
    %v2598 = vunpack.c.l.b16 %v1862
    %v2599 = vunpack.c.h.b16 %v1862
    %v2600 = vunpack.c.l.b16 %v1863
    %v2601 = vunpack.c.h.b16 %v1863
    %v2602 = vunpack.c.l.b16 %v1864
    %v2603 = vunpack.c.h.b16 %v1864
    %v2604 = vunpack.c.l.b16 %v1865
    %v2605 = vunpack.c.h.b16 %v1865
    %v2606 = vunpack.c.l.b16 %v1866
    %v2607 = vunpack.c.h.b16 %v1866
    %v2608 = vunpack.c.l.b16 %v1867
    %v2609 = vunpack.c.h.b16 %v1867
    %v2610 = vunpack.c.l.b16 %v1868
    %v2611 = vunpack.c.h.b16 %v1868
    %v2612 = vunpack.c.l.b16 %v1869
    %v2613 = vunpack.c.h.b16 %v1869
    %v2614 = vunpack.c.l.b16 %v1870
    %v2615 = vunpack.c.h.b16 %v1870
    %v2616 = vunpack.c.l.b16 %v1871
    %v2617 = vunpack.c.h.b16 %v1871
    %v2618 = vunpack.c.l.b16 %v1872
    %v2619 = vunpack.c.h.b16 %v1872
    %v2620 = vunpack.c.l.b16 %v1873
    %v2621 = vunpack.c.h.b16 %v1873
    %v2622 = vunpack.c.l.b16 %v1874
    %v2623 = vunpack.c.h.b16 %v1874
    %v2624 = vunpack.c.l.b16 %v1875
    %v2625 = vunpack.c.h.b16 %v1875
    %v2626 = vunpack.c.l.b16 %v1876
    %v2627 = vunpack.c.h.b16 %v1876
    %v2628 = vunpack.c.l.b16 %v1877
    %v2629 = vunpack.c.h.b16 %v1877
    %v2630 = vunpack.c.l.b16 %v1878
    %v2631 = vunpack.c.h.b16 %v1878
    %v2632 = vunpack.c.l.b16 %v1879
    %v2633 = vunpack.c.h.b16 %v1879
    %v2634 = vunpack.c.l.b16 %v1880
    %v2635 = vunpack.c.h.b16 %v1880
    %v2636 = vunpack.c.l.b16 %v1881
    %v2637 = vunpack.c.h.b16 %v1881
    %v2638 = vunpack.c.l.b16 %v1882
    %v2639 = vunpack.c.h.b16 %v1882
    %v2640 = vunpack.c.l.b16 %v1883
    %v2641 = vunpack.c.h.b16 %v1883
    %v2642 = vunpack.c.l.b16 %v1884
    %v2643 = vunpack.c.h.b16 %v1884
    %v2644 = vunpack.c.l.b16 %v1885
    %v2645 = vunpack.c.h.b16 %v1885
    %v2646 = vunpack.c.l.b16 %v1886
    %v2647 = vunpack.c.h.b16 %v1886
    %v2648 = vunpack.c.l.b16 %v1887
    %v2649 = vunpack.c.h.b16 %v1887
    %v2650 = vunpack.c.l.b16 %v1888
    %v2651 = vunpack.c.h.b16 %v1888
    %v2652 = vunpack.c.l.b16 %v1889
    %v2653 = vunpack.c.h.b16 %v1889
    %v2654 = vunpack.c.l.b16 %v1890
    %v2655 = vunpack.c.h.b16 %v1890
    %v2656 = vunpack.c.l.b16 %v1891
    %v2657 = vunpack.c.h.b16 %v1891
    %v2658 = vunpack.c.l.b16 %v1892
    %v2659 = vunpack.c.h.b16 %v1892
    %v2660 = vunpack.c.l.b16 %v1893
    %v2661 = vunpack.c.h.b16 %v1893
    %v2662 = vunpack.c.l.b16 %v1894
    %v2663 = vunpack.c.h.b16 %v1894
    %v2664 = vunpack.c.l.b16 %v1895
    %v2665 = vunpack.c.h.b16 %v1895
    %v2666 = vunpack.c.l.b16 %v1896
    %v2667 = vunpack.c.h.b16 %v1896
    %v2668 = vunpack.c.l.b16 %v1897
    %v2669 = vunpack.c.h.b16 %v1897
    %v2670 = vunpack.c.l.b16 %v1898
    %v2671 = vunpack.c.h.b16 %v1898
    %v2672 = vunpack.c.l.b16 %v1899
    %v2673 = vunpack.c.h.b16 %v1899
    %v2674 = vunpack.c.l.b16 %v1900
    %v2675 = vunpack.c.h.b16 %v1900
    %v2676 = vunpack.c.l.b16 %v1901
    %v2677 = vunpack.c.h.b16 %v1901
    %v2678 = vunpack.c.l.b16 %v1902
    %v2679 = vunpack.c.h.b16 %v1902
    %v2680 = vunpack.c.l.b16 %v1903
    %v2681 = vunpack.c.h.b16 %v1903
    %v2682 = vunpack.c.l.b16 %v1904
    %v2683 = vunpack.c.h.b16 %v1904
    %v2684 = vunpack.c.l.b16 %v1905
    %v2685 = vunpack.c.h.b16 %v1905
    %v2686 = vunpack.c.l.b16 %v1906
    %v2687 = vunpack.c.h.b16 %v1906
    %v2688 = vunpack.c.l.b16 %v1907
    %v2689 = vunpack.c.h.b16 %v1907
    %v2690 = vunpack.c.l.b16 %v1908
    %v2691 = vunpack.c.h.b16 %v1908
    %v2692 = vunpack.c.l.b16 %v1909
    %v2693 = vunpack.c.h.b16 %v1909
    %v2694 = vunpack.c.l.b16 %v1910
    %v2695 = vunpack.c.h.b16 %v1910
    %v2696 = vunpack.c.l.b16 %v1911
    %v2697 = vunpack.c.h.b16 %v1911
    %v2698 = vunpack.c.l.b16 %v1912
    %v2699 = vunpack.c.h.b16 %v1912
    %v2700 = vunpack.c.l.b16 %v1913
    %v2701 = vunpack.c.h.b16 %v1913
    %v2702 = vunpack.c.l.b16 %v1914
    %v2703 = vunpack.c.h.b16 %v1914
    %v2704 = vunpack.c.l.b16 %v1915
    %v2705 = vunpack.c.h.b16 %v1915
    %v2706 = vpack.c.b16 %v2198, %v2194
    %v2707 = vpack.c.b16 %v2199, %v2195
    %v2708 = vpack.c.b16 %v2200, %v2196
    %v2709 = vpack.c.b16 %v2201, %v2197
    %v2710 = vpack.c.b16 %v2206, %v2202
    %v2711 = vpack.c.b16 %v2207, %v2203
    %v2712 = vpack.c.b16 %v2208, %v2204
    %v2713 = vpack.c.b16 %v2209, %v2205
    %v2714 = vpack.c.b16 %v2214, %v2210
    %v2715 = vpack.c.b16 %v2215, %v2211
    %v2716 = vpack.c.b16 %v2216, %v2212
    %v2717 = vpack.c.b16 %v2217, %v2213
    %v2718 = vpack.c.b16 %v2222, %v2218
    %v2719 = vpack.c.b16 %v2223, %v2219
    %v2720 = vpack.c.b16 %v2224, %v2220
    %v2721 = vpack.c.b16 %v2225, %v2221
    %v2722 = vpack.c.b16 %v2230, %v2226
    %v2723 = vpack.c.b16 %v2231, %v2227
    %v2724 = vpack.c.b16 %v2232, %v2228
    %v2725 = vpack.c.b16 %v2233, %v2229
    %v2726 = vpack.c.b16 %v2238, %v2234
    %v2727 = vpack.c.b16 %v2239, %v2235
    %v2728 = vpack.c.b16 %v2240, %v2236
    %v2729 = vpack.c.b16 %v2241, %v2237
    %v2730 = vpack.c.b16 %v2246, %v2242
    %v2731 = vpack.c.b16 %v2247, %v2243
    %v2732 = vpack.c.b16 %v2248, %v2244
    %v2733 = vpack.c.b16 %v2249, %v2245
    %v2734 = vpack.c.b16 %v2254, %v2250
    %v2735 = vpack.c.b16 %v2255, %v2251
    %v2736 = vpack.c.b16 %v2256, %v2252
    %v2737 = vpack.c.b16 %v2257, %v2253
    %v2738 = vpack.c.b16 %v2262, %v2258
    %v2739 = vpack.c.b16 %v2263, %v2259
    %v2740 = vpack.c.b16 %v2264, %v2260
    %v2741 = vpack.c.b16 %v2265, %v2261
    %v2742 = vpack.c.b16 %v2270, %v2266
    %v2743 = vpack.c.b16 %v2271, %v2267
    %v2744 = vpack.c.b16 %v2272, %v2268
    %v2745 = vpack.c.b16 %v2273, %v2269
    %v2746 = vpack.c.b16 %v2278, %v2274
    %v2747 = vpack.c.b16 %v2279, %v2275
    %v2748 = vpack.c.b16 %v2280, %v2276
    %v2749 = vpack.c.b16 %v2281, %v2277
    %v2750 = vpack.c.b16 %v2286, %v2282
    %v2751 = vpack.c.b16 %v2287, %v2283
    %v2752 = vpack.c.b16 %v2288, %v2284
    %v2753 = vpack.c.b16 %v2289, %v2285
    %v2754 = vpack.c.b16 %v2294, %v2290
    %v2755 = vpack.c.b16 %v2295, %v2291
    %v2756 = vpack.c.b16 %v2296, %v2292
    %v2757 = vpack.c.b16 %v2297, %v2293
    %v2758 = vpack.c.b16 %v2302, %v2298
    %v2759 = vpack.c.b16 %v2303, %v2299
    %v2760 = vpack.c.b16 %v2304, %v2300
    %v2761 = vpack.c.b16 %v2305, %v2301
    %v2762 = vpack.c.b16 %v2310, %v2306
    %v2763 = vpack.c.b16 %v2311, %v2307
    %v2764 = vpack.c.b16 %v2312, %v2308
    %v2765 = vpack.c.b16 %v2313, %v2309
    %v2766 = vpack.c.b16 %v2318, %v2314
    %v2767 = vpack.c.b16 %v2319, %v2315
    %v2768 = vpack.c.b16 %v2320, %v2316
    %v2769 = vpack.c.b16 %v2321, %v2317
    %v2770 = vpack.c.b16 %v2326, %v2322
    %v2771 = vpack.c.b16 %v2327, %v2323
    %v2772 = vpack.c.b16 %v2328, %v2324
    %v2773 = vpack.c.b16 %v2329, %v2325
    %v2774 = vpack.c.b16 %v2334, %v2330
    %v2775 = vpack.c.b16 %v2335, %v2331
    %v2776 = vpack.c.b16 %v2336, %v2332
    %v2777 = vpack.c.b16 %v2337, %v2333
    %v2778 = vpack.c.b16 %v2342, %v2338
    %v2779 = vpack.c.b16 %v2343, %v2339
    %v2780 = vpack.c.b16 %v2344, %v2340
    %v2781 = vpack.c.b16 %v2345, %v2341
    %v2782 = vpack.c.b16 %v2350, %v2346
    %v2783 = vpack.c.b16 %v2351, %v2347
    %v2784 = vpack.c.b16 %v2352, %v2348
    %v2785 = vpack.c.b16 %v2353, %v2349
    %v2786 = vpack.c.b16 %v2358, %v2354
    %v2787 = vpack.c.b16 %v2359, %v2355
    %v2788 = vpack.c.b16 %v2360, %v2356
    %v2789 = vpack.c.b16 %v2361, %v2357
    %v2790 = vpack.c.b16 %v2366, %v2362
    %v2791 = vpack.c.b16 %v2367, %v2363
    %v2792 = vpack.c.b16 %v2368, %v2364
    %v2793 = vpack.c.b16 %v2369, %v2365
    %v2794 = vpack.c.b16 %v2374, %v2370
    %v2795 = vpack.c.b16 %v2375, %v2371
    %v2796 = vpack.c.b16 %v2376, %v2372
    %v2797 = vpack.c.b16 %v2377, %v2373
    %v2798 = vpack.c.b16 %v2382, %v2378
    %v2799 = vpack.c.b16 %v2383, %v2379
    %v2800 = vpack.c.b16 %v2384, %v2380
    %v2801 = vpack.c.b16 %v2385, %v2381
    %v2802 = vpack.c.b16 %v2390, %v2386
    %v2803 = vpack.c.b16 %v2391, %v2387
    %v2804 = vpack.c.b16 %v2392, %v2388
    %v2805 = vpack.c.b16 %v2393, %v2389
    %v2806 = vpack.c.b16 %v2398, %v2394
    %v2807 = vpack.c.b16 %v2399, %v2395
    %v2808 = vpack.c.b16 %v2400, %v2396
    %v2809 = vpack.c.b16 %v2401, %v2397
    %v2810 = vpack.c.b16 %v2406, %v2402
    %v2811 = vpack.c.b16 %v2407, %v2403
    %v2812 = vpack.c.b16 %v2408, %v2404
    %v2813 = vpack.c.b16 %v2409, %v2405
    %v2814 = vpack.c.b16 %v2414, %v2410
    %v2815 = vpack.c.b16 %v2415, %v2411
    %v2816 = vpack.c.b16 %v2416, %v2412
    %v2817 = vpack.c.b16 %v2417, %v2413
    %v2818 = vpack.c.b16 %v2422, %v2418
    %v2819 = vpack.c.b16 %v2423, %v2419
    %v2820 = vpack.c.b16 %v2424, %v2420
    %v2821 = vpack.c.b16 %v2425, %v2421
    %v2822 = vpack.c.b16 %v2430, %v2426
    %v2823 = vpack.c.b16 %v2431, %v2427
    %v2824 = vpack.c.b16 %v2432, %v2428
    %v2825 = vpack.c.b16 %v2433, %v2429
    %v2826 = vpack.c.b16 %v2438, %v2434
    %v2827 = vpack.c.b16 %v2439, %v2435
    %v2828 = vpack.c.b16 %v2440, %v2436
    %v2829 = vpack.c.b16 %v2441, %v2437
    %v2830 = vpack.c.b16 %v2446, %v2442
    %v2831 = vpack.c.b16 %v2447, %v2443
    %v2832 = vpack.c.b16 %v2448, %v2444
    %v2833 = vpack.c.b16 %v2449, %v2445
    %v2834 = vpack.c.b16 %v2454, %v2450
    %v2835 = vpack.c.b16 %v2455, %v2451
    %v2836 = vpack.c.b16 %v2456, %v2452
    %v2837 = vpack.c.b16 %v2457, %v2453
    %v2838 = vpack.c.b16 %v2462, %v2458
    %v2839 = vpack.c.b16 %v2463, %v2459
    %v2840 = vpack.c.b16 %v2464, %v2460
    %v2841 = vpack.c.b16 %v2465, %v2461
    %v2842 = vpack.c.b16 %v2470, %v2466
    %v2843 = vpack.c.b16 %v2471, %v2467
    %v2844 = vpack.c.b16 %v2472, %v2468
    %v2845 = vpack.c.b16 %v2473, %v2469
    %v2846 = vpack.c.b16 %v2478, %v2474
    %v2847 = vpack.c.b16 %v2479, %v2475
    %v2848 = vpack.c.b16 %v2480, %v2476
    %v2849 = vpack.c.b16 %v2481, %v2477
    %v2850 = vpack.c.b16 %v2486, %v2482
    %v2851 = vpack.c.b16 %v2487, %v2483
    %v2852 = vpack.c.b16 %v2488, %v2484
    %v2853 = vpack.c.b16 %v2489, %v2485
    %v2854 = vpack.c.b16 %v2494, %v2490
    %v2855 = vpack.c.b16 %v2495, %v2491
    %v2856 = vpack.c.b16 %v2496, %v2492
    %v2857 = vpack.c.b16 %v2497, %v2493
    %v2858 = vpack.c.b16 %v2502, %v2498
    %v2859 = vpack.c.b16 %v2503, %v2499
    %v2860 = vpack.c.b16 %v2504, %v2500
    %v2861 = vpack.c.b16 %v2505, %v2501
    %v2862 = vpack.c.b16 %v2510, %v2506
    %v2863 = vpack.c.b16 %v2511, %v2507
    %v2864 = vpack.c.b16 %v2512, %v2508
    %v2865 = vpack.c.b16 %v2513, %v2509
    %v2866 = vpack.c.b16 %v2518, %v2514
    %v2867 = vpack.c.b16 %v2519, %v2515
    %v2868 = vpack.c.b16 %v2520, %v2516
    %v2869 = vpack.c.b16 %v2521, %v2517
    %v2870 = vpack.c.b16 %v2526, %v2522
    %v2871 = vpack.c.b16 %v2527, %v2523
    %v2872 = vpack.c.b16 %v2528, %v2524
    %v2873 = vpack.c.b16 %v2529, %v2525
    %v2874 = vpack.c.b16 %v2534, %v2530
    %v2875 = vpack.c.b16 %v2535, %v2531
    %v2876 = vpack.c.b16 %v2536, %v2532
    %v2877 = vpack.c.b16 %v2537, %v2533
    %v2878 = vpack.c.b16 %v2542, %v2538
    %v2879 = vpack.c.b16 %v2543, %v2539
    %v2880 = vpack.c.b16 %v2544, %v2540
    %v2881 = vpack.c.b16 %v2545, %v2541
    %v2882 = vpack.c.b16 %v2550, %v2546
    %v2883 = vpack.c.b16 %v2551, %v2547
    %v2884 = vpack.c.b16 %v2552, %v2548
    %v2885 = vpack.c.b16 %v2553, %v2549
    %v2886 = vpack.c.b16 %v2558, %v2554
    %v2887 = vpack.c.b16 %v2559, %v2555
    %v2888 = vpack.c.b16 %v2560, %v2556
    %v2889 = vpack.c.b16 %v2561, %v2557
    %v2890 = vpack.c.b16 %v2566, %v2562
    %v2891 = vpack.c.b16 %v2567, %v2563
    %v2892 = vpack.c.b16 %v2568, %v2564
    %v2893 = vpack.c.b16 %v2569, %v2565
    %v2894 = vpack.c.b16 %v2574, %v2570
    %v2895 = vpack.c.b16 %v2575, %v2571
    %v2896 = vpack.c.b16 %v2576, %v2572
    %v2897 = vpack.c.b16 %v2577, %v2573
    %v2898 = vpack.c.b16 %v2582, %v2578
    %v2899 = vpack.c.b16 %v2583, %v2579
    %v2900 = vpack.c.b16 %v2584, %v2580
    %v2901 = vpack.c.b16 %v2585, %v2581
    %v2902 = vpack.c.b16 %v2590, %v2586
    %v2903 = vpack.c.b16 %v2591, %v2587
    %v2904 = vpack.c.b16 %v2592, %v2588
    %v2905 = vpack.c.b16 %v2593, %v2589
    %v2906 = vpack.c.b16 %v2598, %v2594
    %v2907 = vpack.c.b16 %v2599, %v2595
    %v2908 = vpack.c.b16 %v2600, %v2596
    %v2909 = vpack.c.b16 %v2601, %v2597
    %v2910 = vpack.c.b16 %v2606, %v2602
    %v2911 = vpack.c.b16 %v2607, %v2603
    %v2912 = vpack.c.b16 %v2608, %v2604
    %v2913 = vpack.c.b16 %v2609, %v2605
    %v2914 = vpack.c.b16 %v2614, %v2610
    %v2915 = vpack.c.b16 %v2615, %v2611
    %v2916 = vpack.c.b16 %v2616, %v2612
    %v2917 = vpack.c.b16 %v2617, %v2613
    %v2918 = vpack.c.b16 %v2622, %v2618
    %v2919 = vpack.c.b16 %v2623, %v2619
    %v2920 = vpack.c.b16 %v2624, %v2620
    %v2921 = vpack.c.b16 %v2625, %v2621
    %v2922 = vpack.c.b16 %v2630, %v2626
    %v2923 = vpack.c.b16 %v2631, %v2627
    %v2924 = vpack.c.b16 %v2632, %v2628
    %v2925 = vpack.c.b16 %v2633, %v2629
    %v2926 = vpack.c.b16 %v2638, %v2634
    %v2927 = vpack.c.b16 %v2639, %v2635
    %v2928 = vpack.c.b16 %v2640, %v2636
    %v2929 = vpack.c.b16 %v2641, %v2637
    %v2930 = vpack.c.b16 %v2646, %v2642
    %v2931 = vpack.c.b16 %v2647, %v2643
    %v2932 = vpack.c.b16 %v2648, %v2644
    %v2933 = vpack.c.b16 %v2649, %v2645
    %v2934 = vpack.c.b16 %v2654, %v2650
    %v2935 = vpack.c.b16 %v2655, %v2651
    %v2936 = vpack.c.b16 %v2656, %v2652
    %v2937 = vpack.c.b16 %v2657, %v2653
    %v2938 = vpack.c.b16 %v2662, %v2658
    %v2939 = vpack.c.b16 %v2663, %v2659
    %v2940 = vpack.c.b16 %v2664, %v2660
    %v2941 = vpack.c.b16 %v2665, %v2661
    %v2942 = vpack.c.b16 %v2670, %v2666
    %v2943 = vpack.c.b16 %v2671, %v2667
    %v2944 = vpack.c.b16 %v2672, %v2668
    %v2945 = vpack.c.b16 %v2673, %v2669
    %v2946 = vpack.c.b16 %v2678, %v2674
    %v2947 = vpack.c.b16 %v2679, %v2675
    %v2948 = vpack.c.b16 %v2680, %v2676
    %v2949 = vpack.c.b16 %v2681, %v2677
    %v2950 = vpack.c.b16 %v2686, %v2682
    %v2951 = vpack.c.b16 %v2687, %v2683
    %v2952 = vpack.c.b16 %v2688, %v2684
    %v2953 = vpack.c.b16 %v2689, %v2685
    %v2954 = vpack.c.b16 %v2694, %v2690
    %v2955 = vpack.c.b16 %v2695, %v2691
    %v2956 = vpack.c.b16 %v2696, %v2692
    %v2957 = vpack.c.b16 %v2697, %v2693
    %v2958 = vpack.c.b16 %v2702, %v2698
    %v2959 = vpack.c.b16 %v2703, %v2699
    %v2960 = vpack.c.b16 %v2704, %v2700
    %v2961 = vpack.c.b16 %v2705, %v2701
    %3218 = vmatprep.subr.bf16.mxu0 %v2707
    %3219 = vmatpush1.bf16.msra.mxu0 %v2706
    %3220 = vmatprep.subr.bf16.mxu0 %v2711
    %3221 = vmatpush1.bf16.msra.mxu0 %v2710
    %3222 = vmatprep.subr.bf16.mxu0 %v2715
    %3223 = vmatpush1.bf16.msra.mxu0 %v2714
    %3224 = vmatprep.subr.bf16.mxu0 %v2719
    %3225 = vmatpush1.bf16.msra.mxu0 %v2718
    %3226 = vmatprep.subr.bf16.mxu0 %v2723
    %3227 = vmatpush1.bf16.msra.mxu0 %v2722
    %3228 = vmatprep.subr.bf16.mxu0 %v2727
    %3229 = vmatpush1.bf16.msra.mxu0 %v2726
    %3230 = vmatprep.subr.bf16.mxu0 %v2731
    %3231 = vmatpush1.bf16.msra.mxu0 %v2730
    %3232 = vmatprep.subr.bf16.mxu0 %v2735
    %3233 = vmatpush1.bf16.msra.mxu0 %v2734
    %3234 = vmatprep.subr.bf16.mxu0 %v2739
    %3235 = vmatpush1.bf16.msra.mxu0 %v2738
    %3236 = vmatprep.subr.bf16.mxu0 %v2743
    %3237 = vmatpush1.bf16.msra.mxu0 %v2742
    %3238 = vmatprep.subr.bf16.mxu0 %v2747
    %3239 = vmatpush1.bf16.msra.mxu0 %v2746
    %3240 = vmatprep.subr.bf16.mxu0 %v2751
    %3241 = vmatpush1.bf16.msra.mxu0 %v2750
    %3242 = vmatprep.subr.bf16.mxu0 %v2755
    %3243 = vmatpush1.bf16.msra.mxu0 %v2754
    %3244 = vmatprep.subr.bf16.mxu0 %v2759
    %3245 = vmatpush1.bf16.msra.mxu0 %v2758
    %3246 = vmatprep.subr.bf16.mxu0 %v2763
    %3247 = vmatpush1.bf16.msra.mxu0 %v2762
    %3248 = vmatprep.subr.bf16.mxu0 %v2767
    %3249 = vmatpush1.bf16.msra.mxu0 %v2766
    %3250 = vmatprep.mubr.bf16.mxu0 %v1597
    %3251 = vmatmul.mubr.bf16.gmra.mrb[0].mxu0 %v1596
    %v3252 = vpop.f32.mrb[0].mxu0
    %v3253 = vadd.f32 %v1921, %v3252
    %v3254 = vpop.f32.mrb[0].mxu0
    %v3255 = vadd.f32 %v1925, %v3254
    %v3256 = vpop.f32.mrb[0].mxu0
    %v3257 = vadd.f32 %v1921, %v3256
    %v3258 = vpop.f32.mrb[0].mxu0
    %v3259 = vadd.f32 %v1925, %v3258
    %3260 = vmatprep.mubr.bf16.mxu0 %v1605
    %3261 = vmatmul.mubr.bf16.gmra.mrb[0].mxu0 %v1604
    %v3262 = vpop.f32.mrb[0].mxu0
    %v3263 = vadd.f32 %v1921, %v3262
    %v3264 = vpop.f32.mrb[0].mxu0
    %v3265 = vadd.f32 %v1925, %v3264
    %v3266 = vpop.f32.mrb[0].mxu0
    %v3267 = vadd.f32 %v1921, %v3266
    %v3268 = vpop.f32.mrb[0].mxu0
    %v3269 = vadd.f32 %v1925, %v3268
    %3270 = vmatprep.mubr.bf16.mxu0 %v1613
    %3271 = vmatmul.mubr.bf16.gmra.mrb[0].mxu0 %v1612
    %v3272 = vpop.f32.mrb[0].mxu0
    %v3273 = vadd.f32 %v1921, %v3272
    %v3274 = vpop.f32.mrb[0].mxu0
    %v3275 = vadd.f32 %v1925, %v3274
    %v3276 = vpop.f32.mrb[0].mxu0
    %v3277 = vadd.f32 %v1921, %v3276
    %v3278 = vpop.f32.mrb[0].mxu0
    %v3279 = vadd.f32 %v1925, %v3278
    %3280 = vmatprep.mubr.bf16.mxu0 %v1621
    %3281 = vmatmul.mubr.bf16.gmra.mrb[0].mxu0 %v1620
    %v3282 = vpop.f32.mrb[0].mxu0
    %v3283 = vadd.f32 %v1921, %v3282
    %v3284 = vpop.f32.mrb[0].mxu0
    %v3285 = vadd.f32 %v1925, %v3284
    %v3286 = vpop.f32.mrb[0].mxu0
    %v3287 = vadd.f32 %v1921, %v3286
    %v3288 = vpop.f32.mrb[0].mxu0
    %v3289 = vadd.f32 %v1925, %v3288
    %3290 = vmatprep.mubr.bf16.mxu0 %v1629
    %3291 = vmatmul.mubr.bf16.gmra.mrb[0].mxu0 %v1628
    %v3292 = vpop.f32.mrb[0].mxu0
    %v3293 = vadd.f32 %v1921, %v3292
    %v3294 = vpop.f32.mrb[0].mxu0
    %v3295 = vadd.f32 %v1925, %v3294
    %v3296 = vpop.f32.mrb[0].mxu0
    %v3297 = vadd.f32 %v1921, %v3296
    %v3298 = vpop.f32.mrb[0].mxu0
    %v3299 = vadd.f32 %v1925, %v3298
    %3300 = vmatprep.mubr.bf16.mxu0 %v1637
    %3301 = vmatmul.mubr.bf16.gmra.mrb[0].mxu0 %v1636
    %v3302 = vpop.f32.mrb[0].mxu0
    %v3303 = vadd.f32 %v1921, %v3302
    %v3304 = vpop.f32.mrb[0].mxu0
    %v3305 = vadd.f32 %v1925, %v3304
    %v3306 = vpop.f32.mrb[0].mxu0
    %v3307 = vadd.f32 %v1921, %v3306
    %v3308 = vpop.f32.mrb[0].mxu0
    %v3309 = vadd.f32 %v1925, %v3308
    %3310 = vmatprep.mubr.bf16.mxu0 %v1645
    %3311 = vmatmul.mubr.bf16.gmra.mrb[0].mxu0 %v1644
    %v3312 = vpop.f32.mrb[0].mxu0
    %v3313 = vadd.f32 %v1921, %v3312
    %v3314 = vpop.f32.mrb[0].mxu0
    %v3315 = vadd.f32 %v1925, %v3314
    %v3316 = vpop.f32.mrb[0].mxu0
    %v3317 = vadd.f32 %v1921, %v3316
    %v3318 = vpop.f32.mrb[0].mxu0
    %v3319 = vadd.f32 %v1925, %v3318
    %3320 = vmatprep.mubr.bf16.mxu0 %v1653
    %3321 = vmatmul.mubr.bf16.gmra.mrb[0].mxu0 %v1652
    %v3322 = vpop.f32.mrb[0].mxu0
    %v3323 = vadd.f32 %v1921, %v3322
    %v3324 = vpop.f32.mrb[0].mxu0
    %v3325 = vadd.f32 %v1925, %v3324
    %v3326 = vpop.f32.mrb[0].mxu0
    %v3327 = vadd.f32 %v1921, %v3326
    %v3328 = vpop.f32.mrb[0].mxu0
    %v3329 = vadd.f32 %v1925, %v3328
    %3330 = vdwg.mxu0
    %3331 = vmatprep.subr.bf16.mxu0 %v2771
    %3332 = vmatpush1.bf16.msra.mxu0 %v2770
    %3333 = vmatprep.subr.bf16.mxu0 %v2775
    %3334 = vmatpush1.bf16.msra.mxu0 %v2774
    %3335 = vmatprep.subr.bf16.mxu0 %v2779
    %3336 = vmatpush1.bf16.msra.mxu0 %v2778
    %3337 = vmatprep.subr.bf16.mxu0 %v2783
    %3338 = vmatpush1.bf16.msra.mxu0 %v2782
    %3339 = vmatprep.subr.bf16.mxu0 %v2787
    %3340 = vmatpush1.bf16.msra.mxu0 %v2786
    %3341 = vmatprep.subr.bf16.mxu0 %v2791
    %3342 = vmatpush1.bf16.msra.mxu0 %v2790
    %3343 = vmatprep.subr.bf16.mxu0 %v2795
    %3344 = vmatpush1.bf16.msra.mxu0 %v2794
    %3345 = vmatprep.subr.bf16.mxu0 %v2799
    %3346 = vmatpush1.bf16.msra.mxu0 %v2798
    %3347 = vmatprep.subr.bf16.mxu0 %v2803
    %3348 = vmatpush1.bf16.msra.mxu0 %v2802
    %3349 = vmatprep.subr.bf16.mxu0 %v2807
    %3350 = vmatpush1.bf16.msra.mxu0 %v2806
    %3351 = vmatprep.subr.bf16.mxu0 %v2811
    %3352 = vmatpush1.bf16.msra.mxu0 %v2810
    %3353 = vmatprep.subr.bf16.mxu0 %v2815
    %3354 = vmatpush1.bf16.msra.mxu0 %v2814
    %3355 = vmatprep.subr.bf16.mxu0 %v2819
    %3356 = vmatpush1.bf16.msra.mxu0 %v2818
    %3357 = vmatprep.subr.bf16.mxu0 %v2823
    %3358 = vmatpush1.bf16.msra.mxu0 %v2822
    %3359 = vmatprep.subr.bf16.mxu0 %v2827
    %3360 = vmatpush1.bf16.msra.mxu0 %v2826
    %3361 = vmatprep.subr.bf16.mxu0 %v2831
    %3362 = vmatpush1.bf16.msra.mxu0 %v2830
    %3363 = vmatprep.mubr.bf16.mxu0 %v1599
    %3364 = vmatmul.mubr.bf16.gmra.mrb[0].mxu0 %v1598
    %v3365 = vpop.f32.mrb[0].mxu0
    %v3366 = vadd.f32 %v3253, %v3365
    %v3367 = vpop.f32.mrb[0].mxu0
    %v3368 = vadd.f32 %v3255, %v3367
    %v3369 = vpop.f32.mrb[0].mxu0
    %v3370 = vadd.f32 %v3257, %v3369
    %v3371 = vpop.f32.mrb[0].mxu0
    %v3372 = vadd.f32 %v3259, %v3371
    %3373 = vmatprep.mubr.bf16.mxu0 %v1607
    %3374 = vmatmul.mubr.bf16.gmra.mrb[0].mxu0 %v1606
    %v3375 = vpop.f32.mrb[0].mxu0
    %v3376 = vadd.f32 %v3263, %v3375
    %v3377 = vpop.f32.mrb[0].mxu0
    %v3378 = vadd.f32 %v3265, %v3377
    %v3379 = vpop.f32.mrb[0].mxu0
    %v3380 = vadd.f32 %v3267, %v3379
    %v3381 = vpop.f32.mrb[0].mxu0
    %v3382 = vadd.f32 %v3269, %v3381
    %3383 = vmatprep.mubr.bf16.mxu0 %v1615
    %3384 = vmatmul.mubr.bf16.gmra.mrb[0].mxu0 %v1614
    %v3385 = vpop.f32.mrb[0].mxu0
    %v3386 = vadd.f32 %v3273, %v3385
    %v3387 = vpop.f32.mrb[0].mxu0
    %v3388 = vadd.f32 %v3275, %v3387
    %v3389 = vpop.f32.mrb[0].mxu0
    %v3390 = vadd.f32 %v3277, %v3389
    %v3391 = vpop.f32.mrb[0].mxu0
    %v3392 = vadd.f32 %v3279, %v3391
    %3393 = vmatprep.mubr.bf16.mxu0 %v1623
    %3394 = vmatmul.mubr.bf16.gmra.mrb[0].mxu0 %v1622
    %v3395 = vpop.f32.mrb[0].mxu0
    %v3396 = vadd.f32 %v3283, %v3395
    %v3397 = vpop.f32.mrb[0].mxu0
    %v3398 = vadd.f32 %v3285, %v3397
    %v3399 = vpop.f32.mrb[0].mxu0
    %v3400 = vadd.f32 %v3287, %v3399
    %v3401 = vpop.f32.mrb[0].mxu0
    %v3402 = vadd.f32 %v3289, %v3401
    %3403 = vmatprep.mubr.bf16.mxu0 %v1631
    %3404 = vmatmul.mubr.bf16.gmra.mrb[0].mxu0 %v1630
    %v3405 = vpop.f32.mrb[0].mxu0
    %v3406 = vadd.f32 %v3293, %v3405
    %v3407 = vpop.f32.mrb[0].mxu0
    %v3408 = vadd.f32 %v3295, %v3407
    %v3409 = vpop.f32.mrb[0].mxu0
    %v3410 = vadd.f32 %v3297, %v3409
    %v3411 = vpop.f32.mrb[0].mxu0
    %v3412 = vadd.f32 %v3299, %v3411
    %3413 = vmatprep.mubr.bf16.mxu0 %v1639
    %3414 = vmatmul.mubr.bf16.gmra.mrb[0].mxu0 %v1638
    %v3415 = vpop.f32.mrb[0].mxu0
    %v3416 = vadd.f32 %v3303, %v3415
    %v3417 = vpop.f32.mrb[0].mxu0
    %v3418 = vadd.f32 %v3305, %v3417
    %v3419 = vpop.f32.mrb[0].mxu0
    %v3420 = vadd.f32 %v3307, %v3419
    %v3421 = vpop.f32.mrb[0].mxu0
    %v3422 = vadd.f32 %v3309, %v3421
    %3423 = vmatprep.mubr.bf16.mxu0 %v1647
    %3424 = vmatmul.mubr.bf16.gmra.mrb[0].mxu0 %v1646
    %v3425 = vpop.f32.mrb[0].mxu0
    %v3426 = vadd.f32 %v3313, %v3425
    %v3427 = vpop.f32.mrb[0].mxu0
    %v3428 = vadd.f32 %v3315, %v3427
    %v3429 = vpop.f32.mrb[0].mxu0
    %v3430 = vadd.f32 %v3317, %v3429
    %v3431 = vpop.f32.mrb[0].mxu0
    %v3432 = vadd.f32 %v3319, %v3431
    %3433 = vmatprep.mubr.bf16.mxu0 %v1655
    %3434 = vmatmul.mubr.bf16.gmra.mrb[0].mxu0 %v1654
    %v3435 = vpop.f32.mrb[0].mxu0
    %v3436 = vadd.f32 %v3323, %v3435
    %v3437 = vpop.f32.mrb[0].mxu0
    %v3438 = vadd.f32 %v3325, %v3437
    %v3439 = vpop.f32.mrb[0].mxu0
    %v3440 = vadd.f32 %v3327, %v3439
    %v3441 = vpop.f32.mrb[0].mxu0
    %v3442 = vadd.f32 %v3329, %v3441
    %3443 = vdwg.mxu0
    %3444 = vmatprep.subr.bf16.mxu0 %v2835
    %3445 = vmatpush1.bf16.msra.mxu0 %v2834
    %3446 = vmatprep.subr.bf16.mxu0 %v2839
    %3447 = vmatpush1.bf16.msra.mxu0 %v2838
    %3448 = vmatprep.subr.bf16.mxu0 %v2843
    %3449 = vmatpush1.bf16.msra.mxu0 %v2842
    %3450 = vmatprep.subr.bf16.mxu0 %v2847
    %3451 = vmatpush1.bf16.msra.mxu0 %v2846
    %3452 = vmatprep.subr.bf16.mxu0 %v2851
    %3453 = vmatpush1.bf16.msra.mxu0 %v2850
    %3454 = vmatprep.subr.bf16.mxu0 %v2855
    %3455 = vmatpush1.bf16.msra.mxu0 %v2854
    %3456 = vmatprep.subr.bf16.mxu0 %v2859
    %3457 = vmatpush1.bf16.msra.mxu0 %v2858
    %3458 = vmatprep.subr.bf16.mxu0 %v2863
    %3459 = vmatpush1.bf16.msra.mxu0 %v2862
    %3460 = vmatprep.subr.bf16.mxu0 %v2867
    %3461 = vmatpush1.bf16.msra.mxu0 %v2866
    %3462 = vmatprep.subr.bf16.mxu0 %v2871
    %3463 = vmatpush1.bf16.msra.mxu0 %v2870
    %3464 = vmatprep.subr.bf16.mxu0 %v2875
    %3465 = vmatpush1.bf16.msra.mxu0 %v2874
    %3466 = vmatprep.subr.bf16.mxu0 %v2879
    %3467 = vmatpush1.bf16.msra.mxu0 %v2878
    %3468 = vmatprep.subr.bf16.mxu0 %v2883
    %3469 = vmatpush1.bf16.msra.mxu0 %v2882
    %3470 = vmatprep.subr.bf16.mxu0 %v2887
    %3471 = vmatpush1.bf16.msra.mxu0 %v2886
    %3472 = vmatprep.subr.bf16.mxu0 %v2891
    %3473 = vmatpush1.bf16.msra.mxu0 %v2890
    %3474 = vmatprep.subr.bf16.mxu0 %v2895
    %3475 = vmatpush1.bf16.msra.mxu0 %v2894
    %3476 = vmatprep.mubr.bf16.mxu0 %v1601
    %3477 = vmatmul.mubr.bf16.gmra.mrb[0].mxu0 %v1600
    %v3478 = vpop.f32.mrb[0].mxu0
    %v3479 = vadd.f32 %v3366, %v3478
    %v3480 = vpop.f32.mrb[0].mxu0
    %v3481 = vadd.f32 %v3368, %v3480
    %v3482 = vpop.f32.mrb[0].mxu0
    %v3483 = vadd.f32 %v3370, %v3482
    %v3484 = vpop.f32.mrb[0].mxu0
    %v3485 = vadd.f32 %v3372, %v3484
    %3486 = vmatprep.mubr.bf16.mxu0 %v1609
    %3487 = vmatmul.mubr.bf16.gmra.mrb[0].mxu0 %v1608
    %v3488 = vpop.f32.mrb[0].mxu0
    %v3489 = vadd.f32 %v3376, %v3488
    %v3490 = vpop.f32.mrb[0].mxu0
    %v3491 = vadd.f32 %v3378, %v3490
    %v3492 = vpop.f32.mrb[0].mxu0
    %v3493 = vadd.f32 %v3380, %v3492
    %v3494 = vpop.f32.mrb[0].mxu0
    %v3495 = vadd.f32 %v3382, %v3494
    %3496 = vmatprep.mubr.bf16.mxu0 %v1617
    %3497 = vmatmul.mubr.bf16.gmra.mrb[0].mxu0 %v1616
    %v3498 = vpop.f32.mrb[0].mxu0
    %v3499 = vadd.f32 %v3386, %v3498
    %v3500 = vpop.f32.mrb[0].mxu0
    %v3501 = vadd.f32 %v3388, %v3500
    %v3502 = vpop.f32.mrb[0].mxu0
    %v3503 = vadd.f32 %v3390, %v3502
    %v3504 = vpop.f32.mrb[0].mxu0
    %v3505 = vadd.f32 %v3392, %v3504
    %3506 = vmatprep.mubr.bf16.mxu0 %v1625
    %3507 = vmatmul.mubr.bf16.gmra.mrb[0].mxu0 %v1624
    %v3508 = vpop.f32.mrb[0].mxu0
    %v3509 = vadd.f32 %v3396, %v3508
    %v3510 = vpop.f32.mrb[0].mxu0
    %v3511 = vadd.f32 %v3398, %v3510
    %v3512 = vpop.f32.mrb[0].mxu0
    %v3513 = vadd.f32 %v3400, %v3512
    %v3514 = vpop.f32.mrb[0].mxu0
    %v3515 = vadd.f32 %v3402, %v3514
    %3516 = vmatprep.mubr.bf16.mxu0 %v1633
    %3517 = vmatmul.mubr.bf16.gmra.mrb[0].mxu0 %v1632
    %v3518 = vpop.f32.mrb[0].mxu0
    %v3519 = vadd.f32 %v3406, %v3518
    %v3520 = vpop.f32.mrb[0].mxu0
    %v3521 = vadd.f32 %v3408, %v3520
    %v3522 = vpop.f32.mrb[0].mxu0
    %v3523 = vadd.f32 %v3410, %v3522
    %v3524 = vpop.f32.mrb[0].mxu0
    %v3525 = vadd.f32 %v3412, %v3524
    %3526 = vmatprep.mubr.bf16.mxu0 %v1641
    %3527 = vmatmul.mubr.bf16.gmra.mrb[0].mxu0 %v1640
    %v3528 = vpop.f32.mrb[0].mxu0
    %v3529 = vadd.f32 %v3416, %v3528
    %v3530 = vpop.f32.mrb[0].mxu0
    %v3531 = vadd.f32 %v3418, %v3530
    %v3532 = vpop.f32.mrb[0].mxu0
    %v3533 = vadd.f32 %v3420, %v3532
    %v3534 = vpop.f32.mrb[0].mxu0
    %v3535 = vadd.f32 %v3422, %v3534
    %3536 = vmatprep.mubr.bf16.mxu0 %v1649
    %3537 = vmatmul.mubr.bf16.gmra.mrb[0].mxu0 %v1648
    %v3538 = vpop.f32.mrb[0].mxu0
    %v3539 = vadd.f32 %v3426, %v3538
    %v3540 = vpop.f32.mrb[0].mxu0
    %v3541 = vadd.f32 %v3428, %v3540
    %v3542 = vpop.f32.mrb[0].mxu0
    %v3543 = vadd.f32 %v3430, %v3542
    %v3544 = vpop.f32.mrb[0].mxu0
    %v3545 = vadd.f32 %v3432, %v3544
    %3546 = vmatprep.mubr.bf16.mxu0 %v1657
    %3547 = vmatmul.mubr.bf16.gmra.mrb[0].mxu0 %v1656
    %v3548 = vpop.f32.mrb[0].mxu0
    %v3549 = vadd.f32 %v3436, %v3548
    %v3550 = vpop.f32.mrb[0].mxu0
    %v3551 = vadd.f32 %v3438, %v3550
    %v3552 = vpop.f32.mrb[0].mxu0
    %v3553 = vadd.f32 %v3440, %v3552
    %v3554 = vpop.f32.mrb[0].mxu0
    %v3555 = vadd.f32 %v3442, %v3554
    %3556 = vdwg.mxu0
    %3557 = vmatprep.subr.bf16.mxu0 %v2899
    %3558 = vmatpush1.bf16.msra.mxu0 %v2898
    %3559 = vmatprep.subr.bf16.mxu0 %v2903
    %3560 = vmatpush1.bf16.msra.mxu0 %v2902
    %3561 = vmatprep.subr.bf16.mxu0 %v2907
    %3562 = vmatpush1.bf16.msra.mxu0 %v2906
    %3563 = vmatprep.subr.bf16.mxu0 %v2911
    %3564 = vmatpush1.bf16.msra.mxu0 %v2910
    %3565 = vmatprep.subr.bf16.mxu0 %v2915
    %3566 = vmatpush1.bf16.msra.mxu0 %v2914
    %3567 = vmatprep.subr.bf16.mxu0 %v2919
    %3568 = vmatpush1.bf16.msra.mxu0 %v2918
    %3569 = vmatprep.subr.bf16.mxu0 %v2923
    %3570 = vmatpush1.bf16.msra.mxu0 %v2922
    %3571 = vmatprep.subr.bf16.mxu0 %v2927
    %3572 = vmatpush1.bf16.msra.mxu0 %v2926
    %3573 = vmatprep.subr.bf16.mxu0 %v2931
    %3574 = vmatpush1.bf16.msra.mxu0 %v2930
    %3575 = vmatprep.subr.bf16.mxu0 %v2935
    %3576 = vmatpush1.bf16.msra.mxu0 %v2934
    %3577 = vmatprep.subr.bf16.mxu0 %v2939
    %3578 = vmatpush1.bf16.msra.mxu0 %v2938
    %3579 = vmatprep.subr.bf16.mxu0 %v2943
    %3580 = vmatpush1.bf16.msra.mxu0 %v2942
    %3581 = vmatprep.subr.bf16.mxu0 %v2947
    %3582 = vmatpush1.bf16.msra.mxu0 %v2946
    %3583 = vmatprep.subr.bf16.mxu0 %v2951
    %3584 = vmatpush1.bf16.msra.mxu0 %v2950
    %3585 = vmatprep.subr.bf16.mxu0 %v2955
    %3586 = vmatpush1.bf16.msra.mxu0 %v2954
    %3587 = vmatprep.subr.bf16.mxu0 %v2959
    %3588 = vmatpush1.bf16.msra.mxu0 %v2958
    %3589 = vmatprep.mubr.bf16.mxu0 %v1603
    %3590 = vmatmul.mubr.bf16.gmra.mrb[0].mxu0 %v1602
    %v3591 = vpop.f32.mrb[0].mxu0
    %v3592 = vadd.f32 %v3479, %v3591
    %v3593 = vpop.f32.mrb[0].mxu0
    %v3594 = vadd.f32 %v3481, %v3593
    %v3595 = vpop.f32.mrb[0].mxu0
    %v3596 = vadd.f32 %v3483, %v3595
    %v3597 = vpop.f32.mrb[0].mxu0
    %v3598 = vadd.f32 %v3485, %v3597
    %3599 = vmatprep.mubr.bf16.mxu0 %v1611
    %3600 = vmatmul.mubr.bf16.gmra.mrb[0].mxu0 %v1610
    %v3601 = vpop.f32.mrb[0].mxu0
    %v3602 = vadd.f32 %v3489, %v3601
    %v3603 = vpop.f32.mrb[0].mxu0
    %v3604 = vadd.f32 %v3491, %v3603
    %v3605 = vpop.f32.mrb[0].mxu0
    %v3606 = vadd.f32 %v3493, %v3605
    %v3607 = vpop.f32.mrb[0].mxu0
    %v3608 = vadd.f32 %v3495, %v3607
    %3609 = vmatprep.mubr.bf16.mxu0 %v1619
    %3610 = vmatmul.mubr.bf16.gmra.mrb[0].mxu0 %v1618
    %v3611 = vpop.f32.mrb[0].mxu0
    %v3612 = vadd.f32 %v3499, %v3611
    %v3613 = vpop.f32.mrb[0].mxu0
    %v3614 = vadd.f32 %v3501, %v3613
    %v3615 = vpop.f32.mrb[0].mxu0
    %v3616 = vadd.f32 %v3503, %v3615
    %v3617 = vpop.f32.mrb[0].mxu0
    %v3618 = vadd.f32 %v3505, %v3617
    %3619 = vmatprep.mubr.bf16.mxu0 %v1627
    %3620 = vmatmul.mubr.bf16.gmra.mrb[0].mxu0 %v1626
    %v3621 = vpop.f32.mrb[0].mxu0
    %v3622 = vadd.f32 %v3509, %v3621
    %v3623 = vpop.f32.mrb[0].mxu0
    %v3624 = vadd.f32 %v3511, %v3623
    %v3625 = vpop.f32.mrb[0].mxu0
    %v3626 = vadd.f32 %v3513, %v3625
    %v3627 = vpop.f32.mrb[0].mxu0
    %v3628 = vadd.f32 %v3515, %v3627
    %3629 = vmatprep.mubr.bf16.mxu0 %v1635
    %3630 = vmatmul.mubr.bf16.gmra.mrb[0].mxu0 %v1634
    %v3631 = vpop.f32.mrb[0].mxu0
    %v3632 = vadd.f32 %v3519, %v3631
    %v3633 = vpop.f32.mrb[0].mxu0
    %v3634 = vadd.f32 %v3521, %v3633
    %v3635 = vpop.f32.mrb[0].mxu0
    %v3636 = vadd.f32 %v3523, %v3635
    %v3637 = vpop.f32.mrb[0].mxu0
    %v3638 = vadd.f32 %v3525, %v3637
    %3639 = vmatprep.mubr.bf16.mxu0 %v1643
    %3640 = vmatmul.mubr.bf16.gmra.mrb[0].mxu0 %v1642
    %v3641 = vpop.f32.mrb[0].mxu0
    %v3642 = vadd.f32 %v3529, %v3641
    %v3643 = vpop.f32.mrb[0].mxu0
    %v3644 = vadd.f32 %v3531, %v3643
    %v3645 = vpop.f32.mrb[0].mxu0
    %v3646 = vadd.f32 %v3533, %v3645
    %v3647 = vpop.f32.mrb[0].mxu0
    %v3648 = vadd.f32 %v3535, %v3647
    %3649 = vmatprep.mubr.bf16.mxu0 %v1651
    %3650 = vmatmul.mubr.bf16.gmra.mrb[0].mxu0 %v1650
    %v3651 = vpop.f32.mrb[0].mxu0
    %v3652 = vadd.f32 %v3539, %v3651
    %v3653 = vpop.f32.mrb[0].mxu0
    %v3654 = vadd.f32 %v3541, %v3653
    %v3655 = vpop.f32.mrb[0].mxu0
    %v3656 = vadd.f32 %v3543, %v3655
    %v3657 = vpop.f32.mrb[0].mxu0
    %v3658 = vadd.f32 %v3545, %v3657
    %3659 = vmatprep.mubr.bf16.mxu0 %v1659
    %3660 = vmatmul.mubr.bf16.gmra.mrb[0].mxu0 %v1658
    %v3661 = vpop.f32.mrb[0].mxu0
    %v3662 = vadd.f32 %v3549, %v3661
    %v3663 = vpop.f32.mrb[0].mxu0
    %v3664 = vadd.f32 %v3551, %v3663
    %v3665 = vpop.f32.mrb[0].mxu0
    %v3666 = vadd.f32 %v3553, %v3665
    %v3667 = vpop.f32.mrb[0].mxu0
    %v3668 = vadd.f32 %v3555, %v3667
    %3669 = vdwg.mxu0
    %3670 = vmatprep.subr.bf16.mxu0 %v2709
    %3671 = vmatpush1.bf16.msra.mxu0 %v2708
    %3672 = vmatprep.subr.bf16.mxu0 %v2713
    %3673 = vmatpush1.bf16.msra.mxu0 %v2712
    %3674 = vmatprep.subr.bf16.mxu0 %v2717
    %3675 = vmatpush1.bf16.msra.mxu0 %v2716
    %3676 = vmatprep.subr.bf16.mxu0 %v2721
    %3677 = vmatpush1.bf16.msra.mxu0 %v2720
    %3678 = vmatprep.subr.bf16.mxu0 %v2725
    %3679 = vmatpush1.bf16.msra.mxu0 %v2724
    %3680 = vmatprep.subr.bf16.mxu0 %v2729
    %3681 = vmatpush1.bf16.msra.mxu0 %v2728
    %3682 = vmatprep.subr.bf16.mxu0 %v2733
    %3683 = vmatpush1.bf16.msra.mxu0 %v2732
    %3684 = vmatprep.subr.bf16.mxu0 %v2737
    %3685 = vmatpush1.bf16.msra.mxu0 %v2736
    %3686 = vmatprep.subr.bf16.mxu0 %v2741
    %3687 = vmatpush1.bf16.msra.mxu0 %v2740
    %3688 = vmatprep.subr.bf16.mxu0 %v2745
    %3689 = vmatpush1.bf16.msra.mxu0 %v2744
    %3690 = vmatprep.subr.bf16.mxu0 %v2749
    %3691 = vmatpush1.bf16.msra.mxu0 %v2748
    %3692 = vmatprep.subr.bf16.mxu0 %v2753
    %3693 = vmatpush1.bf16.msra.mxu0 %v2752
    %3694 = vmatprep.subr.bf16.mxu0 %v2757
    %3695 = vmatpush1.bf16.msra.mxu0 %v2756
    %3696 = vmatprep.subr.bf16.mxu0 %v2761
    %3697 = vmatpush1.bf16.msra.mxu0 %v2760
    %3698 = vmatprep.subr.bf16.mxu0 %v2765
    %3699 = vmatpush1.bf16.msra.mxu0 %v2764
    %3700 = vmatprep.subr.bf16.mxu0 %v2769
    %3701 = vmatpush1.bf16.msra.mxu0 %v2768
    %3702 = vmatprep.mubr.bf16.mxu0 %v1597
    %3703 = vmatmul.mubr.bf16.gmra.mrb[0].mxu0 %v1596
    %v3704 = vpop.f32.mrb[0].mxu0
    %v3705 = vadd.f32 %v1929, %v3704
    %v3706 = vpop.f32.mrb[0].mxu0
    %v3707 = vadd.f32 %v1933, %v3706
    %v3708 = vpop.f32.mrb[0].mxu0
    %v3709 = vadd.f32 %v1929, %v3708
    %v3710 = vpop.f32.mrb[0].mxu0
    %v3711 = vadd.f32 %v1933, %v3710
    %3712 = vmatprep.mubr.bf16.mxu0 %v1605
    %3713 = vmatmul.mubr.bf16.gmra.mrb[0].mxu0 %v1604
    %v3714 = vpop.f32.mrb[0].mxu0
    %v3715 = vadd.f32 %v1929, %v3714
    %v3716 = vpop.f32.mrb[0].mxu0
    %v3717 = vadd.f32 %v1933, %v3716
    %v3718 = vpop.f32.mrb[0].mxu0
    %v3719 = vadd.f32 %v1929, %v3718
    %v3720 = vpop.f32.mrb[0].mxu0
    %v3721 = vadd.f32 %v1933, %v3720
    %3722 = vmatprep.mubr.bf16.mxu0 %v1613
    %3723 = vmatmul.mubr.bf16.gmra.mrb[0].mxu0 %v1612
    %v3724 = vpop.f32.mrb[0].mxu0
    %v3725 = vadd.f32 %v1929, %v3724
    %v3726 = vpop.f32.mrb[0].mxu0
    %v3727 = vadd.f32 %v1933, %v3726
    %v3728 = vpop.f32.mrb[0].mxu0
    %v3729 = vadd.f32 %v1929, %v3728
    %v3730 = vpop.f32.mrb[0].mxu0
    %v3731 = vadd.f32 %v1933, %v3730
    %3732 = vmatprep.mubr.bf16.mxu0 %v1621
    %3733 = vmatmul.mubr.bf16.gmra.mrb[0].mxu0 %v1620
    %v3734 = vpop.f32.mrb[0].mxu0
    %v3735 = vadd.f32 %v1929, %v3734
    %v3736 = vpop.f32.mrb[0].mxu0
    %v3737 = vadd.f32 %v1933, %v3736
    %v3738 = vpop.f32.mrb[0].mxu0
    %v3739 = vadd.f32 %v1929, %v3738
    %v3740 = vpop.f32.mrb[0].mxu0
    %v3741 = vadd.f32 %v1933, %v3740
    %3742 = vmatprep.mubr.bf16.mxu0 %v1629
    %3743 = vmatmul.mubr.bf16.gmra.mrb[0].mxu0 %v1628
    %v3744 = vpop.f32.mrb[0].mxu0
    %v3745 = vadd.f32 %v1929, %v3744
    %v3746 = vpop.f32.mrb[0].mxu0
    %v3747 = vadd.f32 %v1933, %v3746
    %v3748 = vpop.f32.mrb[0].mxu0
    %v3749 = vadd.f32 %v1929, %v3748
    %v3750 = vpop.f32.mrb[0].mxu0
    %v3751 = vadd.f32 %v1933, %v3750
    %3752 = vmatprep.mubr.bf16.mxu0 %v1637
    %3753 = vmatmul.mubr.bf16.gmra.mrb[0].mxu0 %v1636
    %v3754 = vpop.f32.mrb[0].mxu0
    %v3755 = vadd.f32 %v1929, %v3754
    %v3756 = vpop.f32.mrb[0].mxu0
    %v3757 = vadd.f32 %v1933, %v3756
    %v3758 = vpop.f32.mrb[0].mxu0
    %v3759 = vadd.f32 %v1929, %v3758
    %v3760 = vpop.f32.mrb[0].mxu0
    %v3761 = vadd.f32 %v1933, %v3760
    %3762 = vmatprep.mubr.bf16.mxu0 %v1645
    %3763 = vmatmul.mubr.bf16.gmra.mrb[0].mxu0 %v1644
    %v3764 = vpop.f32.mrb[0].mxu0
    %v3765 = vadd.f32 %v1929, %v3764
    %v3766 = vpop.f32.mrb[0].mxu0
    %v3767 = vadd.f32 %v1933, %v3766
    %v3768 = vpop.f32.mrb[0].mxu0
    %v3769 = vadd.f32 %v1929, %v3768
    %v3770 = vpop.f32.mrb[0].mxu0
    %v3771 = vadd.f32 %v1933, %v3770
    %3772 = vmatprep.mubr.bf16.mxu0 %v1653
    %3773 = vmatmul.mubr.bf16.gmra.mrb[0].mxu0 %v1652
    %v3774 = vpop.f32.mrb[0].mxu0
    %v3775 = vadd.f32 %v1929, %v3774
    %v3776 = vpop.f32.mrb[0].mxu0
    %v3777 = vadd.f32 %v1933, %v3776
    %v3778 = vpop.f32.mrb[0].mxu0
    %v3779 = vadd.f32 %v1929, %v3778
    %v3780 = vpop.f32.mrb[0].mxu0
    %v3781 = vadd.f32 %v1933, %v3780
    %3782 = vdwg.mxu0
    %3783 = vmatprep.subr.bf16.mxu0 %v2773
    %3784 = vmatpush1.bf16.msra.mxu0 %v2772
    %3785 = vmatprep.subr.bf16.mxu0 %v2777
    %3786 = vmatpush1.bf16.msra.mxu0 %v2776
    %3787 = vmatprep.subr.bf16.mxu0 %v2781
    %3788 = vmatpush1.bf16.msra.mxu0 %v2780
    %3789 = vmatprep.subr.bf16.mxu0 %v2785
    %3790 = vmatpush1.bf16.msra.mxu0 %v2784
    %3791 = vmatprep.subr.bf16.mxu0 %v2789
    %3792 = vmatpush1.bf16.msra.mxu0 %v2788
    %3793 = vmatprep.subr.bf16.mxu0 %v2793
    %3794 = vmatpush1.bf16.msra.mxu0 %v2792
    %3795 = vmatprep.subr.bf16.mxu0 %v2797
    %3796 = vmatpush1.bf16.msra.mxu0 %v2796
    %3797 = vmatprep.subr.bf16.mxu0 %v2801
    %3798 = vmatpush1.bf16.msra.mxu0 %v2800
    %3799 = vmatprep.subr.bf16.mxu0 %v2805
    %3800 = vmatpush1.bf16.msra.mxu0 %v2804
    %3801 = vmatprep.subr.bf16.mxu0 %v2809
    %3802 = vmatpush1.bf16.msra.mxu0 %v2808
    %3803 = vmatprep.subr.bf16.mxu0 %v2813
    %3804 = vmatpush1.bf16.msra.mxu0 %v2812
    %3805 = vmatprep.subr.bf16.mxu0 %v2817
    %3806 = vmatpush1.bf16.msra.mxu0 %v2816
    %3807 = vmatprep.subr.bf16.mxu0 %v2821
    %3808 = vmatpush1.bf16.msra.mxu0 %v2820
    %3809 = vmatprep.subr.bf16.mxu0 %v2825
    %3810 = vmatpush1.bf16.msra.mxu0 %v2824
    %3811 = vmatprep.subr.bf16.mxu0 %v2829
    %3812 = vmatpush1.bf16.msra.mxu0 %v2828
    %3813 = vmatprep.subr.bf16.mxu0 %v2833
    %3814 = vmatpush1.bf16.msra.mxu0 %v2832
    %3815 = vmatprep.mubr.bf16.mxu0 %v1599
    %3816 = vmatmul.mubr.bf16.gmra.mrb[0].mxu0 %v1598
    %v3817 = vpop.f32.mrb[0].mxu0
    %v3818 = vadd.f32 %v3705, %v3817
    %v3819 = vpop.f32.mrb[0].mxu0
    %v3820 = vadd.f32 %v3707, %v3819
    %v3821 = vpop.f32.mrb[0].mxu0
    %v3822 = vadd.f32 %v3709, %v3821
    %v3823 = vpop.f32.mrb[0].mxu0
    %v3824 = vadd.f32 %v3711, %v3823
    %3825 = vmatprep.mubr.bf16.mxu0 %v1607
    %3826 = vmatmul.mubr.bf16.gmra.mrb[0].mxu0 %v1606
    %v3827 = vpop.f32.mrb[0].mxu0
    %v3828 = vadd.f32 %v3715, %v3827
    %v3829 = vpop.f32.mrb[0].mxu0
    %v3830 = vadd.f32 %v3717, %v3829
    %v3831 = vpop.f32.mrb[0].mxu0
    %v3832 = vadd.f32 %v3719, %v3831
    %v3833 = vpop.f32.mrb[0].mxu0
    %v3834 = vadd.f32 %v3721, %v3833
    %3835 = vmatprep.mubr.bf16.mxu0 %v1615
    %3836 = vmatmul.mubr.bf16.gmra.mrb[0].mxu0 %v1614
    %v3837 = vpop.f32.mrb[0].mxu0
    %v3838 = vadd.f32 %v3725, %v3837
    %v3839 = vpop.f32.mrb[0].mxu0
    %v3840 = vadd.f32 %v3727, %v3839
    %v3841 = vpop.f32.mrb[0].mxu0
    %v3842 = vadd.f32 %v3729, %v3841
    %v3843 = vpop.f32.mrb[0].mxu0
    %v3844 = vadd.f32 %v3731, %v3843
    %3845 = vmatprep.mubr.bf16.mxu0 %v1623
    %3846 = vmatmul.mubr.bf16.gmra.mrb[0].mxu0 %v1622
    %v3847 = vpop.f32.mrb[0].mxu0
    %v3848 = vadd.f32 %v3735, %v3847
    %v3849 = vpop.f32.mrb[0].mxu0
    %v3850 = vadd.f32 %v3737, %v3849
    %v3851 = vpop.f32.mrb[0].mxu0
    %v3852 = vadd.f32 %v3739, %v3851
    %v3853 = vpop.f32.mrb[0].mxu0
    %v3854 = vadd.f32 %v3741, %v3853
    %3855 = vmatprep.mubr.bf16.mxu0 %v1631
    %3856 = vmatmul.mubr.bf16.gmra.mrb[0].mxu0 %v1630
    %v3857 = vpop.f32.mrb[0].mxu0
    %v3858 = vadd.f32 %v3745, %v3857
    %v3859 = vpop.f32.mrb[0].mxu0
    %v3860 = vadd.f32 %v3747, %v3859
    %v3861 = vpop.f32.mrb[0].mxu0
    %v3862 = vadd.f32 %v3749, %v3861
    %v3863 = vpop.f32.mrb[0].mxu0
    %v3864 = vadd.f32 %v3751, %v3863
    %3865 = vmatprep.mubr.bf16.mxu0 %v1639
    %3866 = vmatmul.mubr.bf16.gmra.mrb[0].mxu0 %v1638
    %v3867 = vpop.f32.mrb[0].mxu0
    %v3868 = vadd.f32 %v3755, %v3867
    %v3869 = vpop.f32.mrb[0].mxu0
    %v3870 = vadd.f32 %v3757, %v3869
    %v3871 = vpop.f32.mrb[0].mxu0
    %v3872 = vadd.f32 %v3759, %v3871
    %v3873 = vpop.f32.mrb[0].mxu0
    %v3874 = vadd.f32 %v3761, %v3873
    %3875 = vmatprep.mubr.bf16.mxu0 %v1647
    %3876 = vmatmul.mubr.bf16.gmra.mrb[0].mxu0 %v1646
    %v3877 = vpop.f32.mrb[0].mxu0
    %v3878 = vadd.f32 %v3765, %v3877
    %v3879 = vpop.f32.mrb[0].mxu0
    %v3880 = vadd.f32 %v3767, %v3879
    %v3881 = vpop.f32.mrb[0].mxu0
    %v3882 = vadd.f32 %v3769, %v3881
    %v3883 = vpop.f32.mrb[0].mxu0
    %v3884 = vadd.f32 %v3771, %v3883
    %3885 = vmatprep.mubr.bf16.mxu0 %v1655
    %3886 = vmatmul.mubr.bf16.gmra.mrb[0].mxu0 %v1654
    %v3887 = vpop.f32.mrb[0].mxu0
    %v3888 = vadd.f32 %v3775, %v3887
    %v3889 = vpop.f32.mrb[0].mxu0
    %v3890 = vadd.f32 %v3777, %v3889
    %v3891 = vpop.f32.mrb[0].mxu0
    %v3892 = vadd.f32 %v3779, %v3891
    %v3893 = vpop.f32.mrb[0].mxu0
    %v3894 = vadd.f32 %v3781, %v3893
    %3895 = vdwg.mxu0
    %3896 = vmatprep.subr.bf16.mxu0 %v2837
    %3897 = vmatpush1.bf16.msra.mxu0 %v2836
    %3898 = vmatprep.subr.bf16.mxu0 %v2841
    %3899 = vmatpush1.bf16.msra.mxu0 %v2840
    %3900 = vmatprep.subr.bf16.mxu0 %v2845
    %3901 = vmatpush1.bf16.msra.mxu0 %v2844
    %3902 = vmatprep.subr.bf16.mxu0 %v2849
    %3903 = vmatpush1.bf16.msra.mxu0 %v2848
    %3904 = vmatprep.subr.bf16.mxu0 %v2853
    %3905 = vmatpush1.bf16.msra.mxu0 %v2852
    %3906 = vmatprep.subr.bf16.mxu0 %v2857
    %3907 = vmatpush1.bf16.msra.mxu0 %v2856
    %3908 = vmatprep.subr.bf16.mxu0 %v2861
    %3909 = vmatpush1.bf16.msra.mxu0 %v2860
    %3910 = vmatprep.subr.bf16.mxu0 %v2865
    %3911 = vmatpush1.bf16.msra.mxu0 %v2864
    %3912 = vmatprep.subr.bf16.mxu0 %v2869
    %3913 = vmatpush1.bf16.msra.mxu0 %v2868
    %3914 = vmatprep.subr.bf16.mxu0 %v2873
    %3915 = vmatpush1.bf16.msra.mxu0 %v2872
    %3916 = vmatprep.subr.bf16.mxu0 %v2877
    %3917 = vmatpush1.bf16.msra.mxu0 %v2876
    %3918 = vmatprep.subr.bf16.mxu0 %v2881
    %3919 = vmatpush1.bf16.msra.mxu0 %v2880
    %3920 = vmatprep.subr.bf16.mxu0 %v2885
    %3921 = vmatpush1.bf16.msra.mxu0 %v2884
    %3922 = vmatprep.subr.bf16.mxu0 %v2889
    %3923 = vmatpush1.bf16.msra.mxu0 %v2888
    %3924 = vmatprep.subr.bf16.mxu0 %v2893
    %3925 = vmatpush1.bf16.msra.mxu0 %v2892
    %3926 = vmatprep.subr.bf16.mxu0 %v2897
    %3927 = vmatpush1.bf16.msra.mxu0 %v2896
    %3928 = vmatprep.mubr.bf16.mxu0 %v1601
    %3929 = vmatmul.mubr.bf16.gmra.mrb[0].mxu0 %v1600
    %v3930 = vpop.f32.mrb[0].mxu0
    %v3931 = vadd.f32 %v3818, %v3930
    %v3932 = vpop.f32.mrb[0].mxu0
    %v3933 = vadd.f32 %v3820, %v3932
    %v3934 = vpop.f32.mrb[0].mxu0
    %v3935 = vadd.f32 %v3822, %v3934
    %v3936 = vpop.f32.mrb[0].mxu0
    %v3937 = vadd.f32 %v3824, %v3936
    %3938 = vmatprep.mubr.bf16.mxu0 %v1609
    %3939 = vmatmul.mubr.bf16.gmra.mrb[0].mxu0 %v1608
    %v3940 = vpop.f32.mrb[0].mxu0
    %v3941 = vadd.f32 %v3828, %v3940
    %v3942 = vpop.f32.mrb[0].mxu0
    %v3943 = vadd.f32 %v3830, %v3942
    %v3944 = vpop.f32.mrb[0].mxu0
    %v3945 = vadd.f32 %v3832, %v3944
    %v3946 = vpop.f32.mrb[0].mxu0
    %v3947 = vadd.f32 %v3834, %v3946
    %3948 = vmatprep.mubr.bf16.mxu0 %v1617
    %3949 = vmatmul.mubr.bf16.gmra.mrb[0].mxu0 %v1616
    %v3950 = vpop.f32.mrb[0].mxu0
    %v3951 = vadd.f32 %v3838, %v3950
    %v3952 = vpop.f32.mrb[0].mxu0
    %v3953 = vadd.f32 %v3840, %v3952
    %v3954 = vpop.f32.mrb[0].mxu0
    %v3955 = vadd.f32 %v3842, %v3954
    %v3956 = vpop.f32.mrb[0].mxu0
    %v3957 = vadd.f32 %v3844, %v3956
    %3958 = vmatprep.mubr.bf16.mxu0 %v1625
    %3959 = vmatmul.mubr.bf16.gmra.mrb[0].mxu0 %v1624
    %v3960 = vpop.f32.mrb[0].mxu0
    %v3961 = vadd.f32 %v3848, %v3960
    %v3962 = vpop.f32.mrb[0].mxu0
    %v3963 = vadd.f32 %v3850, %v3962
    %v3964 = vpop.f32.mrb[0].mxu0
    %v3965 = vadd.f32 %v3852, %v3964
    %v3966 = vpop.f32.mrb[0].mxu0
    %v3967 = vadd.f32 %v3854, %v3966
    %3968 = vmatprep.mubr.bf16.mxu0 %v1633
    %3969 = vmatmul.mubr.bf16.gmra.mrb[0].mxu0 %v1632
    %v3970 = vpop.f32.mrb[0].mxu0
    %v3971 = vadd.f32 %v3858, %v3970
    %v3972 = vpop.f32.mrb[0].mxu0
    %v3973 = vadd.f32 %v3860, %v3972
    %v3974 = vpop.f32.mrb[0].mxu0
    %v3975 = vadd.f32 %v3862, %v3974
    %v3976 = vpop.f32.mrb[0].mxu0
    %v3977 = vadd.f32 %v3864, %v3976
    %3978 = vmatprep.mubr.bf16.mxu0 %v1641
    %3979 = vmatmul.mubr.bf16.gmra.mrb[0].mxu0 %v1640
    %v3980 = vpop.f32.mrb[0].mxu0
    %v3981 = vadd.f32 %v3868, %v3980
    %v3982 = vpop.f32.mrb[0].mxu0
    %v3983 = vadd.f32 %v3870, %v3982
    %v3984 = vpop.f32.mrb[0].mxu0
    %v3985 = vadd.f32 %v3872, %v3984
    %v3986 = vpop.f32.mrb[0].mxu0
    %v3987 = vadd.f32 %v3874, %v3986
    %3988 = vmatprep.mubr.bf16.mxu0 %v1649
    %3989 = vmatmul.mubr.bf16.gmra.mrb[0].mxu0 %v1648
    %v3990 = vpop.f32.mrb[0].mxu0
    %v3991 = vadd.f32 %v3878, %v3990
    %v3992 = vpop.f32.mrb[0].mxu0
    %v3993 = vadd.f32 %v3880, %v3992
    %v3994 = vpop.f32.mrb[0].mxu0
    %v3995 = vadd.f32 %v3882, %v3994
    %v3996 = vpop.f32.mrb[0].mxu0
    %v3997 = vadd.f32 %v3884, %v3996
    %3998 = vmatprep.mubr.bf16.mxu0 %v1657
    %3999 = vmatmul.mubr.bf16.gmra.mrb[0].mxu0 %v1656
    %v4000 = vpop.f32.mrb[0].mxu0
    %v4001 = vadd.f32 %v3888, %v4000
    %v4002 = vpop.f32.mrb[0].mxu0
    %v4003 = vadd.f32 %v3890, %v4002
    %v4004 = vpop.f32.mrb[0].mxu0
    %v4005 = vadd.f32 %v3892, %v4004
    %v4006 = vpop.f32.mrb[0].mxu0
    %v4007 = vadd.f32 %v3894, %v4006
    %4008 = vdwg.mxu0
    %4009 = vmatprep.subr.bf16.mxu0 %v2901
    %4010 = vmatpush1.bf16.msra.mxu0 %v2900
    %4011 = vmatprep.subr.bf16.mxu0 %v2905
    %4012 = vmatpush1.bf16.msra.mxu0 %v2904
    %4013 = vmatprep.subr.bf16.mxu0 %v2909
    %4014 = vmatpush1.bf16.msra.mxu0 %v2908
    %4015 = vmatprep.subr.bf16.mxu0 %v2913
    %4016 = vmatpush1.bf16.msra.mxu0 %v2912
    %4017 = vmatprep.subr.bf16.mxu0 %v2917
    %4018 = vmatpush1.bf16.msra.mxu0 %v2916
    %4019 = vmatprep.subr.bf16.mxu0 %v2921
    %4020 = vmatpush1.bf16.msra.mxu0 %v2920
    %4021 = vmatprep.subr.bf16.mxu0 %v2925
    %4022 = vmatpush1.bf16.msra.mxu0 %v2924
    %4023 = vmatprep.subr.bf16.mxu0 %v2929
    %4024 = vmatpush1.bf16.msra.mxu0 %v2928
    %4025 = vmatprep.subr.bf16.mxu0 %v2933
    %4026 = vmatpush1.bf16.msra.mxu0 %v2932
    %4027 = vmatprep.subr.bf16.mxu0 %v2937
    %4028 = vmatpush1.bf16.msra.mxu0 %v2936
    %4029 = vmatprep.subr.bf16.mxu0 %v2941
    %4030 = vmatpush1.bf16.msra.mxu0 %v2940
    %4031 = vmatprep.subr.bf16.mxu0 %v2945
    %4032 = vmatpush1.bf16.msra.mxu0 %v2944
    %4033 = vmatprep.subr.bf16.mxu0 %v2949
    %4034 = vmatpush1.bf16.msra.mxu0 %v2948
    %4035 = vmatprep.subr.bf16.mxu0 %v2953
    %4036 = vmatpush1.bf16.msra.mxu0 %v2952
    %4037 = vmatprep.subr.bf16.mxu0 %v2957
    %4038 = vmatpush1.bf16.msra.mxu0 %v2956
    %4039 = vmatprep.subr.bf16.mxu0 %v2961
    %4040 = vmatpush1.bf16.msra.mxu0 %v2960
    %4041 = vmatprep.mubr.bf16.mxu0 %v1603
    %4042 = vmatmul.mubr.bf16.gmra.mrb[0].mxu0 %v1602
    %v4043 = vpop.f32.mrb[0].mxu0
    %v4044 = vadd.f32 %v3931, %v4043
    %v4045 = vpop.f32.mrb[0].mxu0
    %v4046 = vadd.f32 %v3933, %v4045
    %v4047 = vpop.f32.mrb[0].mxu0
    %v4048 = vadd.f32 %v3935, %v4047
    %v4049 = vpop.f32.mrb[0].mxu0
    %v4050 = vadd.f32 %v3937, %v4049
    %4051 = vmatprep.mubr.bf16.mxu0 %v1611
    %4052 = vmatmul.mubr.bf16.gmra.mrb[0].mxu0 %v1610
    %v4053 = vpop.f32.mrb[0].mxu0
    %v4054 = vadd.f32 %v3941, %v4053
    %v4055 = vpop.f32.mrb[0].mxu0
    %v4056 = vadd.f32 %v3943, %v4055
    %v4057 = vpop.f32.mrb[0].mxu0
    %v4058 = vadd.f32 %v3945, %v4057
    %v4059 = vpop.f32.mrb[0].mxu0
    %v4060 = vadd.f32 %v3947, %v4059
    %4061 = vmatprep.mubr.bf16.mxu0 %v1619
    %4062 = vmatmul.mubr.bf16.gmra.mrb[0].mxu0 %v1618
    %v4063 = vpop.f32.mrb[0].mxu0
    %v4064 = vadd.f32 %v3951, %v4063
    %v4065 = vpop.f32.mrb[0].mxu0
    %v4066 = vadd.f32 %v3953, %v4065
    %v4067 = vpop.f32.mrb[0].mxu0
    %v4068 = vadd.f32 %v3955, %v4067
    %v4069 = vpop.f32.mrb[0].mxu0
    %v4070 = vadd.f32 %v3957, %v4069
    %4071 = vmatprep.mubr.bf16.mxu0 %v1627
    %4072 = vmatmul.mubr.bf16.gmra.mrb[0].mxu0 %v1626
    %v4073 = vpop.f32.mrb[0].mxu0
    %v4074 = vadd.f32 %v3961, %v4073
    %v4075 = vpop.f32.mrb[0].mxu0
    %v4076 = vadd.f32 %v3963, %v4075
    %v4077 = vpop.f32.mrb[0].mxu0
    %v4078 = vadd.f32 %v3965, %v4077
    %v4079 = vpop.f32.mrb[0].mxu0
    %v4080 = vadd.f32 %v3967, %v4079
    %4081 = vmatprep.mubr.bf16.mxu0 %v1635
    %4082 = vmatmul.mubr.bf16.gmra.mrb[0].mxu0 %v1634
    %v4083 = vpop.f32.mrb[0].mxu0
    %v4084 = vadd.f32 %v3971, %v4083
    %v4085 = vpop.f32.mrb[0].mxu0
    %v4086 = vadd.f32 %v3973, %v4085
    %v4087 = vpop.f32.mrb[0].mxu0
    %v4088 = vadd.f32 %v3975, %v4087
    %v4089 = vpop.f32.mrb[0].mxu0
    %v4090 = vadd.f32 %v3977, %v4089
    %4091 = vmatprep.mubr.bf16.mxu0 %v1643
    %4092 = vmatmul.mubr.bf16.gmra.mrb[0].mxu0 %v1642
    %v4093 = vpop.f32.mrb[0].mxu0
    %v4094 = vadd.f32 %v3981, %v4093
    %v4095 = vpop.f32.mrb[0].mxu0
    %v4096 = vadd.f32 %v3983, %v4095
    %v4097 = vpop.f32.mrb[0].mxu0
    %v4098 = vadd.f32 %v3985, %v4097
    %v4099 = vpop.f32.mrb[0].mxu0
    %v4100 = vadd.f32 %v3987, %v4099
    %4101 = vmatprep.mubr.bf16.mxu0 %v1651
    %4102 = vmatmul.mubr.bf16.gmra.mrb[0].mxu0 %v1650
    %v4103 = vpop.f32.mrb[0].mxu0
    %v4104 = vadd.f32 %v3991, %v4103
    %v4105 = vpop.f32.mrb[0].mxu0
    %v4106 = vadd.f32 %v3993, %v4105
    %v4107 = vpop.f32.mrb[0].mxu0
    %v4108 = vadd.f32 %v3995, %v4107
    %v4109 = vpop.f32.mrb[0].mxu0
    %v4110 = vadd.f32 %v3997, %v4109
    %4111 = vmatprep.mubr.bf16.mxu0 %v1659
    %4112 = vmatmul.mubr.bf16.gmra.mrb[0].mxu0 %v1658
    %v4113 = vpop.f32.mrb[0].mxu0
    %v4114 = vadd.f32 %v4001, %v4113
    %v4115 = vpop.f32.mrb[0].mxu0
    %v4116 = vadd.f32 %v4003, %v4115
    %v4117 = vpop.f32.mrb[0].mxu0
    %v4118 = vadd.f32 %v4005, %v4117
    %v4119 = vpop.f32.mrb[0].mxu0
    %v4120 = vadd.f32 %v4007, %v4119
    %4121 = vdwg.mxu0
    %v4122 = vmax.f32 %v3592, 0.0
    %v4123 = vmax.f32 %v3594, 0.0
    %v4124 = vmax.f32 %v4044, 0.0
    %v4125 = vmax.f32 %v4046, 0.0
    %v4126 = vmax.f32 %v3596, 0.0
    %v4127 = vmax.f32 %v3598, 0.0
    %v4128 = vmax.f32 %v4048, 0.0
    %v4129 = vmax.f32 %v4050, 0.0
    %v4130 = vmax.f32 %v3602, 0.0
    %v4131 = vmax.f32 %v3604, 0.0
    %v4132 = vmax.f32 %v4054, 0.0
    %v4133 = vmax.f32 %v4056, 0.0
    %v4134 = vmax.f32 %v3606, 0.0
    %v4135 = vmax.f32 %v3608, 0.0
    %v4136 = vmax.f32 %v4058, 0.0
    %v4137 = vmax.f32 %v4060, 0.0
    %v4138 = vmax.f32 %v3612, 0.0
    %v4139 = vmax.f32 %v3614, 0.0
    %v4140 = vmax.f32 %v4064, 0.0
    %v4141 = vmax.f32 %v4066, 0.0
    %v4142 = vmax.f32 %v3616, 0.0
    %v4143 = vmax.f32 %v3618, 0.0
    %v4144 = vmax.f32 %v4068, 0.0
    %v4145 = vmax.f32 %v4070, 0.0
    %v4146 = vmax.f32 %v3622, 0.0
    %v4147 = vmax.f32 %v3624, 0.0
    %v4148 = vmax.f32 %v4074, 0.0
    %v4149 = vmax.f32 %v4076, 0.0
    %v4150 = vmax.f32 %v3626, 0.0
    %v4151 = vmax.f32 %v3628, 0.0
    %v4152 = vmax.f32 %v4078, 0.0
    %v4153 = vmax.f32 %v4080, 0.0
    %v4154 = vmax.f32 %v3632, 0.0
    %v4155 = vmax.f32 %v3634, 0.0
    %v4156 = vmax.f32 %v4084, 0.0
    %v4157 = vmax.f32 %v4086, 0.0
    %v4158 = vmax.f32 %v3636, 0.0
    %v4159 = vmax.f32 %v3638, 0.0
    %v4160 = vmax.f32 %v4088, 0.0
    %v4161 = vmax.f32 %v4090, 0.0
    %v4162 = vmax.f32 %v3642, 0.0
    %v4163 = vmax.f32 %v3644, 0.0
    %v4164 = vmax.f32 %v4094, 0.0
    %v4165 = vmax.f32 %v4096, 0.0
    %v4166 = vmax.f32 %v3646, 0.0
    %v4167 = vmax.f32 %v3648, 0.0
    %v4168 = vmax.f32 %v4098, 0.0
    %v4169 = vmax.f32 %v4100, 0.0
    %v4170 = vmax.f32 %v3652, 0.0
    %v4171 = vmax.f32 %v3654, 0.0
    %v4172 = vmax.f32 %v4104, 0.0
    %v4173 = vmax.f32 %v4106, 0.0
    %v4174 = vmax.f32 %v3656, 0.0
    %v4175 = vmax.f32 %v3658, 0.0
    %v4176 = vmax.f32 %v4108, 0.0
    %v4177 = vmax.f32 %v4110, 0.0
    %v4178 = vmax.f32 %v3662, 0.0
    %v4179 = vmax.f32 %v3664, 0.0
    %v4180 = vmax.f32 %v4114, 0.0
    %v4181 = vmax.f32 %v4116, 0.0
    %v4182 = vmax.f32 %v3666, 0.0
    %v4183 = vmax.f32 %v3668, 0.0
    %v4184 = vmax.f32 %v4118, 0.0
    %v4185 = vmax.f32 %v4120, 0.0
    %v4186 = vpack.c.bf16 %v4126, %v4122
    %v4187 = vpack.c.bf16 %v4127, %v4123
    %v4188 = vpack.c.bf16 %v4128, %v4124
    %v4189 = vpack.c.bf16 %v4129, %v4125
    %v4190 = vpack.c.bf16 %v4134, %v4130
    %v4191 = vpack.c.bf16 %v4135, %v4131
    %v4192 = vpack.c.bf16 %v4136, %v4132
    %v4193 = vpack.c.bf16 %v4137, %v4133
    %v4194 = vpack.c.bf16 %v4142, %v4138
    %v4195 = vpack.c.bf16 %v4143, %v4139
    %v4196 = vpack.c.bf16 %v4144, %v4140
    %v4197 = vpack.c.bf16 %v4145, %v4141
    %v4198 = vpack.c.bf16 %v4150, %v4146
    %v4199 = vpack.c.bf16 %v4151, %v4147
    %v4200 = vpack.c.bf16 %v4152, %v4148
    %v4201 = vpack.c.bf16 %v4153, %v4149
    %v4202 = vpack.c.bf16 %v4158, %v4154
    %v4203 = vpack.c.bf16 %v4159, %v4155
    %v4204 = vpack.c.bf16 %v4160, %v4156
    %v4205 = vpack.c.bf16 %v4161, %v4157
    %v4206 = vpack.c.bf16 %v4166, %v4162
    %v4207 = vpack.c.bf16 %v4167, %v4163
    %v4208 = vpack.c.bf16 %v4168, %v4164
    %v4209 = vpack.c.bf16 %v4169, %v4165
    %v4210 = vpack.c.bf16 %v4174, %v4170
    %v4211 = vpack.c.bf16 %v4175, %v4171
    %v4212 = vpack.c.bf16 %v4176, %v4172
    %v4213 = vpack.c.bf16 %v4177, %v4173
    %v4214 = vpack.c.bf16 %v4182, %v4178
    %v4215 = vpack.c.bf16 %v4183, %v4179
    %v4216 = vpack.c.bf16 %v4184, %v4180
    %v4217 = vpack.c.bf16 %v4185, %v4181
    %v4218 = vld [vmem:[#allocation9] sm:$0xff]
    %v4219 = vld [vmem:[#allocation9 + $0x8] sm:$0xff]
    %v4220 = vld [vmem:[#allocation9 + $0x10] sm:$0xff]
    %v4221 = vld [vmem:[#allocation9 + $0x18] sm:$0xff]
    %v4222 = vld [vmem:[#allocation9 + $0x20] sm:$0xff]
    %v4223 = vld [vmem:[#allocation9 + $0x28] sm:$0xff]
    %v4224 = vld [vmem:[#allocation9 + $0x30] sm:$0xff]
    %v4225 = vld [vmem:[#allocation9 + $0x38] sm:$0xff]
    %v4226 = vld [vmem:[#allocation9 + $0x40] sm:$0xff]
    %v4227 = vld [vmem:[#allocation9 + $0x48] sm:$0xff]
    %v4228 = vld [vmem:[#allocation9 + $0x50] sm:$0xff]
    %v4229 = vld [vmem:[#allocation9 + $0x58] sm:$0xff]
    %v4230 = vld [vmem:[#allocation9 + $0x60] sm:$0xff]
    %v4231 = vld [vmem:[#allocation9 + $0x68] sm:$0xff]
    %v4232 = vld [vmem:[#allocation9 + $0x70] sm:$0xff]
    %v4233 = vld [vmem:[#allocation9 + $0x78] sm:$0xff]
    %v4234 = vld [vmem:[#allocation9 + $0x80] sm:$0xff]
    %v4235 = vld [vmem:[#allocation9 + $0x88] sm:$0xff]
    %v4236 = vld [vmem:[#allocation9 + $0x90] sm:$0xff]
    %v4237 = vld [vmem:[#allocation9 + $0x98] sm:$0xff]
    %v4238 = vld [vmem:[#allocation9 + $0xa0] sm:$0xff]
    %v4239 = vld [vmem:[#allocation9 + $0xa8] sm:$0xff]
    %v4240 = vld [vmem:[#allocation9 + $0xb0] sm:$0xff]
    %v4241 = vld [vmem:[#allocation9 + $0xb8] sm:$0xff]
    %v4242 = vld [vmem:[#allocation9 + $0xc0] sm:$0xff]
    %v4243 = vld [vmem:[#allocation9 + $0xc8] sm:$0xff]
    %v4244 = vld [vmem:[#allocation9 + $0xd0] sm:$0xff]
    %v4245 = vld [vmem:[#allocation9 + $0xd8] sm:$0xff]
    %v4246 = vld [vmem:[#allocation9 + $0xe0] sm:$0xff]
    %v4247 = vld [vmem:[#allocation9 + $0xe8] sm:$0xff]
    %v4248 = vld [vmem:[#allocation9 + $0xf0] sm:$0xff]
    %v4249 = vld [vmem:[#allocation9 + $0xf8] sm:$0xff]
    %v4250 = vld [vmem:[#allocation9 + $0x100] sm:$0xff]
    %v4251 = vld [vmem:[#allocation9 + $0x108] sm:$0xff]
    %v4252 = vld [vmem:[#allocation9 + $0x110] sm:$0xff]
    %v4253 = vld [vmem:[#allocation9 + $0x118] sm:$0xff]
    %v4254 = vld [vmem:[#allocation9 + $0x120] sm:$0xff]
    %v4255 = vld [vmem:[#allocation9 + $0x128] sm:$0xff]
    %v4256 = vld [vmem:[#allocation9 + $0x130] sm:$0xff]
    %v4257 = vld [vmem:[#allocation9 + $0x138] sm:$0xff]
    %v4258 = vld [vmem:[#allocation9 + $0x140] sm:$0xff]
    %v4259 = vld [vmem:[#allocation9 + $0x148] sm:$0xff]
    %v4260 = vld [vmem:[#allocation9 + $0x150] sm:$0xff]
    %v4261 = vld [vmem:[#allocation9 + $0x158] sm:$0xff]
    %v4262 = vld [vmem:[#allocation9 + $0x160] sm:$0xff]
    %v4263 = vld [vmem:[#allocation9 + $0x168] sm:$0xff]
    %v4264 = vld [vmem:[#allocation9 + $0x170] sm:$0xff]
    %v4265 = vld [vmem:[#allocation9 + $0x178] sm:$0xff]
    %v4266 = vld [vmem:[#allocation9 + $0x180] sm:$0xff]
    %v4267 = vld [vmem:[#allocation9 + $0x188] sm:$0xff]
    %v4268 = vld [vmem:[#allocation9 + $0x190] sm:$0xff]
    %v4269 = vld [vmem:[#allocation9 + $0x198] sm:$0xff]
    %v4270 = vld [vmem:[#allocation9 + $0x1a0] sm:$0xff]
    %v4271 = vld [vmem:[#allocation9 + $0x1a8] sm:$0xff]
    %v4272 = vld [vmem:[#allocation9 + $0x1b0] sm:$0xff]
    %v4273 = vld [vmem:[#allocation9 + $0x1b8] sm:$0xff]
    %v4274 = vld [vmem:[#allocation9 + $0x1c0] sm:$0xff]
    %v4275 = vld [vmem:[#allocation9 + $0x1c8] sm:$0xff]
    %v4276 = vld [vmem:[#allocation9 + $0x1d0] sm:$0xff]
    %v4277 = vld [vmem:[#allocation9 + $0x1d8] sm:$0xff]
    %v4278 = vld [vmem:[#allocation9 + $0x1e0] sm:$0xff]
    %v4279 = vld [vmem:[#allocation9 + $0x1e8] sm:$0xff]
    %v4280 = vld [vmem:[#allocation9 + $0x1f0] sm:$0xff]
    %v4281 = vld [vmem:[#allocation9 + $0x1f8] sm:$0xff]
    %v4282 = vld [vmem:[%s6] sm:$0x3]
    %v4284 = vlaneseq
    %v4285 = vshrl.u32 %v4284, 7
    %v4286 = vsub.s32 0, %v4285
    %v4287 = vrot.slane %v4282, %v4286
    %v4288 = vlaneseq
    %v4289 = vshrl.u32 %v4288, 7
    %v4290 = vsub.s32 1, %v4289
    %v4291 = vrot.slane %v4282, %v4290
    %v4358 = vunpack.c.l.b16 %v4218
    %v4359 = vunpack.c.h.b16 %v4218
    %v4360 = vunpack.c.l.b16 %v4219
    %v4361 = vunpack.c.h.b16 %v4219
    %v4362 = vunpack.c.l.b16 %v4220
    %v4363 = vunpack.c.h.b16 %v4220
    %v4364 = vunpack.c.l.b16 %v4221
    %v4365 = vunpack.c.h.b16 %v4221
    %v4366 = vunpack.c.l.b16 %v4222
    %v4367 = vunpack.c.h.b16 %v4222
    %v4368 = vunpack.c.l.b16 %v4223
    %v4369 = vunpack.c.h.b16 %v4223
    %v4370 = vunpack.c.l.b16 %v4224
    %v4371 = vunpack.c.h.b16 %v4224
    %v4372 = vunpack.c.l.b16 %v4225
    %v4373 = vunpack.c.h.b16 %v4225
    %v4374 = vunpack.c.l.b16 %v4226
    %v4375 = vunpack.c.h.b16 %v4226
    %v4376 = vunpack.c.l.b16 %v4227
    %v4377 = vunpack.c.h.b16 %v4227
    %v4378 = vunpack.c.l.b16 %v4228
    %v4379 = vunpack.c.h.b16 %v4228
    %v4380 = vunpack.c.l.b16 %v4229
    %v4381 = vunpack.c.h.b16 %v4229
    %v4382 = vunpack.c.l.b16 %v4230
    %v4383 = vunpack.c.h.b16 %v4230
    %v4384 = vunpack.c.l.b16 %v4231
    %v4385 = vunpack.c.h.b16 %v4231
    %v4386 = vunpack.c.l.b16 %v4232
    %v4387 = vunpack.c.h.b16 %v4232
    %v4388 = vunpack.c.l.b16 %v4233
    %v4389 = vunpack.c.h.b16 %v4233
    %v4390 = vunpack.c.l.b16 %v4234
    %v4391 = vunpack.c.h.b16 %v4234
    %v4392 = vunpack.c.l.b16 %v4235
    %v4393 = vunpack.c.h.b16 %v4235
    %v4394 = vunpack.c.l.b16 %v4236
    %v4395 = vunpack.c.h.b16 %v4236
    %v4396 = vunpack.c.l.b16 %v4237
    %v4397 = vunpack.c.h.b16 %v4237
    %v4398 = vunpack.c.l.b16 %v4238
    %v4399 = vunpack.c.h.b16 %v4238
    %v4400 = vunpack.c.l.b16 %v4239
    %v4401 = vunpack.c.h.b16 %v4239
    %v4402 = vunpack.c.l.b16 %v4240
    %v4403 = vunpack.c.h.b16 %v4240
    %v4404 = vunpack.c.l.b16 %v4241
    %v4405 = vunpack.c.h.b16 %v4241
    %v4406 = vunpack.c.l.b16 %v4242
    %v4407 = vunpack.c.h.b16 %v4242
    %v4408 = vunpack.c.l.b16 %v4243
    %v4409 = vunpack.c.h.b16 %v4243
    %v4410 = vunpack.c.l.b16 %v4244
    %v4411 = vunpack.c.h.b16 %v4244
    %v4412 = vunpack.c.l.b16 %v4245
    %v4413 = vunpack.c.h.b16 %v4245
    %v4414 = vunpack.c.l.b16 %v4246
    %v4415 = vunpack.c.h.b16 %v4246
    %v4416 = vunpack.c.l.b16 %v4247
    %v4417 = vunpack.c.h.b16 %v4247
    %v4418 = vunpack.c.l.b16 %v4248
    %v4419 = vunpack.c.h.b16 %v4248
    %v4420 = vunpack.c.l.b16 %v4249
    %v4421 = vunpack.c.h.b16 %v4249
    %v4422 = vunpack.c.l.b16 %v4250
    %v4423 = vunpack.c.h.b16 %v4250
    %v4424 = vunpack.c.l.b16 %v4251
    %v4425 = vunpack.c.h.b16 %v4251
    %v4426 = vunpack.c.l.b16 %v4252
    %v4427 = vunpack.c.h.b16 %v4252
    %v4428 = vunpack.c.l.b16 %v4253
    %v4429 = vunpack.c.h.b16 %v4253
    %v4430 = vunpack.c.l.b16 %v4254
    %v4431 = vunpack.c.h.b16 %v4254
    %v4432 = vunpack.c.l.b16 %v4255
    %v4433 = vunpack.c.h.b16 %v4255
    %v4434 = vunpack.c.l.b16 %v4256
    %v4435 = vunpack.c.h.b16 %v4256
    %v4436 = vunpack.c.l.b16 %v4257
    %v4437 = vunpack.c.h.b16 %v4257
    %v4438 = vunpack.c.l.b16 %v4258
    %v4439 = vunpack.c.h.b16 %v4258
    %v4440 = vunpack.c.l.b16 %v4259
    %v4441 = vunpack.c.h.b16 %v4259
    %v4442 = vunpack.c.l.b16 %v4260
    %v4443 = vunpack.c.h.b16 %v4260
    %v4444 = vunpack.c.l.b16 %v4261
    %v4445 = vunpack.c.h.b16 %v4261
    %v4446 = vunpack.c.l.b16 %v4262
    %v4447 = vunpack.c.h.b16 %v4262
    %v4448 = vunpack.c.l.b16 %v4263
    %v4449 = vunpack.c.h.b16 %v4263
    %v4450 = vunpack.c.l.b16 %v4264
    %v4451 = vunpack.c.h.b16 %v4264
    %v4452 = vunpack.c.l.b16 %v4265
    %v4453 = vunpack.c.h.b16 %v4265
    %v4454 = vunpack.c.l.b16 %v4266
    %v4455 = vunpack.c.h.b16 %v4266
    %v4456 = vunpack.c.l.b16 %v4267
    %v4457 = vunpack.c.h.b16 %v4267
    %v4458 = vunpack.c.l.b16 %v4268
    %v4459 = vunpack.c.h.b16 %v4268
    %v4460 = vunpack.c.l.b16 %v4269
    %v4461 = vunpack.c.h.b16 %v4269
    %v4462 = vunpack.c.l.b16 %v4270
    %v4463 = vunpack.c.h.b16 %v4270
    %v4464 = vunpack.c.l.b16 %v4271
    %v4465 = vunpack.c.h.b16 %v4271
    %v4466 = vunpack.c.l.b16 %v4272
    %v4467 = vunpack.c.h.b16 %v4272
    %v4468 = vunpack.c.l.b16 %v4273
    %v4469 = vunpack.c.h.b16 %v4273
    %v4470 = vunpack.c.l.b16 %v4274
    %v4471 = vunpack.c.h.b16 %v4274
    %v4472 = vunpack.c.l.b16 %v4275
    %v4473 = vunpack.c.h.b16 %v4275
    %v4474 = vunpack.c.l.b16 %v4276
    %v4475 = vunpack.c.h.b16 %v4276
    %v4476 = vunpack.c.l.b16 %v4277
    %v4477 = vunpack.c.h.b16 %v4277
    %v4478 = vunpack.c.l.b16 %v4278
    %v4479 = vunpack.c.h.b16 %v4278
    %v4480 = vunpack.c.l.b16 %v4279
    %v4481 = vunpack.c.h.b16 %v4279
    %v4482 = vunpack.c.l.b16 %v4280
    %v4483 = vunpack.c.h.b16 %v4280
    %v4484 = vunpack.c.l.b16 %v4281
    %v4485 = vunpack.c.h.b16 %v4281
    %v4486 = vpack.c.b16 %v4360, %v4358
    %v4487 = vpack.c.b16 %v4361, %v4359
    %v4488 = vpack.c.b16 %v4364, %v4362
    %v4489 = vpack.c.b16 %v4365, %v4363
    %v4490 = vpack.c.b16 %v4368, %v4366
    %v4491 = vpack.c.b16 %v4369, %v4367
    %v4492 = vpack.c.b16 %v4372, %v4370
    %v4493 = vpack.c.b16 %v4373, %v4371
    %v4494 = vpack.c.b16 %v4376, %v4374
    %v4495 = vpack.c.b16 %v4377, %v4375
    %v4496 = vpack.c.b16 %v4380, %v4378
    %v4497 = vpack.c.b16 %v4381, %v4379
    %v4498 = vpack.c.b16 %v4384, %v4382
    %v4499 = vpack.c.b16 %v4385, %v4383
    %v4500 = vpack.c.b16 %v4388, %v4386
    %v4501 = vpack.c.b16 %v4389, %v4387
    %v4502 = vpack.c.b16 %v4392, %v4390
    %v4503 = vpack.c.b16 %v4393, %v4391
    %v4504 = vpack.c.b16 %v4396, %v4394
    %v4505 = vpack.c.b16 %v4397, %v4395
    %v4506 = vpack.c.b16 %v4400, %v4398
    %v4507 = vpack.c.b16 %v4401, %v4399
    %v4508 = vpack.c.b16 %v4404, %v4402
    %v4509 = vpack.c.b16 %v4405, %v4403
    %v4510 = vpack.c.b16 %v4408, %v4406
    %v4511 = vpack.c.b16 %v4409, %v4407
    %v4512 = vpack.c.b16 %v4412, %v4410
    %v4513 = vpack.c.b16 %v4413, %v4411
    %v4514 = vpack.c.b16 %v4416, %v4414
    %v4515 = vpack.c.b16 %v4417, %v4415
    %v4516 = vpack.c.b16 %v4420, %v4418
    %v4517 = vpack.c.b16 %v4421, %v4419
    %v4518 = vpack.c.b16 %v4424, %v4422
    %v4519 = vpack.c.b16 %v4425, %v4423
    %v4520 = vpack.c.b16 %v4428, %v4426
    %v4521 = vpack.c.b16 %v4429, %v4427
    %v4522 = vpack.c.b16 %v4432, %v4430
    %v4523 = vpack.c.b16 %v4433, %v4431
    %v4524 = vpack.c.b16 %v4436, %v4434
    %v4525 = vpack.c.b16 %v4437, %v4435
    %v4526 = vpack.c.b16 %v4440, %v4438
    %v4527 = vpack.c.b16 %v4441, %v4439
    %v4528 = vpack.c.b16 %v4444, %v4442
    %v4529 = vpack.c.b16 %v4445, %v4443
    %v4530 = vpack.c.b16 %v4448, %v4446
    %v4531 = vpack.c.b16 %v4449, %v4447
    %v4532 = vpack.c.b16 %v4452, %v4450
    %v4533 = vpack.c.b16 %v4453, %v4451
    %v4534 = vpack.c.b16 %v4456, %v4454
    %v4535 = vpack.c.b16 %v4457, %v4455
    %v4536 = vpack.c.b16 %v4460, %v4458
    %v4537 = vpack.c.b16 %v4461, %v4459
    %v4538 = vpack.c.b16 %v4464, %v4462
    %v4539 = vpack.c.b16 %v4465, %v4463
    %v4540 = vpack.c.b16 %v4468, %v4466
    %v4541 = vpack.c.b16 %v4469, %v4467
    %v4542 = vpack.c.b16 %v4472, %v4470
    %v4543 = vpack.c.b16 %v4473, %v4471
    %v4544 = vpack.c.b16 %v4476, %v4474
    %v4545 = vpack.c.b16 %v4477, %v4475
    %v4546 = vpack.c.b16 %v4480, %v4478
    %v4547 = vpack.c.b16 %v4481, %v4479
    %v4548 = vpack.c.b16 %v4484, %v4482
    %v4549 = vpack.c.b16 %v4485, %v4483
    %4614 = vmatprep.subr.bf16.mxu0 %v4487
    %4615 = vmatpush1.bf16.msra.mxu0 %v4486
    %4616 = vmatprep.subr.bf16.mxu0 %v4489
    %4617 = vmatpush1.bf16.msra.mxu0 %v4488
    %4618 = vmatprep.subr.bf16.mxu0 %v4491
    %4619 = vmatpush1.bf16.msra.mxu0 %v4490
    %4620 = vmatprep.subr.bf16.mxu0 %v4493
    %4621 = vmatpush1.bf16.msra.mxu0 %v4492
    %4622 = vmatprep.subr.bf16.mxu0 %v4495
    %4623 = vmatpush1.bf16.msra.mxu0 %v4494
    %4624 = vmatprep.subr.bf16.mxu0 %v4497
    %4625 = vmatpush1.bf16.msra.mxu0 %v4496
    %4626 = vmatprep.subr.bf16.mxu0 %v4499
    %4627 = vmatpush1.bf16.msra.mxu0 %v4498
    %4628 = vmatprep.subr.bf16.mxu0 %v4501
    %4629 = vmatpush1.bf16.msra.mxu0 %v4500
    %4630 = vmatprep.subr.bf16.mxu0 %v4503
    %4631 = vmatpush1.bf16.msra.mxu0 %v4502
    %4632 = vmatprep.subr.bf16.mxu0 %v4505
    %4633 = vmatpush1.bf16.msra.mxu0 %v4504
    %4634 = vmatprep.subr.bf16.mxu0 %v4507
    %4635 = vmatpush1.bf16.msra.mxu0 %v4506
    %4636 = vmatprep.subr.bf16.mxu0 %v4509
    %4637 = vmatpush1.bf16.msra.mxu0 %v4508
    %4638 = vmatprep.subr.bf16.mxu0 %v4511
    %4639 = vmatpush1.bf16.msra.mxu0 %v4510
    %4640 = vmatprep.subr.bf16.mxu0 %v4513
    %4641 = vmatpush1.bf16.msra.mxu0 %v4512
    %4642 = vmatprep.subr.bf16.mxu0 %v4515
    %4643 = vmatpush1.bf16.msra.mxu0 %v4514
    %4644 = vmatprep.subr.bf16.mxu0 %v4517
    %4645 = vmatpush1.bf16.msra.mxu0 %v4516
    %4646 = vmatprep.mubr.bf16.mxu0 %v4187
    %4647 = vmatmul.mubr.bf16.gmra.mrb[0].mxu0 %v4186
    %v4648 = vpop.f32.mrb[0].mxu0
    %v4649 = vadd.f32 %v4287, %v4648
    %v4650 = vpop.f32.mrb[0].mxu0
    %v4651 = vadd.f32 %v4291, %v4650
    %v4652 = vpop.f32.mrb[0].mxu0
    %v4653 = vadd.f32 %v4287, %v4652
    %v4654 = vpop.f32.mrb[0].mxu0
    %v4655 = vadd.f32 %v4291, %v4654
    %4656 = vmatprep.mubr.bf16.mxu0 %v4191
    %4657 = vmatmul.mubr.bf16.gmra.mrb[0].mxu0 %v4190
    %v4658 = vpop.f32.mrb[0].mxu0
    %v4659 = vadd.f32 %v4287, %v4658
    %v4660 = vpop.f32.mrb[0].mxu0
    %v4661 = vadd.f32 %v4291, %v4660
    %v4662 = vpop.f32.mrb[0].mxu0
    %v4663 = vadd.f32 %v4287, %v4662
    %v4664 = vpop.f32.mrb[0].mxu0
    %v4665 = vadd.f32 %v4291, %v4664
    %4666 = vmatprep.mubr.bf16.mxu0 %v4195
    %4667 = vmatmul.mubr.bf16.gmra.mrb[0].mxu0 %v4194
    %v4668 = vpop.f32.mrb[0].mxu0
    %v4669 = vadd.f32 %v4287, %v4668
    %v4670 = vpop.f32.mrb[0].mxu0
    %v4671 = vadd.f32 %v4291, %v4670
    %v4672 = vpop.f32.mrb[0].mxu0
    %v4673 = vadd.f32 %v4287, %v4672
    %v4674 = vpop.f32.mrb[0].mxu0
    %v4675 = vadd.f32 %v4291, %v4674
    %4676 = vmatprep.mubr.bf16.mxu0 %v4199
    %4677 = vmatmul.mubr.bf16.gmra.mrb[0].mxu0 %v4198
    %v4678 = vpop.f32.mrb[0].mxu0
    %v4679 = vadd.f32 %v4287, %v4678
    %v4680 = vpop.f32.mrb[0].mxu0
    %v4681 = vadd.f32 %v4291, %v4680
    %v4682 = vpop.f32.mrb[0].mxu0
    %v4683 = vadd.f32 %v4287, %v4682
    %v4684 = vpop.f32.mrb[0].mxu0
    %v4685 = vadd.f32 %v4291, %v4684
    %4686 = vmatprep.mubr.bf16.mxu0 %v4203
    %4687 = vmatmul.mubr.bf16.gmra.mrb[0].mxu0 %v4202
    %v4688 = vpop.f32.mrb[0].mxu0
    %v4689 = vadd.f32 %v4287, %v4688
    %v4690 = vpop.f32.mrb[0].mxu0
    %v4691 = vadd.f32 %v4291, %v4690
    %v4692 = vpop.f32.mrb[0].mxu0
    %v4693 = vadd.f32 %v4287, %v4692
    %v4694 = vpop.f32.mrb[0].mxu0
    %v4695 = vadd.f32 %v4291, %v4694
    %4696 = vmatprep.mubr.bf16.mxu0 %v4207
    %4697 = vmatmul.mubr.bf16.gmra.mrb[0].mxu0 %v4206
    %v4698 = vpop.f32.mrb[0].mxu0
    %v4699 = vadd.f32 %v4287, %v4698
    %v4700 = vpop.f32.mrb[0].mxu0
    %v4701 = vadd.f32 %v4291, %v4700
    %v4702 = vpop.f32.mrb[0].mxu0
    %v4703 = vadd.f32 %v4287, %v4702
    %v4704 = vpop.f32.mrb[0].mxu0
    %v4705 = vadd.f32 %v4291, %v4704
    %4706 = vmatprep.mubr.bf16.mxu0 %v4211
    %4707 = vmatmul.mubr.bf16.gmra.mrb[0].mxu0 %v4210
    %v4708 = vpop.f32.mrb[0].mxu0
    %v4709 = vadd.f32 %v4287, %v4708
    %v4710 = vpop.f32.mrb[0].mxu0
    %v4711 = vadd.f32 %v4291, %v4710
    %v4712 = vpop.f32.mrb[0].mxu0
    %v4713 = vadd.f32 %v4287, %v4712
    %v4714 = vpop.f32.mrb[0].mxu0
    %v4715 = vadd.f32 %v4291, %v4714
    %4716 = vmatprep.mubr.bf16.mxu0 %v4215
    %4717 = vmatmul.mubr.bf16.gmra.mrb[0].mxu0 %v4214
    %v4718 = vpop.f32.mrb[0].mxu0
    %v4719 = vadd.f32 %v4287, %v4718
    %v4720 = vpop.f32.mrb[0].mxu0
    %v4721 = vadd.f32 %v4291, %v4720
    %v4722 = vpop.f32.mrb[0].mxu0
    %v4723 = vadd.f32 %v4287, %v4722
    %v4724 = vpop.f32.mrb[0].mxu0
    %v4725 = vadd.f32 %v4291, %v4724
    %4726 = vdwg.mxu0
    %4727 = vmatprep.subr.bf16.mxu0 %v4519
    %4728 = vmatpush1.bf16.msra.mxu0 %v4518
    %4729 = vmatprep.subr.bf16.mxu0 %v4521
    %4730 = vmatpush1.bf16.msra.mxu0 %v4520
    %4731 = vmatprep.subr.bf16.mxu0 %v4523
    %4732 = vmatpush1.bf16.msra.mxu0 %v4522
    %4733 = vmatprep.subr.bf16.mxu0 %v4525
    %4734 = vmatpush1.bf16.msra.mxu0 %v4524
    %4735 = vmatprep.subr.bf16.mxu0 %v4527
    %4736 = vmatpush1.bf16.msra.mxu0 %v4526
    %4737 = vmatprep.subr.bf16.mxu0 %v4529
    %4738 = vmatpush1.bf16.msra.mxu0 %v4528
    %4739 = vmatprep.subr.bf16.mxu0 %v4531
    %4740 = vmatpush1.bf16.msra.mxu0 %v4530
    %4741 = vmatprep.subr.bf16.mxu0 %v4533
    %4742 = vmatpush1.bf16.msra.mxu0 %v4532
    %4743 = vmatprep.subr.bf16.mxu0 %v4535
    %4744 = vmatpush1.bf16.msra.mxu0 %v4534
    %4745 = vmatprep.subr.bf16.mxu0 %v4537
    %4746 = vmatpush1.bf16.msra.mxu0 %v4536
    %4747 = vmatprep.subr.bf16.mxu0 %v4539
    %4748 = vmatpush1.bf16.msra.mxu0 %v4538
    %4749 = vmatprep.subr.bf16.mxu0 %v4541
    %4750 = vmatpush1.bf16.msra.mxu0 %v4540
    %4751 = vmatprep.subr.bf16.mxu0 %v4543
    %4752 = vmatpush1.bf16.msra.mxu0 %v4542
    %4753 = vmatprep.subr.bf16.mxu0 %v4545
    %4754 = vmatpush1.bf16.msra.mxu0 %v4544
    %4755 = vmatprep.subr.bf16.mxu0 %v4547
    %4756 = vmatpush1.bf16.msra.mxu0 %v4546
    %4757 = vmatprep.subr.bf16.mxu0 %v4549
    %4758 = vmatpush1.bf16.msra.mxu0 %v4548
    %4759 = vmatprep.mubr.bf16.mxu0 %v4189
    %4760 = vmatmul.mubr.bf16.gmra.mrb[0].mxu0 %v4188
    %v4761 = vpop.f32.mrb[0].mxu0
    %v4762 = vadd.f32 %v4649, %v4761
    %v4763 = vpop.f32.mrb[0].mxu0
    %v4764 = vadd.f32 %v4651, %v4763
    %v4765 = vpop.f32.mrb[0].mxu0
    %v4766 = vadd.f32 %v4653, %v4765
    %v4767 = vpop.f32.mrb[0].mxu0
    %v4768 = vadd.f32 %v4655, %v4767
    %4769 = vmatprep.mubr.bf16.mxu0 %v4193
    %4770 = vmatmul.mubr.bf16.gmra.mrb[0].mxu0 %v4192
    %v4771 = vpop.f32.mrb[0].mxu0
    %v4772 = vadd.f32 %v4659, %v4771
    %v4773 = vpop.f32.mrb[0].mxu0
    %v4774 = vadd.f32 %v4661, %v4773
    %v4775 = vpop.f32.mrb[0].mxu0
    %v4776 = vadd.f32 %v4663, %v4775
    %v4777 = vpop.f32.mrb[0].mxu0
    %v4778 = vadd.f32 %v4665, %v4777
    %4779 = vmatprep.mubr.bf16.mxu0 %v4197
    %4780 = vmatmul.mubr.bf16.gmra.mrb[0].mxu0 %v4196
    %v4781 = vpop.f32.mrb[0].mxu0
    %v4782 = vadd.f32 %v4669, %v4781
    %v4783 = vpop.f32.mrb[0].mxu0
    %v4784 = vadd.f32 %v4671, %v4783
    %v4785 = vpop.f32.mrb[0].mxu0
    %v4786 = vadd.f32 %v4673, %v4785
    %v4787 = vpop.f32.mrb[0].mxu0
    %v4788 = vadd.f32 %v4675, %v4787
    %4789 = vmatprep.mubr.bf16.mxu0 %v4201
    %4790 = vmatmul.mubr.bf16.gmra.mrb[0].mxu0 %v4200
    %v4791 = vpop.f32.mrb[0].mxu0
    %v4792 = vadd.f32 %v4679, %v4791
    %v4793 = vpop.f32.mrb[0].mxu0
    %v4794 = vadd.f32 %v4681, %v4793
    %v4795 = vpop.f32.mrb[0].mxu0
    %v4796 = vadd.f32 %v4683, %v4795
    %v4797 = vpop.f32.mrb[0].mxu0
    %v4798 = vadd.f32 %v4685, %v4797
    %4799 = vmatprep.mubr.bf16.mxu0 %v4205
    %4800 = vmatmul.mubr.bf16.gmra.mrb[0].mxu0 %v4204
    %v4801 = vpop.f32.mrb[0].mxu0
    %v4802 = vadd.f32 %v4689, %v4801
    %v4803 = vpop.f32.mrb[0].mxu0
    %v4804 = vadd.f32 %v4691, %v4803
    %v4805 = vpop.f32.mrb[0].mxu0
    %v4806 = vadd.f32 %v4693, %v4805
    %v4807 = vpop.f32.mrb[0].mxu0
    %v4808 = vadd.f32 %v4695, %v4807
    %4809 = vmatprep.mubr.bf16.mxu0 %v4209
    %4810 = vmatmul.mubr.bf16.gmra.mrb[0].mxu0 %v4208
    %v4811 = vpop.f32.mrb[0].mxu0
    %v4812 = vadd.f32 %v4699, %v4811
    %v4813 = vpop.f32.mrb[0].mxu0
    %v4814 = vadd.f32 %v4701, %v4813
    %v4815 = vpop.f32.mrb[0].mxu0
    %v4816 = vadd.f32 %v4703, %v4815
    %v4817 = vpop.f32.mrb[0].mxu0
    %v4818 = vadd.f32 %v4705, %v4817
    %4819 = vmatprep.mubr.bf16.mxu0 %v4213
    %4820 = vmatmul.mubr.bf16.gmra.mrb[0].mxu0 %v4212
    %v4821 = vpop.f32.mrb[0].mxu0
    %v4822 = vadd.f32 %v4709, %v4821
    %v4823 = vpop.f32.mrb[0].mxu0
    %v4824 = vadd.f32 %v4711, %v4823
    %v4825 = vpop.f32.mrb[0].mxu0
    %v4826 = vadd.f32 %v4713, %v4825
    %v4827 = vpop.f32.mrb[0].mxu0
    %v4828 = vadd.f32 %v4715, %v4827
    %4829 = vmatprep.mubr.bf16.mxu0 %v4217
    %4830 = vmatmul.mubr.bf16.gmra.mrb[0].mxu0 %v4216
    %v4831 = vpop.f32.mrb[0].mxu0
    %v4832 = vadd.f32 %v4719, %v4831
    %v4833 = vpop.f32.mrb[0].mxu0
    %v4834 = vadd.f32 %v4721, %v4833
    %v4835 = vpop.f32.mrb[0].mxu0
    %v4836 = vadd.f32 %v4723, %v4835
    %v4837 = vpop.f32.mrb[0].mxu0
    %v4838 = vadd.f32 %v4725, %v4837
    %4839 = vdwg.mxu0
    %v4840 = vmax.f32 %v4762, 0.0
    %v4841 = vmax.f32 %v4764, 0.0
    %v4842 = vmax.f32 %v4766, 0.0
    %v4843 = vmax.f32 %v4768, 0.0
    %v4844 = vmax.f32 %v4772, 0.0
    %v4845 = vmax.f32 %v4774, 0.0
    %v4846 = vmax.f32 %v4776, 0.0
    %v4847 = vmax.f32 %v4778, 0.0
    %v4848 = vmax.f32 %v4782, 0.0
    %v4849 = vmax.f32 %v4784, 0.0
    %v4850 = vmax.f32 %v4786, 0.0
    %v4851 = vmax.f32 %v4788, 0.0
    %v4852 = vmax.f32 %v4792, 0.0
    %v4853 = vmax.f32 %v4794, 0.0
    %v4854 = vmax.f32 %v4796, 0.0
    %v4855 = vmax.f32 %v4798, 0.0
    %v4856 = vmax.f32 %v4802, 0.0
    %v4857 = vmax.f32 %v4804, 0.0
    %v4858 = vmax.f32 %v4806, 0.0
    %v4859 = vmax.f32 %v4808, 0.0
    %v4860 = vmax.f32 %v4812, 0.0
    %v4861 = vmax.f32 %v4814, 0.0
    %v4862 = vmax.f32 %v4816, 0.0
    %v4863 = vmax.f32 %v4818, 0.0
    %v4864 = vmax.f32 %v4822, 0.0
    %v4865 = vmax.f32 %v4824, 0.0
    %v4866 = vmax.f32 %v4826, 0.0
    %v4867 = vmax.f32 %v4828, 0.0
    %v4868 = vmax.f32 %v4832, 0.0
    %v4869 = vmax.f32 %v4834, 0.0
    %v4870 = vmax.f32 %v4836, 0.0
    %v4871 = vmax.f32 %v4838, 0.0
    %v4872 = vpack.c.bf16 %v4842, %v4840
    %v4873 = vpack.c.bf16 %v4843, %v4841
    %v4874 = vpack.c.bf16 %v4846, %v4844
    %v4875 = vpack.c.bf16 %v4847, %v4845
    %v4876 = vpack.c.bf16 %v4850, %v4848
    %v4877 = vpack.c.bf16 %v4851, %v4849
    %v4878 = vpack.c.bf16 %v4854, %v4852
    %v4879 = vpack.c.bf16 %v4855, %v4853
    %v4880 = vpack.c.bf16 %v4858, %v4856
    %v4881 = vpack.c.bf16 %v4859, %v4857
    %v4882 = vpack.c.bf16 %v4862, %v4860
    %v4883 = vpack.c.bf16 %v4863, %v4861
    %v4884 = vpack.c.bf16 %v4866, %v4864
    %v4885 = vpack.c.bf16 %v4867, %v4865
    %v4886 = vpack.c.bf16 %v4870, %v4868
    %v4887 = vpack.c.bf16 %v4871, %v4869
    %v4888 = vld [vmem:[#allocation11] sm:$0xf]
    %v4889 = vld [vmem:[#allocation11 + $0x4] sm:$0xf]
    %v4890 = vld [vmem:[#allocation11 + $0x8] sm:$0xf]
    %v4891 = vld [vmem:[#allocation11 + $0xc] sm:$0xf]
    %v4892 = vld [vmem:[#allocation11 + $0x10] sm:$0xf]
    %v4893 = vld [vmem:[#allocation11 + $0x14] sm:$0xf]
    %v4894 = vld [vmem:[#allocation11 + $0x18] sm:$0xf]
    %v4895 = vld [vmem:[#allocation11 + $0x1c] sm:$0xf]
    %v4896 = vld [vmem:[#allocation11 + $0x20] sm:$0xf]
    %v4897 = vld [vmem:[#allocation11 + $0x24] sm:$0xf]
    %v4898 = vld [vmem:[#allocation11 + $0x28] sm:$0xf]
    %v4899 = vld [vmem:[#allocation11 + $0x2c] sm:$0xf]
    %v4900 = vld [vmem:[#allocation11 + $0x30] sm:$0xf]
    %v4901 = vld [vmem:[#allocation11 + $0x34] sm:$0xf]
    %v4902 = vld [vmem:[#allocation11 + $0x38] sm:$0xf]
    %v4903 = vld [vmem:[#allocation11 + $0x3c] sm:$0xf]
    %v4904 = vld [vmem:[#allocation11 + $0x40] sm:$0xf]
    %v4905 = vld [vmem:[#allocation11 + $0x44] sm:$0xf]
    %v4906 = vld [vmem:[#allocation11 + $0x48] sm:$0xf]
    %v4907 = vld [vmem:[#allocation11 + $0x4c] sm:$0xf]
    %v4908 = vld [vmem:[#allocation11 + $0x50] sm:$0xf]
    %v4909 = vld [vmem:[#allocation11 + $0x54] sm:$0xf]
    %v4910 = vld [vmem:[#allocation11 + $0x58] sm:$0xf]
    %v4911 = vld [vmem:[#allocation11 + $0x5c] sm:$0xf]
    %v4912 = vld [vmem:[#allocation11 + $0x60] sm:$0xf]
    %v4913 = vld [vmem:[#allocation11 + $0x64] sm:$0xf]
    %v4914 = vld [vmem:[#allocation11 + $0x68] sm:$0xf]
    %v4915 = vld [vmem:[#allocation11 + $0x6c] sm:$0xf]
    %v4916 = vld [vmem:[#allocation11 + $0x70] sm:$0xf]
    %v4917 = vld [vmem:[#allocation11 + $0x74] sm:$0xf]
    %v4918 = vld [vmem:[#allocation11 + $0x78] sm:$0xf]
    %v4919 = vld [vmem:[#allocation11 + $0x7c] sm:$0xf]
    %v4920 = vld [vmem:[%s8] sm:$0x1]
    %v4922 = vlaneseq
    %v4923 = vshrl.u32 %v4922, 7
    %v4924 = vsub.s32 0, %v4923
    %v4925 = vrot.slane %v4920, %v4924
    %v4959 = vunpack.c.l.b16 %v4888
    %v4960 = vunpack.c.l.b16 %v4889
    %v4961 = vunpack.c.l.b16 %v4890
    %v4962 = vunpack.c.l.b16 %v4891
    %v4963 = vunpack.c.l.b16 %v4892
    %v4964 = vunpack.c.l.b16 %v4893
    %v4965 = vunpack.c.l.b16 %v4894
    %v4966 = vunpack.c.l.b16 %v4895
    %v4967 = vunpack.c.l.b16 %v4896
    %v4968 = vunpack.c.l.b16 %v4897
    %v4969 = vunpack.c.l.b16 %v4898
    %v4970 = vunpack.c.l.b16 %v4899
    %v4971 = vunpack.c.l.b16 %v4900
    %v4972 = vunpack.c.l.b16 %v4901
    %v4973 = vunpack.c.l.b16 %v4902
    %v4974 = vunpack.c.l.b16 %v4903
    %v4975 = vunpack.c.l.b16 %v4904
    %v4976 = vunpack.c.l.b16 %v4905
    %v4977 = vunpack.c.l.b16 %v4906
    %v4978 = vunpack.c.l.b16 %v4907
    %v4979 = vunpack.c.l.b16 %v4908
    %v4980 = vunpack.c.l.b16 %v4909
    %v4981 = vunpack.c.l.b16 %v4910
    %v4982 = vunpack.c.l.b16 %v4911
    %v4983 = vunpack.c.l.b16 %v4912
    %v4984 = vunpack.c.l.b16 %v4913
    %v4985 = vunpack.c.l.b16 %v4914
    %v4986 = vunpack.c.l.b16 %v4915
    %v4987 = vunpack.c.l.b16 %v4916
    %v4988 = vunpack.c.l.b16 %v4917
    %v4989 = vunpack.c.l.b16 %v4918
    %v4990 = vunpack.c.l.b16 %v4919
    %v4991 = vpack.c.b16 %v4960, %v4959
    %v4992 = vpack.c.b16 %v4962, %v4961
    %v4993 = vpack.c.b16 %v4964, %v4963
    %v4994 = vpack.c.b16 %v4966, %v4965
    %v4995 = vpack.c.b16 %v4968, %v4967
    %v4996 = vpack.c.b16 %v4970, %v4969
    %v4997 = vpack.c.b16 %v4972, %v4971
    %v4998 = vpack.c.b16 %v4974, %v4973
    %v4999 = vpack.c.b16 %v4976, %v4975
    %v5000 = vpack.c.b16 %v4978, %v4977
    %v5001 = vpack.c.b16 %v4980, %v4979
    %v5002 = vpack.c.b16 %v4982, %v4981
    %v5003 = vpack.c.b16 %v4984, %v4983
    %v5004 = vpack.c.b16 %v4986, %v4985
    %v5005 = vpack.c.b16 %v4988, %v4987
    %v5006 = vpack.c.b16 %v4990, %v4989
    %5023 = vmatprep.subr.bf16.mxu0 0
    %5024 = vmatpush1.bf16.msra.mxu0 %v4991
    %5025 = vmatprep.subr.bf16.mxu0 0
    %5026 = vmatpush1.bf16.msra.mxu0 %v4992
    %5027 = vmatprep.subr.bf16.mxu0 0
    %5028 = vmatpush1.bf16.msra.mxu0 %v4993
    %5029 = vmatprep.subr.bf16.mxu0 0
    %5030 = vmatpush1.bf16.msra.mxu0 %v4994
    %5031 = vmatprep.subr.bf16.mxu0 0
    %5032 = vmatpush1.bf16.msra.mxu0 %v4995
    %5033 = vmatprep.subr.bf16.mxu0 0
    %5034 = vmatpush1.bf16.msra.mxu0 %v4996
    %5035 = vmatprep.subr.bf16.mxu0 0
    %5036 = vmatpush1.bf16.msra.mxu0 %v4997
    %5037 = vmatprep.subr.bf16.mxu0 0
    %5038 = vmatpush1.bf16.msra.mxu0 %v4998
    %5039 = vmatprep.subr.bf16.mxu0 0
    %5040 = vmatpush1.bf16.msra.mxu0 %v4999
    %5041 = vmatprep.subr.bf16.mxu0 0
    %5042 = vmatpush1.bf16.msra.mxu0 %v5000
    %5043 = vmatprep.subr.bf16.mxu0 0
    %5044 = vmatpush1.bf16.msra.mxu0 %v5001
    %5045 = vmatprep.subr.bf16.mxu0 0
    %5046 = vmatpush1.bf16.msra.mxu0 %v5002
    %5047 = vmatprep.subr.bf16.mxu0 0
    %5048 = vmatpush1.bf16.msra.mxu0 %v5003
    %5049 = vmatprep.subr.bf16.mxu0 0
    %5050 = vmatpush1.bf16.msra.mxu0 %v5004
    %5051 = vmatprep.subr.bf16.mxu0 0
    %5052 = vmatpush1.bf16.msra.mxu0 %v5005
    %5053 = vmatprep.subr.bf16.mxu0 0
    %5054 = vmatpush1.bf16.msra.mxu0 %v5006
    %5055 = vmatprep.mubr.bf16.mxu0 %v4873
    %5056 = vmatmul.mubr.bf16.gmra.mrb[0].mxu0 %v4872
    %v5057 = vpop.f32.mrb[0].mxu0
    %v5058 = vadd.f32 %v4925, %v5057
    %v5059 = vpop.f32.mrb[0].mxu0
    %v5060 = vpop.f32.mrb[0].mxu0
    %v5061 = vadd.f32 %v4925, %v5060
    %v5062 = vpop.f32.mrb[0].mxu0
    %5063 = vmatprep.mubr.bf16.mxu0 %v4875
    %5064 = vmatmul.mubr.bf16.gmra.mrb[0].mxu0 %v4874
    %v5065 = vpop.f32.mrb[0].mxu0
    %v5066 = vadd.f32 %v4925, %v5065
    %v5067 = vpop.f32.mrb[0].mxu0
    %v5068 = vpop.f32.mrb[0].mxu0
    %v5069 = vadd.f32 %v4925, %v5068
    %v5070 = vpop.f32.mrb[0].mxu0
    %5071 = vmatprep.mubr.bf16.mxu0 %v4877
    %5072 = vmatmul.mubr.bf16.gmra.mrb[0].mxu0 %v4876
    %v5073 = vpop.f32.mrb[0].mxu0
    %v5074 = vadd.f32 %v4925, %v5073
    %v5075 = vpop.f32.mrb[0].mxu0
    %v5076 = vpop.f32.mrb[0].mxu0
    %v5077 = vadd.f32 %v4925, %v5076
    %v5078 = vpop.f32.mrb[0].mxu0
    %5079 = vmatprep.mubr.bf16.mxu0 %v4879
    %5080 = vmatmul.mubr.bf16.gmra.mrb[0].mxu0 %v4878
    %v5081 = vpop.f32.mrb[0].mxu0
    %v5082 = vadd.f32 %v4925, %v5081
    %v5083 = vpop.f32.mrb[0].mxu0
    %v5084 = vpop.f32.mrb[0].mxu0
    %v5085 = vadd.f32 %v4925, %v5084
    %v5086 = vpop.f32.mrb[0].mxu0
    %5087 = vmatprep.mubr.bf16.mxu0 %v4881
    %5088 = vmatmul.mubr.bf16.gmra.mrb[0].mxu0 %v4880
    %v5089 = vpop.f32.mrb[0].mxu0
    %v5090 = vadd.f32 %v4925, %v5089
    %v5091 = vpop.f32.mrb[0].mxu0
    %v5092 = vpop.f32.mrb[0].mxu0
    %v5093 = vadd.f32 %v4925, %v5092
    %v5094 = vpop.f32.mrb[0].mxu0
    %5095 = vmatprep.mubr.bf16.mxu0 %v4883
    %5096 = vmatmul.mubr.bf16.gmra.mrb[0].mxu0 %v4882
    %v5097 = vpop.f32.mrb[0].mxu0
    %v5098 = vadd.f32 %v4925, %v5097
    %v5099 = vpop.f32.mrb[0].mxu0
    %v5100 = vpop.f32.mrb[0].mxu0
    %v5101 = vadd.f32 %v4925, %v5100
    %v5102 = vpop.f32.mrb[0].mxu0
    %5103 = vmatprep.mubr.bf16.mxu0 %v4885
    %5104 = vmatmul.mubr.bf16.gmra.mrb[0].mxu0 %v4884
    %v5105 = vpop.f32.mrb[0].mxu0
    %v5106 = vadd.f32 %v4925, %v5105
    %v5107 = vpop.f32.mrb[0].mxu0
    %v5108 = vpop.f32.mrb[0].mxu0
    %v5109 = vadd.f32 %v4925, %v5108
    %v5110 = vpop.f32.mrb[0].mxu0
    %5111 = vmatprep.mubr.bf16.mxu0 %v4887
    %5112 = vmatmul.mubr.bf16.gmra.mrb[0].mxu0 %v4886
    %v5113 = vpop.f32.mrb[0].mxu0
    %v5114 = vadd.f32 %v4925, %v5113
    %v5115 = vpop.f32.mrb[0].mxu0
    %v5116 = vpop.f32.mrb[0].mxu0
    %v5117 = vadd.f32 %v4925, %v5116
    %v5118 = vpop.f32.mrb[0].mxu0
    %5119 = vdwg.mxu0
    %v5120 = vmax.f32 %v5058, 0.0
    %v5121 = vmax.f32 %v5061, 0.0
    %v5122 = vmax.f32 %v5066, 0.0
    %v5123 = vmax.f32 %v5069, 0.0
    %v5124 = vmax.f32 %v5074, 0.0
    %v5125 = vmax.f32 %v5077, 0.0
    %v5126 = vmax.f32 %v5082, 0.0
    %v5127 = vmax.f32 %v5085, 0.0
    %v5128 = vmax.f32 %v5090, 0.0
    %v5129 = vmax.f32 %v5093, 0.0
    %v5130 = vmax.f32 %v5098, 0.0
    %v5131 = vmax.f32 %v5101, 0.0
    %v5132 = vmax.f32 %v5106, 0.0
    %v5133 = vmax.f32 %v5109, 0.0
    %v5134 = vmax.f32 %v5114, 0.0
    %v5135 = vmax.f32 %v5117, 0.0
    %v5136 = vld [vmem:[%s9] sm:$0x1]
    %v5137 = vld [vmem:[#allocation2] sm:$0x1]
    %5139 = vset.pattern.permute.xlu0 0
    %5140 = vperm.xlu0 %5139, %v5137
    %v5141 = vpop.permute.xlu0 %5140
    %v5143 = vlaneseq
    %v5144 = vshrl.u32 %v5143, 7
    %v5145 = vsub.s32 0, %v5144
    %v5146 = vrot.slane %v5141, %v5145
    %5147 = vmatprep.subr.mxu0 0.0
    %5148 = vmatpush1.xpose.msra.mxu0 %v5120
    %5149 = vmatprep.subr.mxu0 0.0
    %5150 = vmatpush1.xpose.msra.mxu0 %v5121
    %5151 = vmatprep.subr.mxu0 0.0
    %5152 = vmatpush1.xpose.msra.mxu0 %v5122
    %5153 = vmatprep.subr.mxu0 0.0
    %5154 = vmatpush1.xpose.msra.mxu0 %v5123
    %5155 = vmatprep.subr.mxu0 0.0
    %5156 = vmatpush1.xpose.msra.mxu0 %v5124
    %5157 = vmatprep.subr.mxu0 0.0
    %5158 = vmatpush1.xpose.msra.mxu0 %v5125
    %5159 = vmatprep.subr.mxu0 0.0
    %5160 = vmatpush1.xpose.msra.mxu0 %v5126
    %5161 = vmatprep.subr.mxu0 0.0
    %5162 = vmatpush1.xpose.msra.mxu0 %v5127
    %5163 = vmatprep.subr.mxu0 0.0
    %5164 = vmatpush1.xpose.msra.mxu0 %v5128
    %5165 = vmatprep.subr.mxu0 0.0
    %5166 = vmatpush1.xpose.msra.mxu0 %v5129
    %5167 = vmatprep.subr.mxu0 0.0
    %5168 = vmatpush1.xpose.msra.mxu0 %v5130
    %5169 = vmatprep.subr.mxu0 0.0
    %5170 = vmatpush1.xpose.msra.mxu0 %v5131
    %5171 = vmatprep.subr.mxu0 0.0
    %5172 = vmatpush1.xpose.msra.mxu0 %v5132
    %5173 = vmatprep.subr.mxu0 0.0
    %5174 = vmatpush1.xpose.msra.mxu0 %v5133
    %5175 = vmatprep.subr.mxu0 0.0
    %5176 = vmatpush1.xpose.msra.mxu0 %v5134
    %5177 = vmatprep.subr.mxu0 0.0
    %5178 = vmatpush1.xpose.msra.mxu0 %v5135
    %5179 = vmatprep.subr.mxu0 0.0
    %5180 = vmatpush1.xpose.msra.mxu0 0.0
    %5181 = vmatprep.subr.mxu0 0.0
    %5182 = vmatpush1.xpose.msra.mxu0 0.0
    %5183 = vmatprep.subr.mxu0 0.0
    %5184 = vmatpush1.xpose.msra.mxu0 0.0
    %5185 = vmatprep.subr.mxu0 0.0
    %5186 = vmatpush1.xpose.msra.mxu0 0.0
    %5187 = vmatprep.subr.mxu0 0.0
    %5188 = vmatpush1.xpose.msra.mxu0 0.0
    %5189 = vmatprep.subr.mxu0 0.0
    %5190 = vmatpush1.xpose.msra.mxu0 0.0
    %5191 = vmatprep.subr.mxu0 0.0
    %5192 = vmatpush1.xpose.msra.mxu0 0.0
    %5193 = vmatprep.subr.mxu0 0.0
    %5194 = vmatpush1.xpose.msra.mxu0 0.0
    %5195 = vmatprep.subr.mxu0 0.0
    %5196 = vmatpush1.xpose.msra.mxu0 0.0
    %5197 = vmatprep.subr.mxu0 0.0
    %5198 = vmatpush1.xpose.msra.mxu0 0.0
    %5199 = vmatprep.subr.mxu0 0.0
    %5200 = vmatpush1.xpose.msra.mxu0 0.0
    %5201 = vmatprep.subr.mxu0 0.0
    %5202 = vmatpush1.xpose.msra.mxu0 0.0
    %5203 = vmatprep.subr.mxu0 0.0
    %5204 = vmatpush1.xpose.msra.mxu0 0.0
    %5205 = vmatprep.subr.mxu0 0.0
    %5206 = vmatpush1.xpose.msra.mxu0 0.0
    %5207 = vmatprep.subr.mxu0 0.0
    %5208 = vmatpush1.xpose.msra.mxu0 0.0
    %5209 = vmatprep.subr.mxu0 0.0
    %5210 = vmatpush1.xpose.msra.mxu0 0.0
    %5211 = vmatprep.mubr.f32.mxu0 0.0
    %5212 = vmatmul.mubr.f32.gmra.mrb[0].mxu0 %v5136
    %v5213 = vpop.f32.mrb[0].mxu0
    %v5214 = vadd.f32 %v5146, %v5213
    %v5215 = vpop.f32.mrb[0].mxu0
    %5216 = vdwg.mxu0
    %v5217 = vsub.f32 0.0, %v5214
    %v5218 = vmul.f32 %v5217, 1.442695
    %v5219 = vpow.pop %v5218
    %v5220 = vadd.f32 %v5219, 1.0
    %v5221 = vrcp.pop %v5220
    %5222 = vst [vmem:[#allocation12] sm:$0x1] %v5221
    // Predicated region
    $region66: #{tpu_custom_call.1} parent=1 // pred_check
      _
    $region67: #{tpu_custom_call.1} parent=1 // pred_check_branch
      %5224 = sbr.rel (0) target = $region69
    $region68: #{tpu_custom_call.1} parent=1 // pred_region
      %s5226 = ssub.s32 16, 16
      %5227 = vsyncadd [#allocation5], %s5226
      %s5229 = sshll.u32 [#allocation12], 4
      %s5230 = int_to_ptr.vmem [resolvable:$true] %s5229
      %5232 = dma.vmem_to_hbm [thread:$0]  %s5230, 16, %s11, [#allocation5]
    $region69: #{tpu_custom_call.1} parent=1 // pred_fallthru
      _
    // Predicated region
    $region70: #{tpu_custom_call.1} parent=1 // pred_check
      _
    $region71: #{tpu_custom_call.1} parent=1 // pred_check_branch
      %5234 = sbr.rel (0) target = $region73
    $region72: #{tpu_custom_call.1} parent=1 // pred_region
      %5235 = dma.done [#allocation5], 16
    $region73: #{tpu_custom_call.1} parent=1 // pred_fallthru
      _
    %5236 = vsyncpa [#allocation4], 1
    %5237 = vsyncpa [#allocation7], 1
    %5238 = vsyncpa [#allocation10], 1
    %5239 = vsyncpa [#allocation5], 1

</llo_original>
